<compile_context>
chip_gen: v5e
topology: v5e:2x2
jax: 0.10.0
libtpu: 0.0.40
codegen_flags: <defaults>
</compile_context>

<pallas_src>
import numpy as np
import jax
import jax.numpy as jnp
from jax.experimental import pallas as pl
from jax.experimental.pallas import tpu as pltpu


# ----------------------------------------------------------------------------
# Pallas kernel: one grid step == one block of B_blk students
# ----------------------------------------------------------------------------
def deep_irt_kernel(
    maxlen_ref,                                   # SMEM (num_blocks,)  per-block max length
    mask_ref,                                     # (Bb, T)  f32 {0,1}: t < length
    stu_ref,                                      # (Bb, D)
    kcode_ref,                                    # (K, Bb, D)   knowledge-major
    qid_ref,                                      # (T, Bb, D)   time-major
    w1f_ref, b1f_ref,                             # fused Theta/A layer-1: (2D,2Hd) bf16, (1,2Hd)
    tw2_ref, tb2_ref,                             # Theta head
    aw2_ref, ab2_ref,                             # A head
    wih_ref, whh_ref, bl_ref,                     # fused LSTM: (D,4H) bf16, (H,4H) bf16, (1,4H)
    fcw_ref, fcb_ref,                             # LSTM output head
    out_ref,                                      # (Bb, 1)
    h_ref, c_ref,                                 # VMEM scratch (Bb, Hl) f32
):
    K, Bb, D = kcode_ref.shape
    T = qid_ref.shape[0]
    Hl = whh_ref.shape[0]
    Hd = tw2_ref.shape[1]

    stu = stu_ref[...]                            # (Bb, D)
    kc = kcode_ref[...]                           # (K, Bb, D)
    qid = qid_ref[...]                            # (T, Bb, D)
    kvecs = [kc[k] for k in range(K)]             # K x (Bb, D), contiguous tiles

    # mastery_k = sigmoid(<kcode_k, stu> * 0.2); mastvec = sum_k mastery_k * kcode_k
    # avec = sum_k kcode_k                               (all VPU / lane reduce)
    mastvec = jnp.zeros((Bb, D), jnp.float32)
    avec = jnp.zeros((Bb, D), jnp.float32)
    for k in range(K):
        kv = kvecs[k]
        mastery_k = jax.nn.sigmoid(
            jnp.sum(kv * stu, axis=-1, keepdims=True) * 0.2)     # (Bb, 1)
        mastvec = mastvec + mastery_k * kv
        avec = avec + kv

    # Scaled dot-product attention over the K knowledge codes (VPU/XLU only).
    # scores_k = 0.15 * <qid_t, kcode_k>  per (t, student)      -> (T, Bb)
    scores = [0.15 * jnp.sum(qid * kv[None, :, :], axis=-1) for kv in kvecs]
    smax = scores[0]
    for k in range(1, K):
        smax = jnp.maximum(smax, scores[k])
    exps = [jnp.exp(s - smax) for s in scores]
    denom = exps[0]
    for k in range(1, K):
        denom = denom + exps[k]
    inv_denom = pl.reciprocal(denom, approx=True)                # (T, Bb)
    # bvec (time-major) = sum_k softmax_k * kcode_k              -> (T, Bb, D)
    bvec = (exps[0] * inv_denom)[:, :, None] * kvecs[0][None, :, :]
    for k in range(1, K):
        bvec = bvec + (exps[k] * inv_denom)[:, :, None] * kvecs[k][None, :, :]

    # Fused Theta/A first layer: one (Bb, 2D) x (2D, 2Hd) bf16 MXU matmul.
    x12 = jnp.concatenate([mastvec, avec], axis=-1).astype(jnp.bfloat16)
    h12 = jnp.maximum(
        jnp.dot(x12, w1f_ref[...], preferred_element_type=jnp.float32)
        + b1f_ref[...], 0.0)                                      # (Bb, 2Hd)
    th = h12[:, :Hd]
    ah = h12[:, Hd:]

    # Second layers: VPU mul + lane reduce, kept as (Bb, 1) columns.
    theta = jnp.sum(th * tw2_ref[...], axis=-1, keepdims=True) + tb2_ref[...]
    a_lin = jnp.sum(ah * aw2_ref[...], axis=-1, keepdims=True) + ab2_ref[...]
    a = 8.0 * (jax.nn.sigmoid(jnp.abs(a_lin)) - 0.5)

    # LSTM: hoisted time-major input projection (one tall bf16 matmul).
    xg = jnp.dot(bvec.reshape(T * Bb, D).astype(jnp.bfloat16), wih_ref[...],
                 preferred_element_type=jnp.float32) + bl_ref[...]   # (T*Bb, 4Hl)
    x_gates = xg.reshape(T, Bb, 4 * Hl)

    whh = whh_ref[...]                                               # (Hl, 4Hl) bf16
    mask = mask_ref[...]                                             # (Bb, T)
    h_ref[...] = jnp.zeros_like(h_ref)
    c_ref[...] = jnp.zeros_like(c_ref)
    maxlen = maxlen_ref[pl.program_id(0)]

    for t in range(T):                           # static T -> fully unrolled
        @pl.when(t < maxlen)                     # skip fully-masked trailing steps
        def _step(t=t):
            h = h_ref[...]
            c = c_ref[...]
            gates = x_gates[t] + jnp.dot(h.astype(jnp.bfloat16), whh,
                                         preferred_element_type=jnp.float32)
            ig = jax.nn.sigmoid(gates[:, 0 * Hl:1 * Hl])
            fg = jax.nn.sigmoid(gates[:, 1 * Hl:2 * Hl])
            gg = jnp.tanh(gates[:, 2 * Hl:3 * Hl])
            og = jax.nn.sigmoid(gates[:, 3 * Hl:4 * Hl])
            c_n = fg * c + ig * gg
            h_n = og * jnp.tanh(c_n)
            m = mask[:, t:t + 1]                 # (Bb, 1): 1 while t < student length
            nm = 1.0 - m
            h_ref[...] = m * h_n + nm * h
            c_ref[...] = m * c_n + nm * c

    h_fin = h_ref[...]
    b_lin = jnp.sum(h_fin * fcw_ref[...], axis=-1, keepdims=True) + fcb_ref[...]
    b = 8.0 * (jax.nn.sigmoid(b_lin) - 0.5)

    # IRT combine, column form; (Bb, 1) store.
    out_ref[...] = jax.nn.sigmoid(a * (theta - b))


# ----------------------------------------------------------------------------
# Wrapper helpers
# ----------------------------------------------------------------------------
def _round_up(x, m):
    return ((x + m - 1) // m) * m


def _cdiv(a, b):
    return -(-a // b)


def _pad_axis0(x, n):
    pad = n - x.shape[0]
    if pad == 0:
        return x
    widths = [(0, pad)] + [(0, 0)] * (x.ndim - 1)
    return jnp.pad(x, widths)


def _choose_block_b(B, max_block=512):
    """Batch block: multiple of 8, as large as reasonable, minimal padding,
    and >= 2 grid steps when the batch allows (v7x dual-TensorCore)."""
    B8 = _round_up(max(B, 1), 8)
    if B8 <= 8:
        return 8
    if B8 <= max_block:
        # Split into two blocks so the "parallel" axis can shard across 2 TCs.
        return _round_up(_cdiv(B8, 2), 8)
    # Large batch: biggest block <= max_block with minimal padding waste.
    best_blk = max_block
    best_pad = _cdiv(B8, max_block) * max_block - B8
    blk = max_block - 8
    while blk >= max_block // 2:
        pad = _cdiv(B8, blk) * blk - B8
        if pad < best_pad:
            best_blk, best_pad = blk, pad
        blk -= 8
    return best_blk


def _tile_bytes(shape, itemsize=4):
    shape = tuple(shape)
    if len(shape) == 1:
        shape = (1,) + shape
    lead = 1
    for s in shape[:-2]:
        lead *= s
    return lead * _round_up(shape[-2], 8) * _round_up(shape[-1], 128) * itemsize


def _vmem_limit_bytes(B_blk, T, K, D, Hl):
    io = (_tile_bytes((B_blk, T)) + _tile_bytes((B_blk, D)) +
          _tile_bytes((K, B_blk, D)) + _tile_bytes((T, B_blk, D)) +
          _tile_bytes((B_blk, 1)))
    interm = (_tile_bytes((T, B_blk, D)) +              # bvec
              _tile_bytes((T, B_blk, 4 * Hl)) +         # x_gates
              2 * K * _tile_bytes((T, B_blk)) +         # scores / exps
              4 * _tile_bytes((B_blk, 4 * Hl)))         # per-step gates
    est = 2 * io + interm + (4 << 20)                   # double-buffered inputs + weights/slack
    # Keep comfortably under v7x's 64 MiB physical VMEM.
    return int(min(max(est, 16 << 20), 48 << 20))


# ----------------------------------------------------------------------------
# Wrapper (embedding lookups, length sort, weight fusion, pallas_call plumbing)
# ----------------------------------------------------------------------------
def deep_irt_forward(uididx, kcodeidx, qidemb, qidemblength, params, max_block=512):
    B = int(uididx.shape[0])
    K = int(kcodeidx.shape[1])
    T = int(qidemb.shape[1])
    D = int(params["stu_table"].shape[1])
    Hl = int(params["w_hh"].shape[2])
    Hd = int(params["theta_w1"].shape[1])

    # Sort students by descending length so per-block max-length step skipping
    # removes the most transcendental (EUP) work; undo the permutation at the end.
    lengths = qidemblength.astype(jnp.int32)
    order = jnp.argsort(-lengths)
    stu = params["stu_table"][uididx[order]].astype(jnp.float32)     # (B, D)
    kcode = params["kn_table"][kcodeidx[order]].astype(jnp.float32)  # (B, K, D)
    qid = qidemb[order].astype(jnp.float32)                          # (B, T, D)
    len_s = lengths[order]

    B_blk = _choose_block_b(B, max_block)
    B_pad = _cdiv(B, B_blk) * B_blk
    num_blocks = B_pad // B_blk

    stu = _pad_axis0(stu, B_pad)
    kcode = _pad_axis0(kcode, B_pad)
    qid = _pad_axis0(qid, B_pad)
    len_p = _pad_axis0(len_s, B_pad)

    mask = (jnp.arange(T, dtype=jnp.int32)[None, :]
            < len_p[:, None]).astype(jnp.float32)                    # (B_pad, T)
    block_maxlen = jnp.max(len_p.reshape(num_blocks, B_blk), axis=1).astype(jnp.int32)

    kcode_km = jnp.transpose(kcode, (1, 0, 2))        # (K, B_pad, D) knowledge-major
    qid_tm = jnp.transpose(qid, (1, 0, 2))            # (T, B_pad, D) time-major

    # Fuse Theta/A layer-1 into one block-diagonal weight; fuse LSTM gates (i,f,g,o).
    w1f = jnp.zeros((2 * D, 2 * Hd), jnp.float32)
    w1f = w1f.at[:D, :Hd].set(params["theta_w1"]).at[D:, Hd:].set(params["a_w1"])
    b1f = jnp.concatenate([params["theta_b1"], params["a_b1"]], axis=-1)   # (1, 2Hd)
    w_ih_all = jnp.transpose(params["w_ih"], (1, 0, 2)).reshape(D, 4 * Hl)
    w_hh_all = jnp.transpose(params["w_hh"], (1, 0, 2)).reshape(Hl, 4 * Hl)
    b_all = params["b_lstm"].reshape(1, 4 * Hl)

    weights = [
        w1f.astype(jnp.bfloat16), b1f,
        params["theta_w2"], params["theta_b2"],
        params["a_w2"], params["a_b2"],
        w_ih_all.astype(jnp.bfloat16), w_hh_all.astype(jnp.bfloat16), b_all,
        params["fc_w"], params["fc_b"],
    ]

    def rep_spec(shape):
        r = len(shape)
        return pl.BlockSpec(shape, lambda g, ml, _r=r: (0,) * _r)

    in_specs = [
        pl.BlockSpec((B_blk, T), lambda g, ml: (g, 0)),
        pl.BlockSpec((B_blk, D), lambda g, ml: (g, 0)),
        pl.BlockSpec((K, B_blk, D), lambda g, ml: (0, g, 0)),
        pl.BlockSpec((T, B_blk, D), lambda g, ml: (0, g, 0)),
    ] + [rep_spec(w.shape) for w in weights]

    out = pl.pallas_call(
        deep_irt_kernel,
        out_shape=jax.ShapeDtypeStruct((B_pad, 1), jnp.float32),
        grid_spec=pltpu.PrefetchScalarGridSpec(
            num_scalar_prefetch=1,
            grid=(num_blocks,),
            in_specs=in_specs,
            out_specs=pl.BlockSpec((B_blk, 1), lambda g, ml: (g, 0)),
            scratch_shapes=[pltpu.VMEM((B_blk, Hl), jnp.float32),
                            pltpu.VMEM((B_blk, Hl), jnp.float32)],
        ),
        compiler_params=pltpu.CompilerParams(
            dimension_semantics=("parallel",),
            vmem_limit_bytes=_vmem_limit_bytes(B_blk, T, K, D, Hl),
        ),
    )(block_maxlen, mask, stu, kcode_km, qid_tm, *weights)

    # Undo the length sort; drop padding rows.
    result = jnp.zeros((B,), jnp.float32).at[order].set(out[:B, 0])
    return result.reshape(B, 1)


# ----------------------------------------------------------------------------
# Pure-JAX reference (same semantics, batch loop in python)
# ----------------------------------------------------------------------------
def reference_forward(uididx, kcodeidx, qidemb, qidemblength, params):
    stu_emb = params["stu_table"][uididx]
    kcode_emb = params["kn_table"][kcodeidx]
    B, T = stu_emb.shape[0], qidemb.shape[1]
    Hl = params["w_hh"].shape[2]
    outs = []
    for i in range(B):
        stu, kc, q = stu_emb[i], kcode_emb[i], qidemb[i]
        mastery = jax.nn.sigmoid((kc @ stu[:, None]) / 5.0)
        mastvec = jnp.sum(mastery * kc, axis=0)
        avec = jnp.sum(kc, axis=0)
        attn = jax.nn.softmax((q @ kc.T) * 0.15, axis=-1)
        bvec = attn @ kc

        th = jnp.maximum(mastvec @ params["theta_w1"] + params["theta_b1"][0], 0.0)
        theta = jnp.sum(th * params["theta_w2"][0]) + params["theta_b2"][0, 0]
        ah = jnp.maximum(avec @ params["a_w1"] + params["a_b1"][0], 0.0)
        a_raw = jnp.sum(ah * params["a_w2"][0]) + params["a_b2"][0, 0]
        a = 8.0 * (jax.nn.sigmoid(jnp.abs(a_raw)) - 0.5)

        h = jnp.zeros((Hl,), jnp.float32)
        c = jnp.zeros((Hl,), jnp.float32)
        L = int(qidemblength[i])
        for t in range(T):
            x = bvec[t]
            ig = jax.nn.sigmoid(x @ params["w_ih"][0] + h @ params["w_hh"][0] + params["b_lstm"][0, 0])
            fg = jax.nn.sigmoid(x @ params["w_ih"][1] + h @ params["w_hh"][1] + params["b_lstm"][1, 0])
            gg = jnp.tanh(x @ params["w_ih"][2] + h @ params["w_hh"][2] + params["b_lstm"][2, 0])
            og = jax.nn.sigmoid(x @ params["w_ih"][3] + h @ params["w_hh"][3] + params["b_lstm"][3, 0])
            c_n = fg * c + ig * gg
            h_n = og * jnp.tanh(c_n)
            if t < L:
                h, c = h_n, c_n
        b_raw = jnp.sum(h * params["fc_w"][0]) + params["fc_b"][0, 0]
        b = 8.0 * (jax.nn.sigmoid(b_raw) - 0.5)
        outs.append(jax.nn.sigmoid(a * (theta - b)))
    return jnp.stack(outs).reshape(B, 1)


# ----------------------------------------------------------------------------
# Deterministic parameter init
# ----------------------------------------------------------------------------
def init_params(key, D, Hd, Hl, n_students, n_knowledge):
    ks = jax.random.split(key, 15)

    def rnd(k, shape, s=0.1):
        return (jax.random.normal(k, shape) * s).astype(jnp.float32)

    return dict(
        stu_table=rnd(ks[0], (n_students, D), 0.5),
        kn_table=rnd(ks[1], (n_knowledge, D), 0.5),
        theta_w1=rnd(ks[2], (D, Hd)), theta_b1=rnd(ks[3], (1, Hd)),
        theta_w2=rnd(ks[4], (1, Hd)), theta_b2=rnd(ks[5], (1, 1)),
        a_w1=rnd(ks[6], (D, Hd)), a_b1=rnd(ks[7], (1, Hd)),
        a_w2=rnd(ks[8], (1, Hd)), a_b2=rnd(ks[9], (1, 1)),
        w_ih=rnd(ks[10], (4, D, Hl)), w_hh=rnd(ks[11], (4, Hl, Hl)),
        b_lstm=rnd(ks[12], (4, 1, Hl)),
        fc_w=rnd(ks[13], (1, Hl)), fc_b=rnd(ks[14], (1, 1)),
    )


if __name__ == "__main__":
    # Small shapes: denseDim=32, dnn_hidden=32, lstm_hidden=32, dnn_output=1,
    # batch=2, K=8 knowledge codes / student, T=8 question-seq length.
    D, Hd, Hl = 32, 32, 32
    B, K, T = 2, 8, 8
    n_students, n_knowledge = 16, 20

    key = jax.random.PRNGKey(0)
    kp, k1, k2, k3 = jax.random.split(key, 4)
    params = init_params(kp, D, Hd, Hl, n_students, n_knowledge)

    uididx = jax.random.randint(k1, (B,), 0, n_students, dtype=jnp.int32)
    kcodeidx = jax.random.randint(k2, (B, K), 0, n_knowledge, dtype=jnp.int32)
    qidemb = (jax.random.normal(k3, (B, T, D)) * 0.5).astype(jnp.float32)
    qidemblength = jnp.array([5, T], dtype=jnp.int32)   # unequal lengths: exercises sort + masking

    out = deep_irt_forward(uididx, kcodeidx, qidemb, qidemblength, params)
    out = jax.block_until_ready(out)

    ref = reference_forward(uididx, kcodeidx, qidemb, qidemblength, params)
    assert out.shape == (B, 1)
    # bf16 MXU operands (f32 accumulation) -> slightly looser tolerance than pure f32.
    np.testing.assert_allclose(np.asarray(out), np.asarray(ref), atol=2e-2, rtol=2e-2)

    print("KERNEL_OK")
</pallas_src>

<mosaic_0001>
module attributes {stable_mosaic.version = 11 : i64} {
  func.func @deep_irt_kernel(%arg0: i32, %arg1: memref<1xi32, #tpu.memory_space<smem>>, %arg2: memref<8x8xf32, #tpu.memory_space<vmem>>, %arg3: memref<8x32xf32, #tpu.memory_space<vmem>>, %arg4: memref<8x8x32xf32, #tpu.memory_space<vmem>>, %arg5: memref<8x8x32xf32, #tpu.memory_space<vmem>>, %arg6: memref<64x64xbf16, #tpu.memory_space<vmem>>, %arg7: memref<1x64xf32, #tpu.memory_space<vmem>>, %arg8: memref<1x32xf32, #tpu.memory_space<vmem>>, %arg9: memref<1x1xf32, #tpu.memory_space<vmem>>, %arg10: memref<1x32xf32, #tpu.memory_space<vmem>>, %arg11: memref<1x1xf32, #tpu.memory_space<vmem>>, %arg12: memref<32x128xbf16, #tpu.memory_space<vmem>>, %arg13: memref<32x128xbf16, #tpu.memory_space<vmem>>, %arg14: memref<1x128xf32, #tpu.memory_space<vmem>>, %arg15: memref<1x32xf32, #tpu.memory_space<vmem>>, %arg16: memref<1x1xf32, #tpu.memory_space<vmem>>, %arg17: memref<8x1xf32, #tpu.memory_space<vmem>>, %arg18: memref<8x32xf32, #tpu.memory_space<vmem>>, %arg19: memref<8x32xf32, #tpu.memory_space<vmem>>) attributes {dimension_semantics = [#tpu.dimension_semantics<parallel>], iteration_bounds = array<i64: 1>, scalar_prefetch = 1 : i64, scratch_operands = 2 : i64, tpu.core_type = #tpu.core_type<tc>, window_params = [{transform_indices = @transform_0, window_bounds = array<i64: 8, 8>}, {transform_indices = @transform_1, window_bounds = array<i64: 8, 32>}, {transform_indices = @transform_2, window_bounds = array<i64: 8, 8, 32>}, {transform_indices = @transform_3, window_bounds = array<i64: 8, 8, 32>}, {pipeline_mode = #tpu.pipeline_mode<synchronous>, transform_indices = @transform_4, window_bounds = array<i64: 64, 64>}, {pipeline_mode = #tpu.pipeline_mode<synchronous>, transform_indices = @transform_5, window_bounds = array<i64: 1, 64>}, {pipeline_mode = #tpu.pipeline_mode<synchronous>, transform_indices = @transform_6, window_bounds = array<i64: 1, 32>}, {pipeline_mode = #tpu.pipeline_mode<synchronous>, transform_indices = @transform_7, window_bounds = array<i64: 1, 1>}, {pipeline_mode = #tpu.pipeline_mode<synchronous>, transform_indices = @transform_8, window_bounds = array<i64: 1, 32>}, {pipeline_mode = #tpu.pipeline_mode<synchronous>, transform_indices = @transform_9, window_bounds = array<i64: 1, 1>}, {pipeline_mode = #tpu.pipeline_mode<synchronous>, transform_indices = @transform_10, window_bounds = array<i64: 32, 128>}, {pipeline_mode = #tpu.pipeline_mode<synchronous>, transform_indices = @transform_11, window_bounds = array<i64: 32, 128>}, {pipeline_mode = #tpu.pipeline_mode<synchronous>, transform_indices = @transform_12, window_bounds = array<i64: 1, 128>}, {pipeline_mode = #tpu.pipeline_mode<synchronous>, transform_indices = @transform_13, window_bounds = array<i64: 1, 32>}, {pipeline_mode = #tpu.pipeline_mode<synchronous>, transform_indices = @transform_14, window_bounds = array<i64: 1, 1>}, {transform_indices = @transform_15, window_bounds = array<i64: 8, 1>}]} {
    %c0 = arith.constant 0 : index
    %c0_0 = arith.constant 0 : index
    %0 = vector.load %arg3[%c0, %c0_0] : memref<8x32xf32, #tpu.memory_space<vmem>>, vector<8x32xf32>
    %c0_1 = arith.constant 0 : index
    %c0_2 = arith.constant 0 : index
    %c0_3 = arith.constant 0 : index
    %1 = vector.load %arg4[%c0_1, %c0_2, %c0_3] : memref<8x8x32xf32, #tpu.memory_space<vmem>>, vector<8x8x32xf32>
    %c0_4 = arith.constant 0 : index
    %c0_5 = arith.constant 0 : index
    %c0_6 = arith.constant 0 : index
    %2 = vector.load %arg5[%c0_4, %c0_5, %c0_6] : memref<8x8x32xf32, #tpu.memory_space<vmem>>, vector<8x8x32xf32>
    %3 = vector.extract_strided_slice %1 {offsets = [0, 0, 0], sizes = [1, 8, 32], strides = [1, 1, 1]} : vector<8x8x32xf32> to vector<1x8x32xf32>
    %4 = vector.shape_cast %3 : vector<1x8x32xf32> to vector<8x32xf32>
    %5 = vector.extract_strided_slice %1 {offsets = [1, 0, 0], sizes = [1, 8, 32], strides = [1, 1, 1]} : vector<8x8x32xf32> to vector<1x8x32xf32>
    %6 = vector.shape_cast %5 : vector<1x8x32xf32> to vector<8x32xf32>
    %7 = vector.extract_strided_slice %1 {offsets = [2, 0, 0], sizes = [1, 8, 32], strides = [1, 1, 1]} : vector<8x8x32xf32> to vector<1x8x32xf32>
    %8 = vector.shape_cast %7 : vector<1x8x32xf32> to vector<8x32xf32>
    %9 = vector.extract_strided_slice %1 {offsets = [3, 0, 0], sizes = [1, 8, 32], strides = [1, 1, 1]} : vector<8x8x32xf32> to vector<1x8x32xf32>
    %10 = vector.shape_cast %9 : vector<1x8x32xf32> to vector<8x32xf32>
    %11 = vector.extract_strided_slice %1 {offsets = [4, 0, 0], sizes = [1, 8, 32], strides = [1, 1, 1]} : vector<8x8x32xf32> to vector<1x8x32xf32>
    %12 = vector.shape_cast %11 : vector<1x8x32xf32> to vector<8x32xf32>
    %13 = vector.extract_strided_slice %1 {offsets = [5, 0, 0], sizes = [1, 8, 32], strides = [1, 1, 1]} : vector<8x8x32xf32> to vector<1x8x32xf32>
    %14 = vector.shape_cast %13 : vector<1x8x32xf32> to vector<8x32xf32>
    %15 = vector.extract_strided_slice %1 {offsets = [6, 0, 0], sizes = [1, 8, 32], strides = [1, 1, 1]} : vector<8x8x32xf32> to vector<1x8x32xf32>
    %16 = vector.shape_cast %15 : vector<1x8x32xf32> to vector<8x32xf32>
    %17 = vector.extract_strided_slice %1 {offsets = [7, 0, 0], sizes = [1, 8, 32], strides = [1, 1, 1]} : vector<8x8x32xf32> to vector<1x8x32xf32>
    %18 = vector.shape_cast %17 : vector<1x8x32xf32> to vector<8x32xf32>
    %cst = arith.constant 0.000000e+00 : f32
    %19 = vector.broadcast %cst : f32 to vector<8x32xf32>
    %cst_7 = arith.constant 0.000000e+00 : f32
    %20 = vector.broadcast %cst_7 : f32 to vector<8x32xf32>
    %21 = arith.mulf %4, %0 : vector<8x32xf32>
    %cst_8 = arith.constant dense<0.000000e+00> : vector<8xf32>
    %22 = vector.multi_reduction <add>, %21, %cst_8 [1] : vector<8x32xf32> to vector<8xf32>
    %23 = vector.shape_cast %22 : vector<8xf32> to vector<8x1xf32>
    %cst_9 = arith.constant 2.000000e-01 : f32
    %24 = vector.broadcast %cst_9 : f32 to vector<8x1xf32>
    %25 = arith.mulf %23, %24 : vector<8x1xf32>
    %26 = arith.negf %25 : vector<8x1xf32>
    %27 = math.exp %26 : vector<8x1xf32>
    %cst_10 = arith.constant 1.000000e+00 : f32
    %28 = vector.broadcast %cst_10 : f32 to vector<8x1xf32>
    %29 = arith.addf %28, %27 : vector<8x1xf32>
    %30 = arith.divf %28, %29 : vector<8x1xf32>
    %31 = vector.broadcast %30 : vector<8x1xf32> to vector<8x32xf32>
    %32 = arith.mulf %31, %4 : vector<8x32xf32>
    %33 = arith.addf %19, %32 : vector<8x32xf32>
    %34 = arith.addf %20, %4 : vector<8x32xf32>
    %35 = arith.mulf %6, %0 : vector<8x32xf32>
    %cst_11 = arith.constant dense<0.000000e+00> : vector<8xf32>
    %36 = vector.multi_reduction <add>, %35, %cst_11 [1] : vector<8x32xf32> to vector<8xf32>
    %37 = vector.shape_cast %36 : vector<8xf32> to vector<8x1xf32>
    %cst_12 = arith.constant 2.000000e-01 : f32
    %38 = vector.broadcast %cst_12 : f32 to vector<8x1xf32>
    %39 = arith.mulf %37, %38 : vector<8x1xf32>
    %40 = arith.negf %39 : vector<8x1xf32>
    %41 = math.exp %40 : vector<8x1xf32>
    %cst_13 = arith.constant 1.000000e+00 : f32
    %42 = vector.broadcast %cst_13 : f32 to vector<8x1xf32>
    %43 = arith.addf %42, %41 : vector<8x1xf32>
    %44 = arith.divf %42, %43 : vector<8x1xf32>
    %45 = vector.broadcast %44 : vector<8x1xf32> to vector<8x32xf32>
    %46 = arith.mulf %45, %6 : vector<8x32xf32>
    %47 = arith.addf %33, %46 : vector<8x32xf32>
    %48 = arith.addf %34, %6 : vector<8x32xf32>
    %49 = arith.mulf %8, %0 : vector<8x32xf32>
    %cst_14 = arith.constant dense<0.000000e+00> : vector<8xf32>
    %50 = vector.multi_reduction <add>, %49, %cst_14 [1] : vector<8x32xf32> to vector<8xf32>
    %51 = vector.shape_cast %50 : vector<8xf32> to vector<8x1xf32>
    %cst_15 = arith.constant 2.000000e-01 : f32
    %52 = vector.broadcast %cst_15 : f32 to vector<8x1xf32>
    %53 = arith.mulf %51, %52 : vector<8x1xf32>
    %54 = arith.negf %53 : vector<8x1xf32>
    %55 = math.exp %54 : vector<8x1xf32>
    %cst_16 = arith.constant 1.000000e+00 : f32
    %56 = vector.broadcast %cst_16 : f32 to vector<8x1xf32>
    %57 = arith.addf %56, %55 : vector<8x1xf32>
    %58 = arith.divf %56, %57 : vector<8x1xf32>
    %59 = vector.broadcast %58 : vector<8x1xf32> to vector<8x32xf32>
    %60 = arith.mulf %59, %8 : vector<8x32xf32>
    %61 = arith.addf %47, %60 : vector<8x32xf32>
    %62 = arith.addf %48, %8 : vector<8x32xf32>
    %63 = arith.mulf %10, %0 : vector<8x32xf32>
    %cst_17 = arith.constant dense<0.000000e+00> : vector<8xf32>
    %64 = vector.multi_reduction <add>, %63, %cst_17 [1] : vector<8x32xf32> to vector<8xf32>
    %65 = vector.shape_cast %64 : vector<8xf32> to vector<8x1xf32>
    %cst_18 = arith.constant 2.000000e-01 : f32
    %66 = vector.broadcast %cst_18 : f32 to vector<8x1xf32>
    %67 = arith.mulf %65, %66 : vector<8x1xf32>
    %68 = arith.negf %67 : vector<8x1xf32>
    %69 = math.exp %68 : vector<8x1xf32>
    %cst_19 = arith.constant 1.000000e+00 : f32
    %70 = vector.broadcast %cst_19 : f32 to vector<8x1xf32>
    %71 = arith.addf %70, %69 : vector<8x1xf32>
    %72 = arith.divf %70, %71 : vector<8x1xf32>
    %73 = vector.broadcast %72 : vector<8x1xf32> to vector<8x32xf32>
    %74 = arith.mulf %73, %10 : vector<8x32xf32>
    %75 = arith.addf %61, %74 : vector<8x32xf32>
    %76 = arith.addf %62, %10 : vector<8x32xf32>
    %77 = arith.mulf %12, %0 : vector<8x32xf32>
    %cst_20 = arith.constant dense<0.000000e+00> : vector<8xf32>
    %78 = vector.multi_reduction <add>, %77, %cst_20 [1] : vector<8x32xf32> to vector<8xf32>
    %79 = vector.shape_cast %78 : vector<8xf32> to vector<8x1xf32>
    %cst_21 = arith.constant 2.000000e-01 : f32
    %80 = vector.broadcast %cst_21 : f32 to vector<8x1xf32>
    %81 = arith.mulf %79, %80 : vector<8x1xf32>
    %82 = arith.negf %81 : vector<8x1xf32>
    %83 = math.exp %82 : vector<8x1xf32>
    %cst_22 = arith.constant 1.000000e+00 : f32
    %84 = vector.broadcast %cst_22 : f32 to vector<8x1xf32>
    %85 = arith.addf %84, %83 : vector<8x1xf32>
    %86 = arith.divf %84, %85 : vector<8x1xf32>
    %87 = vector.broadcast %86 : vector<8x1xf32> to vector<8x32xf32>
    %88 = arith.mulf %87, %12 : vector<8x32xf32>
    %89 = arith.addf %75, %88 : vector<8x32xf32>
    %90 = arith.addf %76, %12 : vector<8x32xf32>
    %91 = arith.mulf %14, %0 : vector<8x32xf32>
    %cst_23 = arith.constant dense<0.000000e+00> : vector<8xf32>
    %92 = vector.multi_reduction <add>, %91, %cst_23 [1] : vector<8x32xf32> to vector<8xf32>
    %93 = vector.shape_cast %92 : vector<8xf32> to vector<8x1xf32>
    %cst_24 = arith.constant 2.000000e-01 : f32
    %94 = vector.broadcast %cst_24 : f32 to vector<8x1xf32>
    %95 = arith.mulf %93, %94 : vector<8x1xf32>
    %96 = arith.negf %95 : vector<8x1xf32>
    %97 = math.exp %96 : vector<8x1xf32>
    %cst_25 = arith.constant 1.000000e+00 : f32
    %98 = vector.broadcast %cst_25 : f32 to vector<8x1xf32>
    %99 = arith.addf %98, %97 : vector<8x1xf32>
    %100 = arith.divf %98, %99 : vector<8x1xf32>
    %101 = vector.broadcast %100 : vector<8x1xf32> to vector<8x32xf32>
    %102 = arith.mulf %101, %14 : vector<8x32xf32>
    %103 = arith.addf %89, %102 : vector<8x32xf32>
    %104 = arith.addf %90, %14 : vector<8x32xf32>
    %105 = arith.mulf %16, %0 : vector<8x32xf32>
    %cst_26 = arith.constant dense<0.000000e+00> : vector<8xf32>
    %106 = vector.multi_reduction <add>, %105, %cst_26 [1] : vector<8x32xf32> to vector<8xf32>
    %107 = vector.shape_cast %106 : vector<8xf32> to vector<8x1xf32>
    %cst_27 = arith.constant 2.000000e-01 : f32
    %108 = vector.broadcast %cst_27 : f32 to vector<8x1xf32>
    %109 = arith.mulf %107, %108 : vector<8x1xf32>
    %110 = arith.negf %109 : vector<8x1xf32>
    %111 = math.exp %110 : vector<8x1xf32>
    %cst_28 = arith.constant 1.000000e+00 : f32
    %112 = vector.broadcast %cst_28 : f32 to vector<8x1xf32>
    %113 = arith.addf %112, %111 : vector<8x1xf32>
    %114 = arith.divf %112, %113 : vector<8x1xf32>
    %115 = vector.broadcast %114 : vector<8x1xf32> to vector<8x32xf32>
    %116 = arith.mulf %115, %16 : vector<8x32xf32>
    %117 = arith.addf %103, %116 : vector<8x32xf32>
    %118 = arith.addf %104, %16 : vector<8x32xf32>
    %119 = arith.mulf %18, %0 : vector<8x32xf32>
    %cst_29 = arith.constant dense<0.000000e+00> : vector<8xf32>
    %120 = vector.multi_reduction <add>, %119, %cst_29 [1] : vector<8x32xf32> to vector<8xf32>
    %121 = vector.shape_cast %120 : vector<8xf32> to vector<8x1xf32>
    %cst_30 = arith.constant 2.000000e-01 : f32
    %122 = vector.broadcast %cst_30 : f32 to vector<8x1xf32>
    %123 = arith.mulf %121, %122 : vector<8x1xf32>
    %124 = arith.negf %123 : vector<8x1xf32>
    %125 = math.exp %124 : vector<8x1xf32>
    %cst_31 = arith.constant 1.000000e+00 : f32
    %126 = vector.broadcast %cst_31 : f32 to vector<8x1xf32>
    %127 = arith.addf %126, %125 : vector<8x1xf32>
    %128 = arith.divf %126, %127 : vector<8x1xf32>
    %129 = vector.broadcast %128 : vector<8x1xf32> to vector<8x32xf32>
    %130 = arith.mulf %129, %18 : vector<8x32xf32>
    %131 = arith.addf %117, %130 : vector<8x32xf32>
    %132 = arith.addf %118, %18 : vector<8x32xf32>
    %133 = vector.shape_cast %4 : vector<8x32xf32> to vector<1x8x32xf32>
    %134 = vector.broadcast %133 : vector<1x8x32xf32> to vector<8x8x32xf32>
    %135 = arith.mulf %2, %134 : vector<8x8x32xf32>
    %cst_32 = arith.constant dense<0.000000e+00> : vector<8x8xf32>
    %136 = vector.multi_reduction <add>, %135, %cst_32 [2] : vector<8x8x32xf32> to vector<8x8xf32>
    %cst_33 = arith.constant 1.500000e-01 : f32
    %137 = vector.broadcast %cst_33 : f32 to vector<8x8xf32>
    %138 = arith.mulf %137, %136 : vector<8x8xf32>
    %139 = vector.shape_cast %6 : vector<8x32xf32> to vector<1x8x32xf32>
    %140 = vector.broadcast %139 : vector<1x8x32xf32> to vector<8x8x32xf32>
    %141 = arith.mulf %2, %140 : vector<8x8x32xf32>
    %cst_34 = arith.constant dense<0.000000e+00> : vector<8x8xf32>
    %142 = vector.multi_reduction <add>, %141, %cst_34 [2] : vector<8x8x32xf32> to vector<8x8xf32>
    %cst_35 = arith.constant 1.500000e-01 : f32
    %143 = vector.broadcast %cst_35 : f32 to vector<8x8xf32>
    %144 = arith.mulf %143, %142 : vector<8x8xf32>
    %145 = vector.shape_cast %8 : vector<8x32xf32> to vector<1x8x32xf32>
    %146 = vector.broadcast %145 : vector<1x8x32xf32> to vector<8x8x32xf32>
    %147 = arith.mulf %2, %146 : vector<8x8x32xf32>
    %cst_36 = arith.constant dense<0.000000e+00> : vector<8x8xf32>
    %148 = vector.multi_reduction <add>, %147, %cst_36 [2] : vector<8x8x32xf32> to vector<8x8xf32>
    %cst_37 = arith.constant 1.500000e-01 : f32
    %149 = vector.broadcast %cst_37 : f32 to vector<8x8xf32>
    %150 = arith.mulf %149, %148 : vector<8x8xf32>
    %151 = vector.shape_cast %10 : vector<8x32xf32> to vector<1x8x32xf32>
    %152 = vector.broadcast %151 : vector<1x8x32xf32> to vector<8x8x32xf32>
    %153 = arith.mulf %2, %152 : vector<8x8x32xf32>
    %cst_38 = arith.constant dense<0.000000e+00> : vector<8x8xf32>
    %154 = vector.multi_reduction <add>, %153, %cst_38 [2] : vector<8x8x32xf32> to vector<8x8xf32>
    %cst_39 = arith.constant 1.500000e-01 : f32
    %155 = vector.broadcast %cst_39 : f32 to vector<8x8xf32>
    %156 = arith.mulf %155, %154 : vector<8x8xf32>
    %157 = vector.shape_cast %12 : vector<8x32xf32> to vector<1x8x32xf32>
    %158 = vector.broadcast %157 : vector<1x8x32xf32> to vector<8x8x32xf32>
    %159 = arith.mulf %2, %158 : vector<8x8x32xf32>
    %cst_40 = arith.constant dense<0.000000e+00> : vector<8x8xf32>
    %160 = vector.multi_reduction <add>, %159, %cst_40 [2] : vector<8x8x32xf32> to vector<8x8xf32>
    %cst_41 = arith.constant 1.500000e-01 : f32
    %161 = vector.broadcast %cst_41 : f32 to vector<8x8xf32>
    %162 = arith.mulf %161, %160 : vector<8x8xf32>
    %163 = vector.shape_cast %14 : vector<8x32xf32> to vector<1x8x32xf32>
    %164 = vector.broadcast %163 : vector<1x8x32xf32> to vector<8x8x32xf32>
    %165 = arith.mulf %2, %164 : vector<8x8x32xf32>
    %cst_42 = arith.constant dense<0.000000e+00> : vector<8x8xf32>
    %166 = vector.multi_reduction <add>, %165, %cst_42 [2] : vector<8x8x32xf32> to vector<8x8xf32>
    %cst_43 = arith.constant 1.500000e-01 : f32
    %167 = vector.broadcast %cst_43 : f32 to vector<8x8xf32>
    %168 = arith.mulf %167, %166 : vector<8x8xf32>
    %169 = vector.shape_cast %16 : vector<8x32xf32> to vector<1x8x32xf32>
    %170 = vector.broadcast %169 : vector<1x8x32xf32> to vector<8x8x32xf32>
    %171 = arith.mulf %2, %170 : vector<8x8x32xf32>
    %cst_44 = arith.constant dense<0.000000e+00> : vector<8x8xf32>
    %172 = vector.multi_reduction <add>, %171, %cst_44 [2] : vector<8x8x32xf32> to vector<8x8xf32>
    %cst_45 = arith.constant 1.500000e-01 : f32
    %173 = vector.broadcast %cst_45 : f32 to vector<8x8xf32>
    %174 = arith.mulf %173, %172 : vector<8x8xf32>
    %175 = vector.shape_cast %18 : vector<8x32xf32> to vector<1x8x32xf32>
    %176 = vector.broadcast %175 : vector<1x8x32xf32> to vector<8x8x32xf32>
    %177 = arith.mulf %2, %176 : vector<8x8x32xf32>
    %cst_46 = arith.constant dense<0.000000e+00> : vector<8x8xf32>
    %178 = vector.multi_reduction <add>, %177, %cst_46 [2] : vector<8x8x32xf32> to vector<8x8xf32>
    %cst_47 = arith.constant 1.500000e-01 : f32
    %179 = vector.broadcast %cst_47 : f32 to vector<8x8xf32>
    %180 = arith.mulf %179, %178 : vector<8x8xf32>
    %181 = arith.maximumf %138, %144 : vector<8x8xf32>
    %182 = arith.maximumf %181, %150 : vector<8x8xf32>
    %183 = arith.maximumf %182, %156 : vector<8x8xf32>
    %184 = arith.maximumf %183, %162 : vector<8x8xf32>
    %185 = arith.maximumf %184, %168 : vector<8x8xf32>
    %186 = arith.maximumf %185, %174 : vector<8x8xf32>
    %187 = arith.maximumf %186, %180 : vector<8x8xf32>
    %188 = arith.subf %138, %187 : vector<8x8xf32>
    %189 = math.exp %188 : vector<8x8xf32>
    %190 = arith.subf %144, %187 : vector<8x8xf32>
    %191 = math.exp %190 : vector<8x8xf32>
    %192 = arith.subf %150, %187 : vector<8x8xf32>
    %193 = math.exp %192 : vector<8x8xf32>
    %194 = arith.subf %156, %187 : vector<8x8xf32>
    %195 = math.exp %194 : vector<8x8xf32>
    %196 = arith.subf %162, %187 : vector<8x8xf32>
    %197 = math.exp %196 : vector<8x8xf32>
    %198 = arith.subf %168, %187 : vector<8x8xf32>
    %199 = math.exp %198 : vector<8x8xf32>
    %200 = arith.subf %174, %187 : vector<8x8xf32>
    %201 = math.exp %200 : vector<8x8xf32>
    %202 = arith.subf %180, %187 : vector<8x8xf32>
    %203 = math.exp %202 : vector<8x8xf32>
    %204 = arith.addf %189, %191 : vector<8x8xf32>
    %205 = arith.addf %204, %193 : vector<8x8xf32>
    %206 = arith.addf %205, %195 : vector<8x8xf32>
    %207 = arith.addf %206, %197 : vector<8x8xf32>
    %208 = arith.addf %207, %199 : vector<8x8xf32>
    %209 = arith.addf %208, %201 : vector<8x8xf32>
    %210 = arith.addf %209, %203 : vector<8x8xf32>
    %211 = tpu.reciprocal %210 {approx = true} : vector<8x8xf32> -> vector<8x8xf32>
    %212 = arith.mulf %189, %211 : vector<8x8xf32>
    %213 = vector.shape_cast %212 : vector<8x8xf32> to vector<8x8x1xf32>
    %214 = vector.shape_cast %4 : vector<8x32xf32> to vector<1x8x32xf32>
    %215 = vector.broadcast %213 : vector<8x8x1xf32> to vector<8x8x32xf32>
    %216 = vector.broadcast %214 : vector<1x8x32xf32> to vector<8x8x32xf32>
    %217 = arith.mulf %215, %216 : vector<8x8x32xf32>
    %218 = arith.mulf %191, %211 : vector<8x8xf32>
    %219 = vector.shape_cast %218 : vector<8x8xf32> to vector<8x8x1xf32>
    %220 = vector.shape_cast %6 : vector<8x32xf32> to vector<1x8x32xf32>
    %221 = vector.broadcast %219 : vector<8x8x1xf32> to vector<8x8x32xf32>
    %222 = vector.broadcast %220 : vector<1x8x32xf32> to vector<8x8x32xf32>
    %223 = arith.mulf %221, %222 : vector<8x8x32xf32>
    %224 = arith.addf %217, %223 : vector<8x8x32xf32>
    %225 = arith.mulf %193, %211 : vector<8x8xf32>
    %226 = vector.shape_cast %225 : vector<8x8xf32> to vector<8x8x1xf32>
    %227 = vector.shape_cast %8 : vector<8x32xf32> to vector<1x8x32xf32>
    %228 = vector.broadcast %226 : vector<8x8x1xf32> to vector<8x8x32xf32>
    %229 = vector.broadcast %227 : vector<1x8x32xf32> to vector<8x8x32xf32>
    %230 = arith.mulf %228, %229 : vector<8x8x32xf32>
    %231 = arith.addf %224, %230 : vector<8x8x32xf32>
    %232 = arith.mulf %195, %211 : vector<8x8xf32>
    %233 = vector.shape_cast %232 : vector<8x8xf32> to vector<8x8x1xf32>
    %234 = vector.shape_cast %10 : vector<8x32xf32> to vector<1x8x32xf32>
    %235 = vector.broadcast %233 : vector<8x8x1xf32> to vector<8x8x32xf32>
    %236 = vector.broadcast %234 : vector<1x8x32xf32> to vector<8x8x32xf32>
    %237 = arith.mulf %235, %236 : vector<8x8x32xf32>
    %238 = arith.addf %231, %237 : vector<8x8x32xf32>
    %239 = arith.mulf %197, %211 : vector<8x8xf32>
    %240 = vector.shape_cast %239 : vector<8x8xf32> to vector<8x8x1xf32>
    %241 = vector.shape_cast %12 : vector<8x32xf32> to vector<1x8x32xf32>
    %242 = vector.broadcast %240 : vector<8x8x1xf32> to vector<8x8x32xf32>
    %243 = vector.broadcast %241 : vector<1x8x32xf32> to vector<8x8x32xf32>
    %244 = arith.mulf %242, %243 : vector<8x8x32xf32>
    %245 = arith.addf %238, %244 : vector<8x8x32xf32>
    %246 = arith.mulf %199, %211 : vector<8x8xf32>
    %247 = vector.shape_cast %246 : vector<8x8xf32> to vector<8x8x1xf32>
    %248 = vector.shape_cast %14 : vector<8x32xf32> to vector<1x8x32xf32>
    %249 = vector.broadcast %247 : vector<8x8x1xf32> to vector<8x8x32xf32>
    %250 = vector.broadcast %248 : vector<1x8x32xf32> to vector<8x8x32xf32>
    %251 = arith.mulf %249, %250 : vector<8x8x32xf32>
    %252 = arith.addf %245, %251 : vector<8x8x32xf32>
    %253 = arith.mulf %201, %211 : vector<8x8xf32>
    %254 = vector.shape_cast %253 : vector<8x8xf32> to vector<8x8x1xf32>
    %255 = vector.shape_cast %16 : vector<8x32xf32> to vector<1x8x32xf32>
    %256 = vector.broadcast %254 : vector<8x8x1xf32> to vector<8x8x32xf32>
    %257 = vector.broadcast %255 : vector<1x8x32xf32> to vector<8x8x32xf32>
    %258 = arith.mulf %256, %257 : vector<8x8x32xf32>
    %259 = arith.addf %252, %258 : vector<8x8x32xf32>
    %260 = arith.mulf %203, %211 : vector<8x8xf32>
    %261 = vector.shape_cast %260 : vector<8x8xf32> to vector<8x8x1xf32>
    %262 = vector.shape_cast %18 : vector<8x32xf32> to vector<1x8x32xf32>
    %263 = vector.broadcast %261 : vector<8x8x1xf32> to vector<8x8x32xf32>
    %264 = vector.broadcast %262 : vector<1x8x32xf32> to vector<8x8x32xf32>
    %265 = arith.mulf %263, %264 : vector<8x8x32xf32>
    %266 = arith.addf %259, %265 : vector<8x8x32xf32>
    %267 = tpu.concatenate %131, %132 in 1 : vector<8x32xf32>, vector<8x32xf32> -> vector<8x64xf32>
    %268 = arith.truncf %267 : vector<8x64xf32> to vector<8x64xbf16>
    %c0_48 = arith.constant 0 : index
    %c0_49 = arith.constant 0 : index
    %269 = vector.load %arg6[%c0_48, %c0_49] : memref<64x64xbf16, #tpu.memory_space<vmem>>, vector<64x64xbf16>
    %cst_50 = arith.constant dense<0.000000e+00> : vector<8x64xf32>
    %270 = tpu.matmul %268, %269, %cst_50 {dimension_numbers = #tpu.dot_dimension_numbers<[1], [0], [0], [1], [0, 0, 1, 1], [], []>} : vector<8x64xbf16>, vector<64x64xbf16>, vector<8x64xf32> -> vector<8x64xf32>
    %c0_51 = arith.constant 0 : index
    %c0_52 = arith.constant 0 : index
    %271 = vector.load %arg7[%c0_51, %c0_52] : memref<1x64xf32, #tpu.memory_space<vmem>>, vector<1x64xf32>
    %272 = vector.broadcast %271 : vector<1x64xf32> to vector<8x64xf32>
    %273 = arith.addf %270, %272 : vector<8x64xf32>
    %cst_53 = arith.constant 0.000000e+00 : f32
    %274 = vector.broadcast %cst_53 : f32 to vector<8x64xf32>
    %275 = arith.maximumf %273, %274 : vector<8x64xf32>
    %276 = vector.extract_strided_slice %275 {offsets = [0, 0], sizes = [8, 32], strides = [1, 1]} : vector<8x64xf32> to vector<8x32xf32>
    %277 = vector.extract_strided_slice %275 {offsets = [0, 32], sizes = [8, 32], strides = [1, 1]} : vector<8x64xf32> to vector<8x32xf32>
    %c0_54 = arith.constant 0 : index
    %c0_55 = arith.constant 0 : index
    %278 = vector.load %arg8[%c0_54, %c0_55] : memref<1x32xf32, #tpu.memory_space<vmem>>, vector<1x32xf32>
    %279 = vector.broadcast %278 : vector<1x32xf32> to vector<8x32xf32>
    %280 = arith.mulf %276, %279 : vector<8x32xf32>
    %cst_56 = arith.constant dense<0.000000e+00> : vector<8xf32>
    %281 = vector.multi_reduction <add>, %280, %cst_56 [1] : vector<8x32xf32> to vector<8xf32>
    %282 = vector.shape_cast %281 : vector<8xf32> to vector<8x1xf32>
    %c0_57 = arith.constant 0 : index
    %c0_58 = arith.constant 0 : index
    %283 = vector.load %arg9[%c0_57, %c0_58] : memref<1x1xf32, #tpu.memory_space<vmem>>, vector<1x1xf32>
    %284 = vector.broadcast %283 : vector<1x1xf32> to vector<8x1xf32>
    %285 = arith.addf %282, %284 : vector<8x1xf32>
    %c0_59 = arith.constant 0 : index
    %c0_60 = arith.constant 0 : index
    %286 = vector.load %arg10[%c0_59, %c0_60] : memref<1x32xf32, #tpu.memory_space<vmem>>, vector<1x32xf32>
    %287 = vector.broadcast %286 : vector<1x32xf32> to vector<8x32xf32>
    %288 = arith.mulf %277, %287 : vector<8x32xf32>
    %cst_61 = arith.constant dense<0.000000e+00> : vector<8xf32>
    %289 = vector.multi_reduction <add>, %288, %cst_61 [1] : vector<8x32xf32> to vector<8xf32>
    %290 = vector.shape_cast %289 : vector<8xf32> to vector<8x1xf32>
    %c0_62 = arith.constant 0 : index
    %c0_63 = arith.constant 0 : index
    %291 = vector.load %arg11[%c0_62, %c0_63] : memref<1x1xf32, #tpu.memory_space<vmem>>, vector<1x1xf32>
    %292 = vector.broadcast %291 : vector<1x1xf32> to vector<8x1xf32>
    %293 = arith.addf %290, %292 : vector<8x1xf32>
    %294 = math.absf %293 : vector<8x1xf32>
    %295 = arith.negf %294 : vector<8x1xf32>
    %296 = math.exp %295 : vector<8x1xf32>
    %cst_64 = arith.constant 1.000000e+00 : f32
    %297 = vector.broadcast %cst_64 : f32 to vector<8x1xf32>
    %298 = arith.addf %297, %296 : vector<8x1xf32>
    %299 = arith.divf %297, %298 : vector<8x1xf32>
    %cst_65 = arith.constant 5.000000e-01 : f32
    %300 = vector.broadcast %cst_65 : f32 to vector<8x1xf32>
    %301 = arith.subf %299, %300 : vector<8x1xf32>
    %cst_66 = arith.constant 8.000000e+00 : f32
    %302 = vector.broadcast %cst_66 : f32 to vector<8x1xf32>
    %303 = arith.mulf %302, %301 : vector<8x1xf32>
    %304 = vector.shape_cast %266 : vector<8x8x32xf32> to vector<64x32xf32>
    %305 = arith.truncf %304 : vector<64x32xf32> to vector<64x32xbf16>
    %c0_67 = arith.constant 0 : index
    %c0_68 = arith.constant 0 : index
    %306 = vector.load %arg12[%c0_67, %c0_68] : memref<32x128xbf16, #tpu.memory_space<vmem>>, vector<32x128xbf16>
    %cst_69 = arith.constant dense<0.000000e+00> : vector<64x128xf32>
    %307 = tpu.matmul %305, %306, %cst_69 {dimension_numbers = #tpu.dot_dimension_numbers<[1], [0], [0], [1], [0, 0, 1, 1], [], []>} : vector<64x32xbf16>, vector<32x128xbf16>, vector<64x128xf32> -> vector<64x128xf32>
    %c0_70 = arith.constant 0 : index
    %c0_71 = arith.constant 0 : index
    %308 = vector.load %arg14[%c0_70, %c0_71] : memref<1x128xf32, #tpu.memory_space<vmem>>, vector<1x128xf32>
    %309 = vector.broadcast %308 : vector<1x128xf32> to vector<64x128xf32>
    %310 = arith.addf %307, %309 : vector<64x128xf32>
    %311 = vector.shape_cast %310 : vector<64x128xf32> to vector<8x8x128xf32>
    %c0_72 = arith.constant 0 : index
    %c0_73 = arith.constant 0 : index
    %312 = vector.load %arg13[%c0_72, %c0_73] : memref<32x128xbf16, #tpu.memory_space<vmem>>, vector<32x128xbf16>
    %c0_74 = arith.constant 0 : index
    %c0_75 = arith.constant 0 : index
    %313 = vector.load %arg2[%c0_74, %c0_75] : memref<8x8xf32, #tpu.memory_space<vmem>>, vector<8x8xf32>
    %cst_76 = arith.constant 0.000000e+00 : f32
    %314 = vector.broadcast %cst_76 : f32 to vector<8x32xf32>
    %c0_77 = arith.constant 0 : index
    %c0_78 = arith.constant 0 : index
    %315 = vector.load %arg18[%c0_77, %c0_78] : memref<8x32xf32, #tpu.memory_space<vmem>>, vector<8x32xf32>
    tpu.vector_store %arg18[%c0_77, %c0_78], %314 {strides = array<i32>} : memref<8x32xf32, #tpu.memory_space<vmem>>, vector<8x32xf32>,
    %cst_79 = arith.constant 0.000000e+00 : f32
    %316 = vector.broadcast %cst_79 : f32 to vector<8x32xf32>
    %c0_80 = arith.constant 0 : index
    %c0_81 = arith.constant 0 : index
    %317 = vector.load %arg19[%c0_80, %c0_81] : memref<8x32xf32, #tpu.memory_space<vmem>>, vector<8x32xf32>
    tpu.vector_store %arg19[%c0_80, %c0_81], %316 {strides = array<i32>} : memref<8x32xf32, #tpu.memory_space<vmem>>, vector<8x32xf32>,
    %318 = arith.index_cast %arg0 : i32 to index
    %319 = memref.load %arg1[%318] : memref<1xi32, #tpu.memory_space<smem>>
    %c0_i32 = arith.constant 0 : i32
    %320 = arith.cmpi sgt, %319, %c0_i32 : i32
    %321 = arith.extui %320 : i1 to i32
    %c0_i32_82 = arith.constant 0 : i32
    %322 = arith.cmpi ne, %321, %c0_i32_82 : i32
    scf.if %322 {
      %c0_103 = arith.constant 0 : index
      %c0_104 = arith.constant 0 : index
      %370 = vector.load %arg18[%c0_103, %c0_104] : memref<8x32xf32, #tpu.memory_space<vmem>>, vector<8x32xf32>
      %c0_105 = arith.constant 0 : index
      %c0_106 = arith.constant 0 : index
      %371 = vector.load %arg19[%c0_105, %c0_106] : memref<8x32xf32, #tpu.memory_space<vmem>>, vector<8x32xf32>
      %372 = vector.extract_strided_slice %311 {offsets = [0, 0, 0], sizes = [1, 8, 128], strides = [1, 1, 1]} : vector<8x8x128xf32> to vector<1x8x128xf32>
      %373 = vector.shape_cast %372 : vector<1x8x128xf32> to vector<8x128xf32>
      %374 = arith.truncf %370 : vector<8x32xf32> to vector<8x32xbf16>
      %cst_107 = arith.constant dense<0.000000e+00> : vector<8x128xf32>
      %375 = tpu.matmul %374, %312, %cst_107 {dimension_numbers = #tpu.dot_dimension_numbers<[1], [0], [0], [1], [0, 0, 1, 1], [], []>} : vector<8x32xbf16>, vector<32x128xbf16>, vector<8x128xf32> -> vector<8x128xf32>
      %376 = arith.addf %373, %375 : vector<8x128xf32>
      %377 = vector.extract_strided_slice %376 {offsets = [0, 0], sizes = [8, 32], strides = [1, 1]} : vector<8x128xf32> to vector<8x32xf32>
      %378 = arith.negf %377 : vector<8x32xf32>
      %379 = math.exp %378 : vector<8x32xf32>
      %cst_108 = arith.constant 1.000000e+00 : f32
      %380 = vector.broadcast %cst_108 : f32 to vector<8x32xf32>
      %381 = arith.addf %380, %379 : vector<8x32xf32>
      %382 = arith.divf %380, %381 : vector<8x32xf32>
      %383 = vector.extract_strided_slice %376 {offsets = [0, 32], sizes = [8, 32], strides = [1, 1]} : vector<8x128xf32> to vector<8x32xf32>
      %384 = arith.negf %383 : vector<8x32xf32>
      %385 = math.exp %384 : vector<8x32xf32>
      %cst_109 = arith.constant 1.000000e+00 : f32
      %386 = vector.broadcast %cst_109 : f32 to vector<8x32xf32>
      %387 = arith.addf %386, %385 : vector<8x32xf32>
      %388 = arith.divf %386, %387 : vector<8x32xf32>
      %389 = vector.extract_strided_slice %376 {offsets = [0, 64], sizes = [8, 32], strides = [1, 1]} : vector<8x128xf32> to vector<8x32xf32>
      %390 = math.tanh %389 : vector<8x32xf32>
      %391 = vector.extract_strided_slice %376 {offsets = [0, 96], sizes = [8, 32], strides = [1, 1]} : vector<8x128xf32> to vector<8x32xf32>
      %392 = arith.negf %391 : vector<8x32xf32>
      %393 = math.exp %392 : vector<8x32xf32>
      %cst_110 = arith.constant 1.000000e+00 : f32
      %394 = vector.broadcast %cst_110 : f32 to vector<8x32xf32>
      %395 = arith.addf %394, %393 : vector<8x32xf32>
      %396 = arith.divf %394, %395 : vector<8x32xf32>
      %397 = arith.mulf %388, %371 : vector<8x32xf32>
      %398 = arith.mulf %382, %390 : vector<8x32xf32>
      %399 = arith.addf %397, %398 : vector<8x32xf32>
      %400 = math.tanh %399 : vector<8x32xf32>
      %401 = arith.mulf %396, %400 : vector<8x32xf32>
      %402 = vector.extract_strided_slice %313 {offsets = [0, 0], sizes = [8, 1], strides = [1, 1]} : vector<8x8xf32> to vector<8x1xf32>
      %cst_111 = arith.constant 1.000000e+00 : f32
      %403 = vector.broadcast %cst_111 : f32 to vector<8x1xf32>
      %404 = arith.subf %403, %402 : vector<8x1xf32>
      %405 = vector.broadcast %402 : vector<8x1xf32> to vector<8x32xf32>
      %406 = arith.mulf %405, %401 : vector<8x32xf32>
      %407 = vector.broadcast %404 : vector<8x1xf32> to vector<8x32xf32>
      %408 = arith.mulf %407, %370 : vector<8x32xf32>
      %409 = arith.addf %406, %408 : vector<8x32xf32>
      %c0_112 = arith.constant 0 : index
      %c0_113 = arith.constant 0 : index
      %410 = vector.load %arg18[%c0_112, %c0_113] : memref<8x32xf32, #tpu.memory_space<vmem>>, vector<8x32xf32>
      tpu.vector_store %arg18[%c0_112, %c0_113], %409 {strides = array<i32>} : memref<8x32xf32, #tpu.memory_space<vmem>>, vector<8x32xf32>,
      %411 = vector.broadcast %402 : vector<8x1xf32> to vector<8x32xf32>
      %412 = arith.mulf %411, %399 : vector<8x32xf32>
      %413 = vector.broadcast %404 : vector<8x1xf32> to vector<8x32xf32>
      %414 = arith.mulf %413, %371 : vector<8x32xf32>
      %415 = arith.addf %412, %414 : vector<8x32xf32>
      %c0_114 = arith.constant 0 : index
      %c0_115 = arith.constant 0 : index
      %416 = vector.load %arg19[%c0_114, %c0_115] : memref<8x32xf32, #tpu.memory_space<vmem>>, vector<8x32xf32>
      tpu.vector_store %arg19[%c0_114, %c0_115], %415 {strides = array<i32>} : memref<8x32xf32, #tpu.memory_space<vmem>>, vector<8x32xf32>,
    } else {
    }
    %c1_i32 = arith.constant 1 : i32
    %323 = arith.cmpi sgt, %319, %c1_i32 : i32
    %324 = arith.extui %323 : i1 to i32
    %c0_i32_83 = arith.constant 0 : i32
    %325 = arith.cmpi ne, %324, %c0_i32_83 : i32
    scf.if %325 {
      %c0_103 = arith.constant 0 : index
      %c0_104 = arith.constant 0 : index
      %370 = vector.load %arg18[%c0_103, %c0_104] : memref<8x32xf32, #tpu.memory_space<vmem>>, vector<8x32xf32>
      %c0_105 = arith.constant 0 : index
      %c0_106 = arith.constant 0 : index
      %371 = vector.load %arg19[%c0_105, %c0_106] : memref<8x32xf32, #tpu.memory_space<vmem>>, vector<8x32xf32>
      %372 = vector.extract_strided_slice %311 {offsets = [1, 0, 0], sizes = [1, 8, 128], strides = [1, 1, 1]} : vector<8x8x128xf32> to vector<1x8x128xf32>
      %373 = vector.shape_cast %372 : vector<1x8x128xf32> to vector<8x128xf32>
      %374 = arith.truncf %370 : vector<8x32xf32> to vector<8x32xbf16>
      %cst_107 = arith.constant dense<0.000000e+00> : vector<8x128xf32>
      %375 = tpu.matmul %374, %312, %cst_107 {dimension_numbers = #tpu.dot_dimension_numbers<[1], [0], [0], [1], [0, 0, 1, 1], [], []>} : vector<8x32xbf16>, vector<32x128xbf16>, vector<8x128xf32> -> vector<8x128xf32>
      %376 = arith.addf %373, %375 : vector<8x128xf32>
      %377 = vector.extract_strided_slice %376 {offsets = [0, 0], sizes = [8, 32], strides = [1, 1]} : vector<8x128xf32> to vector<8x32xf32>
      %378 = arith.negf %377 : vector<8x32xf32>
      %379 = math.exp %378 : vector<8x32xf32>
      %cst_108 = arith.constant 1.000000e+00 : f32
      %380 = vector.broadcast %cst_108 : f32 to vector<8x32xf32>
      %381 = arith.addf %380, %379 : vector<8x32xf32>
      %382 = arith.divf %380, %381 : vector<8x32xf32>
      %383 = vector.extract_strided_slice %376 {offsets = [0, 32], sizes = [8, 32], strides = [1, 1]} : vector<8x128xf32> to vector<8x32xf32>
      %384 = arith.negf %383 : vector<8x32xf32>
      %385 = math.exp %384 : vector<8x32xf32>
      %cst_109 = arith.constant 1.000000e+00 : f32
      %386 = vector.broadcast %cst_109 : f32 to vector<8x32xf32>
      %387 = arith.addf %386, %385 : vector<8x32xf32>
      %388 = arith.divf %386, %387 : vector<8x32xf32>
      %389 = vector.extract_strided_slice %376 {offsets = [0, 64], sizes = [8, 32], strides = [1, 1]} : vector<8x128xf32> to vector<8x32xf32>
      %390 = math.tanh %389 : vector<8x32xf32>
      %391 = vector.extract_strided_slice %376 {offsets = [0, 96], sizes = [8, 32], strides = [1, 1]} : vector<8x128xf32> to vector<8x32xf32>
      %392 = arith.negf %391 : vector<8x32xf32>
      %393 = math.exp %392 : vector<8x32xf32>
      %cst_110 = arith.constant 1.000000e+00 : f32
      %394 = vector.broadcast %cst_110 : f32 to vector<8x32xf32>
      %395 = arith.addf %394, %393 : vector<8x32xf32>
      %396 = arith.divf %394, %395 : vector<8x32xf32>
      %397 = arith.mulf %388, %371 : vector<8x32xf32>
      %398 = arith.mulf %382, %390 : vector<8x32xf32>
      %399 = arith.addf %397, %398 : vector<8x32xf32>
      %400 = math.tanh %399 : vector<8x32xf32>
      %401 = arith.mulf %396, %400 : vector<8x32xf32>
      %402 = vector.extract_strided_slice %313 {offsets = [0, 1], sizes = [8, 1], strides = [1, 1]} : vector<8x8xf32> to vector<8x1xf32>
      %cst_111 = arith.constant 1.000000e+00 : f32
      %403 = vector.broadcast %cst_111 : f32 to vector<8x1xf32>
      %404 = arith.subf %403, %402 : vector<8x1xf32>
      %405 = vector.broadcast %402 : vector<8x1xf32> to vector<8x32xf32>
      %406 = arith.mulf %405, %401 : vector<8x32xf32>
      %407 = vector.broadcast %404 : vector<8x1xf32> to vector<8x32xf32>
      %408 = arith.mulf %407, %370 : vector<8x32xf32>
      %409 = arith.addf %406, %408 : vector<8x32xf32>
      %c0_112 = arith.constant 0 : index
      %c0_113 = arith.constant 0 : index
      %410 = vector.load %arg18[%c0_112, %c0_113] : memref<8x32xf32, #tpu.memory_space<vmem>>, vector<8x32xf32>
      tpu.vector_store %arg18[%c0_112, %c0_113], %409 {strides = array<i32>} : memref<8x32xf32, #tpu.memory_space<vmem>>, vector<8x32xf32>,
      %411 = vector.broadcast %402 : vector<8x1xf32> to vector<8x32xf32>
      %412 = arith.mulf %411, %399 : vector<8x32xf32>
      %413 = vector.broadcast %404 : vector<8x1xf32> to vector<8x32xf32>
      %414 = arith.mulf %413, %371 : vector<8x32xf32>
      %415 = arith.addf %412, %414 : vector<8x32xf32>
      %c0_114 = arith.constant 0 : index
      %c0_115 = arith.constant 0 : index
      %416 = vector.load %arg19[%c0_114, %c0_115] : memref<8x32xf32, #tpu.memory_space<vmem>>, vector<8x32xf32>
      tpu.vector_store %arg19[%c0_114, %c0_115], %415 {strides = array<i32>} : memref<8x32xf32, #tpu.memory_space<vmem>>, vector<8x32xf32>,
    } else {
    }
    %c2_i32 = arith.constant 2 : i32
    %326 = arith.cmpi sgt, %319, %c2_i32 : i32
    %327 = arith.extui %326 : i1 to i32
    %c0_i32_84 = arith.constant 0 : i32
    %328 = arith.cmpi ne, %327, %c0_i32_84 : i32
    scf.if %328 {
      %c0_103 = arith.constant 0 : index
      %c0_104 = arith.constant 0 : index
      %370 = vector.load %arg18[%c0_103, %c0_104] : memref<8x32xf32, #tpu.memory_space<vmem>>, vector<8x32xf32>
      %c0_105 = arith.constant 0 : index
      %c0_106 = arith.constant 0 : index
      %371 = vector.load %arg19[%c0_105, %c0_106] : memref<8x32xf32, #tpu.memory_space<vmem>>, vector<8x32xf32>
      %372 = vector.extract_strided_slice %311 {offsets = [2, 0, 0], sizes = [1, 8, 128], strides = [1, 1, 1]} : vector<8x8x128xf32> to vector<1x8x128xf32>
      %373 = vector.shape_cast %372 : vector<1x8x128xf32> to vector<8x128xf32>
      %374 = arith.truncf %370 : vector<8x32xf32> to vector<8x32xbf16>
      %cst_107 = arith.constant dense<0.000000e+00> : vector<8x128xf32>
      %375 = tpu.matmul %374, %312, %cst_107 {dimension_numbers = #tpu.dot_dimension_numbers<[1], [0], [0], [1], [0, 0, 1, 1], [], []>} : vector<8x32xbf16>, vector<32x128xbf16>, vector<8x128xf32> -> vector<8x128xf32>
      %376 = arith.addf %373, %375 : vector<8x128xf32>
      %377 = vector.extract_strided_slice %376 {offsets = [0, 0], sizes = [8, 32], strides = [1, 1]} : vector<8x128xf32> to vector<8x32xf32>
      %378 = arith.negf %377 : vector<8x32xf32>
      %379 = math.exp %378 : vector<8x32xf32>
      %cst_108 = arith.constant 1.000000e+00 : f32
      %380 = vector.broadcast %cst_108 : f32 to vector<8x32xf32>
      %381 = arith.addf %380, %379 : vector<8x32xf32>
      %382 = arith.divf %380, %381 : vector<8x32xf32>
      %383 = vector.extract_strided_slice %376 {offsets = [0, 32], sizes = [8, 32], strides = [1, 1]} : vector<8x128xf32> to vector<8x32xf32>
      %384 = arith.negf %383 : vector<8x32xf32>
      %385 = math.exp %384 : vector<8x32xf32>
      %cst_109 = arith.constant 1.000000e+00 : f32
      %386 = vector.broadcast %cst_109 : f32 to vector<8x32xf32>
      %387 = arith.addf %386, %385 : vector<8x32xf32>
      %388 = arith.divf %386, %387 : vector<8x32xf32>
      %389 = vector.extract_strided_slice %376 {offsets = [0, 64], sizes = [8, 32], strides = [1, 1]} : vector<8x128xf32> to vector<8x32xf32>
      %390 = math.tanh %389 : vector<8x32xf32>
      %391 = vector.extract_strided_slice %376 {offsets = [0, 96], sizes = [8, 32], strides = [1, 1]} : vector<8x128xf32> to vector<8x32xf32>
      %392 = arith.negf %391 : vector<8x32xf32>
      %393 = math.exp %392 : vector<8x32xf32>
      %cst_110 = arith.constant 1.000000e+00 : f32
      %394 = vector.broadcast %cst_110 : f32 to vector<8x32xf32>
      %395 = arith.addf %394, %393 : vector<8x32xf32>
      %396 = arith.divf %394, %395 : vector<8x32xf32>
      %397 = arith.mulf %388, %371 : vector<8x32xf32>
      %398 = arith.mulf %382, %390 : vector<8x32xf32>
      %399 = arith.addf %397, %398 : vector<8x32xf32>
      %400 = math.tanh %399 : vector<8x32xf32>
      %401 = arith.mulf %396, %400 : vector<8x32xf32>
      %402 = vector.extract_strided_slice %313 {offsets = [0, 2], sizes = [8, 1], strides = [1, 1]} : vector<8x8xf32> to vector<8x1xf32>
      %cst_111 = arith.constant 1.000000e+00 : f32
      %403 = vector.broadcast %cst_111 : f32 to vector<8x1xf32>
      %404 = arith.subf %403, %402 : vector<8x1xf32>
      %405 = vector.broadcast %402 : vector<8x1xf32> to vector<8x32xf32>
      %406 = arith.mulf %405, %401 : vector<8x32xf32>
      %407 = vector.broadcast %404 : vector<8x1xf32> to vector<8x32xf32>
      %408 = arith.mulf %407, %370 : vector<8x32xf32>
      %409 = arith.addf %406, %408 : vector<8x32xf32>
      %c0_112 = arith.constant 0 : index
      %c0_113 = arith.constant 0 : index
      %410 = vector.load %arg18[%c0_112, %c0_113] : memref<8x32xf32, #tpu.memory_space<vmem>>, vector<8x32xf32>
      tpu.vector_store %arg18[%c0_112, %c0_113], %409 {strides = array<i32>} : memref<8x32xf32, #tpu.memory_space<vmem>>, vector<8x32xf32>,
      %411 = vector.broadcast %402 : vector<8x1xf32> to vector<8x32xf32>
      %412 = arith.mulf %411, %399 : vector<8x32xf32>
      %413 = vector.broadcast %404 : vector<8x1xf32> to vector<8x32xf32>
      %414 = arith.mulf %413, %371 : vector<8x32xf32>
      %415 = arith.addf %412, %414 : vector<8x32xf32>
      %c0_114 = arith.constant 0 : index
      %c0_115 = arith.constant 0 : index
      %416 = vector.load %arg19[%c0_114, %c0_115] : memref<8x32xf32, #tpu.memory_space<vmem>>, vector<8x32xf32>
      tpu.vector_store %arg19[%c0_114, %c0_115], %415 {strides = array<i32>} : memref<8x32xf32, #tpu.memory_space<vmem>>, vector<8x32xf32>,
    } else {
    }
    %c3_i32 = arith.constant 3 : i32
    %329 = arith.cmpi sgt, %319, %c3_i32 : i32
    %330 = arith.extui %329 : i1 to i32
    %c0_i32_85 = arith.constant 0 : i32
    %331 = arith.cmpi ne, %330, %c0_i32_85 : i32
    scf.if %331 {
      %c0_103 = arith.constant 0 : index
      %c0_104 = arith.constant 0 : index
      %370 = vector.load %arg18[%c0_103, %c0_104] : memref<8x32xf32, #tpu.memory_space<vmem>>, vector<8x32xf32>
      %c0_105 = arith.constant 0 : index
      %c0_106 = arith.constant 0 : index
      %371 = vector.load %arg19[%c0_105, %c0_106] : memref<8x32xf32, #tpu.memory_space<vmem>>, vector<8x32xf32>
      %372 = vector.extract_strided_slice %311 {offsets = [3, 0, 0], sizes = [1, 8, 128], strides = [1, 1, 1]} : vector<8x8x128xf32> to vector<1x8x128xf32>
      %373 = vector.shape_cast %372 : vector<1x8x128xf32> to vector<8x128xf32>
      %374 = arith.truncf %370 : vector<8x32xf32> to vector<8x32xbf16>
      %cst_107 = arith.constant dense<0.000000e+00> : vector<8x128xf32>
      %375 = tpu.matmul %374, %312, %cst_107 {dimension_numbers = #tpu.dot_dimension_numbers<[1], [0], [0], [1], [0, 0, 1, 1], [], []>} : vector<8x32xbf16>, vector<32x128xbf16>, vector<8x128xf32> -> vector<8x128xf32>
      %376 = arith.addf %373, %375 : vector<8x128xf32>
      %377 = vector.extract_strided_slice %376 {offsets = [0, 0], sizes = [8, 32], strides = [1, 1]} : vector<8x128xf32> to vector<8x32xf32>
      %378 = arith.negf %377 : vector<8x32xf32>
      %379 = math.exp %378 : vector<8x32xf32>
      %cst_108 = arith.constant 1.000000e+00 : f32
      %380 = vector.broadcast %cst_108 : f32 to vector<8x32xf32>
      %381 = arith.addf %380, %379 : vector<8x32xf32>
      %382 = arith.divf %380, %381 : vector<8x32xf32>
      %383 = vector.extract_strided_slice %376 {offsets = [0, 32], sizes = [8, 32], strides = [1, 1]} : vector<8x128xf32> to vector<8x32xf32>
      %384 = arith.negf %383 : vector<8x32xf32>
      %385 = math.exp %384 : vector<8x32xf32>
      %cst_109 = arith.constant 1.000000e+00 : f32
      %386 = vector.broadcast %cst_109 : f32 to vector<8x32xf32>
      %387 = arith.addf %386, %385 : vector<8x32xf32>
      %388 = arith.divf %386, %387 : vector<8x32xf32>
      %389 = vector.extract_strided_slice %376 {offsets = [0, 64], sizes = [8, 32], strides = [1, 1]} : vector<8x128xf32> to vector<8x32xf32>
      %390 = math.tanh %389 : vector<8x32xf32>
      %391 = vector.extract_strided_slice %376 {offsets = [0, 96], sizes = [8, 32], strides = [1, 1]} : vector<8x128xf32> to vector<8x32xf32>
      %392 = arith.negf %391 : vector<8x32xf32>
      %393 = math.exp %392 : vector<8x32xf32>
      %cst_110 = arith.constant 1.000000e+00 : f32
      %394 = vector.broadcast %cst_110 : f32 to vector<8x32xf32>
      %395 = arith.addf %394, %393 : vector<8x32xf32>
      %396 = arith.divf %394, %395 : vector<8x32xf32>
      %397 = arith.mulf %388, %371 : vector<8x32xf32>
      %398 = arith.mulf %382, %390 : vector<8x32xf32>
      %399 = arith.addf %397, %398 : vector<8x32xf32>
      %400 = math.tanh %399 : vector<8x32xf32>
      %401 = arith.mulf %396, %400 : vector<8x32xf32>
      %402 = vector.extract_strided_slice %313 {offsets = [0, 3], sizes = [8, 1], strides = [1, 1]} : vector<8x8xf32> to vector<8x1xf32>
      %cst_111 = arith.constant 1.000000e+00 : f32
      %403 = vector.broadcast %cst_111 : f32 to vector<8x1xf32>
      %404 = arith.subf %403, %402 : vector<8x1xf32>
      %405 = vector.broadcast %402 : vector<8x1xf32> to vector<8x32xf32>
      %406 = arith.mulf %405, %401 : vector<8x32xf32>
      %407 = vector.broadcast %404 : vector<8x1xf32> to vector<8x32xf32>
      %408 = arith.mulf %407, %370 : vector<8x32xf32>
      %409 = arith.addf %406, %408 : vector<8x32xf32>
      %c0_112 = arith.constant 0 : index
      %c0_113 = arith.constant 0 : index
      %410 = vector.load %arg18[%c0_112, %c0_113] : memref<8x32xf32, #tpu.memory_space<vmem>>, vector<8x32xf32>
      tpu.vector_store %arg18[%c0_112, %c0_113], %409 {strides = array<i32>} : memref<8x32xf32, #tpu.memory_space<vmem>>, vector<8x32xf32>,
      %411 = vector.broadcast %402 : vector<8x1xf32> to vector<8x32xf32>
      %412 = arith.mulf %411, %399 : vector<8x32xf32>
      %413 = vector.broadcast %404 : vector<8x1xf32> to vector<8x32xf32>
      %414 = arith.mulf %413, %371 : vector<8x32xf32>
      %415 = arith.addf %412, %414 : vector<8x32xf32>
      %c0_114 = arith.constant 0 : index
      %c0_115 = arith.constant 0 : index
      %416 = vector.load %arg19[%c0_114, %c0_115] : memref<8x32xf32, #tpu.memory_space<vmem>>, vector<8x32xf32>
      tpu.vector_store %arg19[%c0_114, %c0_115], %415 {strides = array<i32>} : memref<8x32xf32, #tpu.memory_space<vmem>>, vector<8x32xf32>,
    } else {
    }
    %c4_i32 = arith.constant 4 : i32
    %332 = arith.cmpi sgt, %319, %c4_i32 : i32
    %333 = arith.extui %332 : i1 to i32
    %c0_i32_86 = arith.constant 0 : i32
    %334 = arith.cmpi ne, %333, %c0_i32_86 : i32
    scf.if %334 {
      %c0_103 = arith.constant 0 : index
      %c0_104 = arith.constant 0 : index
      %370 = vector.load %arg18[%c0_103, %c0_104] : memref<8x32xf32, #tpu.memory_space<vmem>>, vector<8x32xf32>
      %c0_105 = arith.constant 0 : index
      %c0_106 = arith.constant 0 : index
      %371 = vector.load %arg19[%c0_105, %c0_106] : memref<8x32xf32, #tpu.memory_space<vmem>>, vector<8x32xf32>
      %372 = vector.extract_strided_slice %311 {offsets = [4, 0, 0], sizes = [1, 8, 128], strides = [1, 1, 1]} : vector<8x8x128xf32> to vector<1x8x128xf32>
      %373 = vector.shape_cast %372 : vector<1x8x128xf32> to vector<8x128xf32>
      %374 = arith.truncf %370 : vector<8x32xf32> to vector<8x32xbf16>
      %cst_107 = arith.constant dense<0.000000e+00> : vector<8x128xf32>
      %375 = tpu.matmul %374, %312, %cst_107 {dimension_numbers = #tpu.dot_dimension_numbers<[1], [0], [0], [1], [0, 0, 1, 1], [], []>} : vector<8x32xbf16>, vector<32x128xbf16>, vector<8x128xf32> -> vector<8x128xf32>
      %376 = arith.addf %373, %375 : vector<8x128xf32>
      %377 = vector.extract_strided_slice %376 {offsets = [0, 0], sizes = [8, 32], strides = [1, 1]} : vector<8x128xf32> to vector<8x32xf32>
      %378 = arith.negf %377 : vector<8x32xf32>
      %379 = math.exp %378 : vector<8x32xf32>
      %cst_108 = arith.constant 1.000000e+00 : f32
      %380 = vector.broadcast %cst_108 : f32 to vector<8x32xf32>
      %381 = arith.addf %380, %379 : vector<8x32xf32>
      %382 = arith.divf %380, %381 : vector<8x32xf32>
      %383 = vector.extract_strided_slice %376 {offsets = [0, 32], sizes = [8, 32], strides = [1, 1]} : vector<8x128xf32> to vector<8x32xf32>
      %384 = arith.negf %383 : vector<8x32xf32>
      %385 = math.exp %384 : vector<8x32xf32>
      %cst_109 = arith.constant 1.000000e+00 : f32
      %386 = vector.broadcast %cst_109 : f32 to vector<8x32xf32>
      %387 = arith.addf %386, %385 : vector<8x32xf32>
      %388 = arith.divf %386, %387 : vector<8x32xf32>
      %389 = vector.extract_strided_slice %376 {offsets = [0, 64], sizes = [8, 32], strides = [1, 1]} : vector<8x128xf32> to vector<8x32xf32>
      %390 = math.tanh %389 : vector<8x32xf32>
      %391 = vector.extract_strided_slice %376 {offsets = [0, 96], sizes = [8, 32], strides = [1, 1]} : vector<8x128xf32> to vector<8x32xf32>
      %392 = arith.negf %391 : vector<8x32xf32>
      %393 = math.exp %392 : vector<8x32xf32>
      %cst_110 = arith.constant 1.000000e+00 : f32
      %394 = vector.broadcast %cst_110 : f32 to vector<8x32xf32>
      %395 = arith.addf %394, %393 : vector<8x32xf32>
      %396 = arith.divf %394, %395 : vector<8x32xf32>
      %397 = arith.mulf %388, %371 : vector<8x32xf32>
      %398 = arith.mulf %382, %390 : vector<8x32xf32>
      %399 = arith.addf %397, %398 : vector<8x32xf32>
      %400 = math.tanh %399 : vector<8x32xf32>
      %401 = arith.mulf %396, %400 : vector<8x32xf32>
      %402 = vector.extract_strided_slice %313 {offsets = [0, 4], sizes = [8, 1], strides = [1, 1]} : vector<8x8xf32> to vector<8x1xf32>
      %cst_111 = arith.constant 1.000000e+00 : f32
      %403 = vector.broadcast %cst_111 : f32 to vector<8x1xf32>
      %404 = arith.subf %403, %402 : vector<8x1xf32>
      %405 = vector.broadcast %402 : vector<8x1xf32> to vector<8x32xf32>
      %406 = arith.mulf %405, %401 : vector<8x32xf32>
      %407 = vector.broadcast %404 : vector<8x1xf32> to vector<8x32xf32>
      %408 = arith.mulf %407, %370 : vector<8x32xf32>
      %409 = arith.addf %406, %408 : vector<8x32xf32>
      %c0_112 = arith.constant 0 : index
      %c0_113 = arith.constant 0 : index
      %410 = vector.load %arg18[%c0_112, %c0_113] : memref<8x32xf32, #tpu.memory_space<vmem>>, vector<8x32xf32>
      tpu.vector_store %arg18[%c0_112, %c0_113], %409 {strides = array<i32>} : memref<8x32xf32, #tpu.memory_space<vmem>>, vector<8x32xf32>,
      %411 = vector.broadcast %402 : vector<8x1xf32> to vector<8x32xf32>
      %412 = arith.mulf %411, %399 : vector<8x32xf32>
      %413 = vector.broadcast %404 : vector<8x1xf32> to vector<8x32xf32>
      %414 = arith.mulf %413, %371 : vector<8x32xf32>
      %415 = arith.addf %412, %414 : vector<8x32xf32>
      %c0_114 = arith.constant 0 : index
      %c0_115 = arith.constant 0 : index
      %416 = vector.load %arg19[%c0_114, %c0_115] : memref<8x32xf32, #tpu.memory_space<vmem>>, vector<8x32xf32>
      tpu.vector_store %arg19[%c0_114, %c0_115], %415 {strides = array<i32>} : memref<8x32xf32, #tpu.memory_space<vmem>>, vector<8x32xf32>,
    } else {
    }
    %c5_i32 = arith.constant 5 : i32
    %335 = arith.cmpi sgt, %319, %c5_i32 : i32
    %336 = arith.extui %335 : i1 to i32
    %c0_i32_87 = arith.constant 0 : i32
    %337 = arith.cmpi ne, %336, %c0_i32_87 : i32
    scf.if %337 {
      %c0_103 = arith.constant 0 : index
      %c0_104 = arith.constant 0 : index
      %370 = vector.load %arg18[%c0_103, %c0_104] : memref<8x32xf32, #tpu.memory_space<vmem>>, vector<8x32xf32>
      %c0_105 = arith.constant 0 : index
      %c0_106 = arith.constant 0 : index
      %371 = vector.load %arg19[%c0_105, %c0_106] : memref<8x32xf32, #tpu.memory_space<vmem>>, vector<8x32xf32>
      %372 = vector.extract_strided_slice %311 {offsets = [5, 0, 0], sizes = [1, 8, 128], strides = [1, 1, 1]} : vector<8x8x128xf32> to vector<1x8x128xf32>
      %373 = vector.shape_cast %372 : vector<1x8x128xf32> to vector<8x128xf32>
      %374 = arith.truncf %370 : vector<8x32xf32> to vector<8x32xbf16>
      %cst_107 = arith.constant dense<0.000000e+00> : vector<8x128xf32>
      %375 = tpu.matmul %374, %312, %cst_107 {dimension_numbers = #tpu.dot_dimension_numbers<[1], [0], [0], [1], [0, 0, 1, 1], [], []>} : vector<8x32xbf16>, vector<32x128xbf16>, vector<8x128xf32> -> vector<8x128xf32>
      %376 = arith.addf %373, %375 : vector<8x128xf32>
      %377 = vector.extract_strided_slice %376 {offsets = [0, 0], sizes = [8, 32], strides = [1, 1]} : vector<8x128xf32> to vector<8x32xf32>
      %378 = arith.negf %377 : vector<8x32xf32>
      %379 = math.exp %378 : vector<8x32xf32>
      %cst_108 = arith.constant 1.000000e+00 : f32
      %380 = vector.broadcast %cst_108 : f32 to vector<8x32xf32>
      %381 = arith.addf %380, %379 : vector<8x32xf32>
      %382 = arith.divf %380, %381 : vector<8x32xf32>
      %383 = vector.extract_strided_slice %376 {offsets = [0, 32], sizes = [8, 32], strides = [1, 1]} : vector<8x128xf32> to vector<8x32xf32>
      %384 = arith.negf %383 : vector<8x32xf32>
      %385 = math.exp %384 : vector<8x32xf32>
      %cst_109 = arith.constant 1.000000e+00 : f32
      %386 = vector.broadcast %cst_109 : f32 to vector<8x32xf32>
      %387 = arith.addf %386, %385 : vector<8x32xf32>
      %388 = arith.divf %386, %387 : vector<8x32xf32>
      %389 = vector.extract_strided_slice %376 {offsets = [0, 64], sizes = [8, 32], strides = [1, 1]} : vector<8x128xf32> to vector<8x32xf32>
      %390 = math.tanh %389 : vector<8x32xf32>
      %391 = vector.extract_strided_slice %376 {offsets = [0, 96], sizes = [8, 32], strides = [1, 1]} : vector<8x128xf32> to vector<8x32xf32>
      %392 = arith.negf %391 : vector<8x32xf32>
      %393 = math.exp %392 : vector<8x32xf32>
      %cst_110 = arith.constant 1.000000e+00 : f32
      %394 = vector.broadcast %cst_110 : f32 to vector<8x32xf32>
      %395 = arith.addf %394, %393 : vector<8x32xf32>
      %396 = arith.divf %394, %395 : vector<8x32xf32>
      %397 = arith.mulf %388, %371 : vector<8x32xf32>
      %398 = arith.mulf %382, %390 : vector<8x32xf32>
      %399 = arith.addf %397, %398 : vector<8x32xf32>
      %400 = math.tanh %399 : vector<8x32xf32>
      %401 = arith.mulf %396, %400 : vector<8x32xf32>
      %402 = vector.extract_strided_slice %313 {offsets = [0, 5], sizes = [8, 1], strides = [1, 1]} : vector<8x8xf32> to vector<8x1xf32>
      %cst_111 = arith.constant 1.000000e+00 : f32
      %403 = vector.broadcast %cst_111 : f32 to vector<8x1xf32>
      %404 = arith.subf %403, %402 : vector<8x1xf32>
      %405 = vector.broadcast %402 : vector<8x1xf32> to vector<8x32xf32>
      %406 = arith.mulf %405, %401 : vector<8x32xf32>
      %407 = vector.broadcast %404 : vector<8x1xf32> to vector<8x32xf32>
      %408 = arith.mulf %407, %370 : vector<8x32xf32>
      %409 = arith.addf %406, %408 : vector<8x32xf32>
      %c0_112 = arith.constant 0 : index
      %c0_113 = arith.constant 0 : index
      %410 = vector.load %arg18[%c0_112, %c0_113] : memref<8x32xf32, #tpu.memory_space<vmem>>, vector<8x32xf32>
      tpu.vector_store %arg18[%c0_112, %c0_113], %409 {strides = array<i32>} : memref<8x32xf32, #tpu.memory_space<vmem>>, vector<8x32xf32>,
      %411 = vector.broadcast %402 : vector<8x1xf32> to vector<8x32xf32>
      %412 = arith.mulf %411, %399 : vector<8x32xf32>
      %413 = vector.broadcast %404 : vector<8x1xf32> to vector<8x32xf32>
      %414 = arith.mulf %413, %371 : vector<8x32xf32>
      %415 = arith.addf %412, %414 : vector<8x32xf32>
      %c0_114 = arith.constant 0 : index
      %c0_115 = arith.constant 0 : index
      %416 = vector.load %arg19[%c0_114, %c0_115] : memref<8x32xf32, #tpu.memory_space<vmem>>, vector<8x32xf32>
      tpu.vector_store %arg19[%c0_114, %c0_115], %415 {strides = array<i32>} : memref<8x32xf32, #tpu.memory_space<vmem>>, vector<8x32xf32>,
    } else {
    }
    %c6_i32 = arith.constant 6 : i32
    %338 = arith.cmpi sgt, %319, %c6_i32 : i32
    %339 = arith.extui %338 : i1 to i32
    %c0_i32_88 = arith.constant 0 : i32
    %340 = arith.cmpi ne, %339, %c0_i32_88 : i32
    scf.if %340 {
      %c0_103 = arith.constant 0 : index
      %c0_104 = arith.constant 0 : index
      %370 = vector.load %arg18[%c0_103, %c0_104] : memref<8x32xf32, #tpu.memory_space<vmem>>, vector<8x32xf32>
      %c0_105 = arith.constant 0 : index
      %c0_106 = arith.constant 0 : index
      %371 = vector.load %arg19[%c0_105, %c0_106] : memref<8x32xf32, #tpu.memory_space<vmem>>, vector<8x32xf32>
      %372 = vector.extract_strided_slice %311 {offsets = [6, 0, 0], sizes = [1, 8, 128], strides = [1, 1, 1]} : vector<8x8x128xf32> to vector<1x8x128xf32>
      %373 = vector.shape_cast %372 : vector<1x8x128xf32> to vector<8x128xf32>
      %374 = arith.truncf %370 : vector<8x32xf32> to vector<8x32xbf16>
      %cst_107 = arith.constant dense<0.000000e+00> : vector<8x128xf32>
      %375 = tpu.matmul %374, %312, %cst_107 {dimension_numbers = #tpu.dot_dimension_numbers<[1], [0], [0], [1], [0, 0, 1, 1], [], []>} : vector<8x32xbf16>, vector<32x128xbf16>, vector<8x128xf32> -> vector<8x128xf32>
      %376 = arith.addf %373, %375 : vector<8x128xf32>
      %377 = vector.extract_strided_slice %376 {offsets = [0, 0], sizes = [8, 32], strides = [1, 1]} : vector<8x128xf32> to vector<8x32xf32>
      %378 = arith.negf %377 : vector<8x32xf32>
      %379 = math.exp %378 : vector<8x32xf32>
      %cst_108 = arith.constant 1.000000e+00 : f32
      %380 = vector.broadcast %cst_108 : f32 to vector<8x32xf32>
      %381 = arith.addf %380, %379 : vector<8x32xf32>
      %382 = arith.divf %380, %381 : vector<8x32xf32>
      %383 = vector.extract_strided_slice %376 {offsets = [0, 32], sizes = [8, 32], strides = [1, 1]} : vector<8x128xf32> to vector<8x32xf32>
      %384 = arith.negf %383 : vector<8x32xf32>
      %385 = math.exp %384 : vector<8x32xf32>
      %cst_109 = arith.constant 1.000000e+00 : f32
      %386 = vector.broadcast %cst_109 : f32 to vector<8x32xf32>
      %387 = arith.addf %386, %385 : vector<8x32xf32>
      %388 = arith.divf %386, %387 : vector<8x32xf32>
      %389 = vector.extract_strided_slice %376 {offsets = [0, 64], sizes = [8, 32], strides = [1, 1]} : vector<8x128xf32> to vector<8x32xf32>
      %390 = math.tanh %389 : vector<8x32xf32>
      %391 = vector.extract_strided_slice %376 {offsets = [0, 96], sizes = [8, 32], strides = [1, 1]} : vector<8x128xf32> to vector<8x32xf32>
      %392 = arith.negf %391 : vector<8x32xf32>
      %393 = math.exp %392 : vector<8x32xf32>
      %cst_110 = arith.constant 1.000000e+00 : f32
      %394 = vector.broadcast %cst_110 : f32 to vector<8x32xf32>
      %395 = arith.addf %394, %393 : vector<8x32xf32>
      %396 = arith.divf %394, %395 : vector<8x32xf32>
      %397 = arith.mulf %388, %371 : vector<8x32xf32>
      %398 = arith.mulf %382, %390 : vector<8x32xf32>
      %399 = arith.addf %397, %398 : vector<8x32xf32>
      %400 = math.tanh %399 : vector<8x32xf32>
      %401 = arith.mulf %396, %400 : vector<8x32xf32>
      %402 = vector.extract_strided_slice %313 {offsets = [0, 6], sizes = [8, 1], strides = [1, 1]} : vector<8x8xf32> to vector<8x1xf32>
      %cst_111 = arith.constant 1.000000e+00 : f32
      %403 = vector.broadcast %cst_111 : f32 to vector<8x1xf32>
      %404 = arith.subf %403, %402 : vector<8x1xf32>
      %405 = vector.broadcast %402 : vector<8x1xf32> to vector<8x32xf32>
      %406 = arith.mulf %405, %401 : vector<8x32xf32>
      %407 = vector.broadcast %404 : vector<8x1xf32> to vector<8x32xf32>
      %408 = arith.mulf %407, %370 : vector<8x32xf32>
      %409 = arith.addf %406, %408 : vector<8x32xf32>
      %c0_112 = arith.constant 0 : index
      %c0_113 = arith.constant 0 : index
      %410 = vector.load %arg18[%c0_112, %c0_113] : memref<8x32xf32, #tpu.memory_space<vmem>>, vector<8x32xf32>
      tpu.vector_store %arg18[%c0_112, %c0_113], %409 {strides = array<i32>} : memref<8x32xf32, #tpu.memory_space<vmem>>, vector<8x32xf32>,
      %411 = vector.broadcast %402 : vector<8x1xf32> to vector<8x32xf32>
      %412 = arith.mulf %411, %399 : vector<8x32xf32>
      %413 = vector.broadcast %404 : vector<8x1xf32> to vector<8x32xf32>
      %414 = arith.mulf %413, %371 : vector<8x32xf32>
      %415 = arith.addf %412, %414 : vector<8x32xf32>
      %c0_114 = arith.constant 0 : index
      %c0_115 = arith.constant 0 : index
      %416 = vector.load %arg19[%c0_114, %c0_115] : memref<8x32xf32, #tpu.memory_space<vmem>>, vector<8x32xf32>
      tpu.vector_store %arg19[%c0_114, %c0_115], %415 {strides = array<i32>} : memref<8x32xf32, #tpu.memory_space<vmem>>, vector<8x32xf32>,
    } else {
    }
    %c7_i32 = arith.constant 7 : i32
    %341 = arith.cmpi sgt, %319, %c7_i32 : i32
    %342 = arith.extui %341 : i1 to i32
    %c0_i32_89 = arith.constant 0 : i32
    %343 = arith.cmpi ne, %342, %c0_i32_89 : i32
    scf.if %343 {
      %c0_103 = arith.constant 0 : index
      %c0_104 = arith.constant 0 : index
      %370 = vector.load %arg18[%c0_103, %c0_104] : memref<8x32xf32, #tpu.memory_space<vmem>>, vector<8x32xf32>
      %c0_105 = arith.constant 0 : index
      %c0_106 = arith.constant 0 : index
      %371 = vector.load %arg19[%c0_105, %c0_106] : memref<8x32xf32, #tpu.memory_space<vmem>>, vector<8x32xf32>
      %372 = vector.extract_strided_slice %311 {offsets = [7, 0, 0], sizes = [1, 8, 128], strides = [1, 1, 1]} : vector<8x8x128xf32> to vector<1x8x128xf32>
      %373 = vector.shape_cast %372 : vector<1x8x128xf32> to vector<8x128xf32>
      %374 = arith.truncf %370 : vector<8x32xf32> to vector<8x32xbf16>
      %cst_107 = arith.constant dense<0.000000e+00> : vector<8x128xf32>
      %375 = tpu.matmul %374, %312, %cst_107 {dimension_numbers = #tpu.dot_dimension_numbers<[1], [0], [0], [1], [0, 0, 1, 1], [], []>} : vector<8x32xbf16>, vector<32x128xbf16>, vector<8x128xf32> -> vector<8x128xf32>
      %376 = arith.addf %373, %375 : vector<8x128xf32>
      %377 = vector.extract_strided_slice %376 {offsets = [0, 0], sizes = [8, 32], strides = [1, 1]} : vector<8x128xf32> to vector<8x32xf32>
      %378 = arith.negf %377 : vector<8x32xf32>
      %379 = math.exp %378 : vector<8x32xf32>
      %cst_108 = arith.constant 1.000000e+00 : f32
      %380 = vector.broadcast %cst_108 : f32 to vector<8x32xf32>
      %381 = arith.addf %380, %379 : vector<8x32xf32>
      %382 = arith.divf %380, %381 : vector<8x32xf32>
      %383 = vector.extract_strided_slice %376 {offsets = [0, 32], sizes = [8, 32], strides = [1, 1]} : vector<8x128xf32> to vector<8x32xf32>
      %384 = arith.negf %383 : vector<8x32xf32>
      %385 = math.exp %384 : vector<8x32xf32>
      %cst_109 = arith.constant 1.000000e+00 : f32
      %386 = vector.broadcast %cst_109 : f32 to vector<8x32xf32>
      %387 = arith.addf %386, %385 : vector<8x32xf32>
      %388 = arith.divf %386, %387 : vector<8x32xf32>
      %389 = vector.extract_strided_slice %376 {offsets = [0, 64], sizes = [8, 32], strides = [1, 1]} : vector<8x128xf32> to vector<8x32xf32>
      %390 = math.tanh %389 : vector<8x32xf32>
      %391 = vector.extract_strided_slice %376 {offsets = [0, 96], sizes = [8, 32], strides = [1, 1]} : vector<8x128xf32> to vector<8x32xf32>
      %392 = arith.negf %391 : vector<8x32xf32>
      %393 = math.exp %392 : vector<8x32xf32>
      %cst_110 = arith.constant 1.000000e+00 : f32
      %394 = vector.broadcast %cst_110 : f32 to vector<8x32xf32>
      %395 = arith.addf %394, %393 : vector<8x32xf32>
      %396 = arith.divf %394, %395 : vector<8x32xf32>
      %397 = arith.mulf %388, %371 : vector<8x32xf32>
      %398 = arith.mulf %382, %390 : vector<8x32xf32>
      %399 = arith.addf %397, %398 : vector<8x32xf32>
      %400 = math.tanh %399 : vector<8x32xf32>
      %401 = arith.mulf %396, %400 : vector<8x32xf32>
      %402 = vector.extract_strided_slice %313 {offsets = [0, 7], sizes = [8, 1], strides = [1, 1]} : vector<8x8xf32> to vector<8x1xf32>
      %cst_111 = arith.constant 1.000000e+00 : f32
      %403 = vector.broadcast %cst_111 : f32 to vector<8x1xf32>
      %404 = arith.subf %403, %402 : vector<8x1xf32>
      %405 = vector.broadcast %402 : vector<8x1xf32> to vector<8x32xf32>
      %406 = arith.mulf %405, %401 : vector<8x32xf32>
      %407 = vector.broadcast %404 : vector<8x1xf32> to vector<8x32xf32>
      %408 = arith.mulf %407, %370 : vector<8x32xf32>
      %409 = arith.addf %406, %408 : vector<8x32xf32>
      %c0_112 = arith.constant 0 : index
      %c0_113 = arith.constant 0 : index
      %410 = vector.load %arg18[%c0_112, %c0_113] : memref<8x32xf32, #tpu.memory_space<vmem>>, vector<8x32xf32>
      tpu.vector_store %arg18[%c0_112, %c0_113], %409 {strides = array<i32>} : memref<8x32xf32, #tpu.memory_space<vmem>>, vector<8x32xf32>,
      %411 = vector.broadcast %402 : vector<8x1xf32> to vector<8x32xf32>
      %412 = arith.mulf %411, %399 : vector<8x32xf32>
      %413 = vector.broadcast %404 : vector<8x1xf32> to vector<8x32xf32>
      %414 = arith.mulf %413, %371 : vector<8x32xf32>
      %415 = arith.addf %412, %414 : vector<8x32xf32>
      %c0_114 = arith.constant 0 : index
      %c0_115 = arith.constant 0 : index
      %416 = vector.load %arg19[%c0_114, %c0_115] : memref<8x32xf32, #tpu.memory_space<vmem>>, vector<8x32xf32>
      tpu.vector_store %arg19[%c0_114, %c0_115], %415 {strides = array<i32>} : memref<8x32xf32, #tpu.memory_space<vmem>>, vector<8x32xf32>,
    } else {
    }
    %c0_90 = arith.constant 0 : index
    %c0_91 = arith.constant 0 : index
    %344 = vector.load %arg18[%c0_90, %c0_91] : memref<8x32xf32, #tpu.memory_space<vmem>>, vector<8x32xf32>
    %c0_92 = arith.constant 0 : index
    %c0_93 = arith.constant 0 : index
    %345 = vector.load %arg15[%c0_92, %c0_93] : memref<1x32xf32, #tpu.memory_space<vmem>>, vector<1x32xf32>
    %346 = vector.broadcast %345 : vector<1x32xf32> to vector<8x32xf32>
    %347 = arith.mulf %344, %346 : vector<8x32xf32>
    %cst_94 = arith.constant dense<0.000000e+00> : vector<8xf32>
    %348 = vector.multi_reduction <add>, %347, %cst_94 [1] : vector<8x32xf32> to vector<8xf32>
    %349 = vector.shape_cast %348 : vector<8xf32> to vector<8x1xf32>
    %c0_95 = arith.constant 0 : index
    %c0_96 = arith.constant 0 : index
    %350 = vector.load %arg16[%c0_95, %c0_96] : memref<1x1xf32, #tpu.memory_space<vmem>>, vector<1x1xf32>
    %351 = vector.broadcast %350 : vector<1x1xf32> to vector<8x1xf32>
    %352 = arith.addf %349, %351 : vector<8x1xf32>
    %353 = arith.negf %352 : vector<8x1xf32>
    %354 = math.exp %353 : vector<8x1xf32>
    %cst_97 = arith.constant 1.000000e+00 : f32
    %355 = vector.broadcast %cst_97 : f32 to vector<8x1xf32>
    %356 = arith.addf %355, %354 : vector<8x1xf32>
    %357 = arith.divf %355, %356 : vector<8x1xf32>
    %cst_98 = arith.constant 5.000000e-01 : f32
    %358 = vector.broadcast %cst_98 : f32 to vector<8x1xf32>
    %359 = arith.subf %357, %358 : vector<8x1xf32>
    %cst_99 = arith.constant 8.000000e+00 : f32
    %360 = vector.broadcast %cst_99 : f32 to vector<8x1xf32>
    %361 = arith.mulf %360, %359 : vector<8x1xf32>
    %362 = arith.subf %285, %361 : vector<8x1xf32>
    %363 = arith.mulf %303, %362 : vector<8x1xf32>
    %364 = arith.negf %363 : vector<8x1xf32>
    %365 = math.exp %364 : vector<8x1xf32>
    %cst_100 = arith.constant 1.000000e+00 : f32
    %366 = vector.broadcast %cst_100 : f32 to vector<8x1xf32>
    %367 = arith.addf %366, %365 : vector<8x1xf32>
    %368 = arith.divf %366, %367 : vector<8x1xf32>
    %c0_101 = arith.constant 0 : index
    %c0_102 = arith.constant 0 : index
    %369 = vector.load %arg17[%c0_101, %c0_102] : memref<8x1xf32, #tpu.memory_space<vmem>>, vector<8x1xf32>
    tpu.vector_store %arg17[%c0_101, %c0_102], %368 {strides = array<i32>} : memref<8x1xf32, #tpu.memory_space<vmem>>, vector<8x1xf32>,
    return
  }
  func.func @transform_0(%arg0: i32, %arg1: memref<1xi32, #tpu.memory_space<smem>>) -> (i32, i32) {
    %c0_i32 = arith.constant 0 : i32
    %c0_i32_0 = arith.constant 0 : i32
    return %arg0, %c0_i32 : i32, i32
  }
  func.func @transform_1(%arg0: i32, %arg1: memref<1xi32, #tpu.memory_space<smem>>) -> (i32, i32) {
    %c0_i32 = arith.constant 0 : i32
    %c0_i32_0 = arith.constant 0 : i32
    return %arg0, %c0_i32 : i32, i32
  }
  func.func @transform_2(%arg0: i32, %arg1: memref<1xi32, #tpu.memory_space<smem>>) -> (i32, i32, i32) {
    %c0_i32 = arith.constant 0 : i32
    %c0_i32_0 = arith.constant 0 : i32
    %c0_i32_1 = arith.constant 0 : i32
    return %c0_i32, %arg0, %c0_i32_0 : i32, i32, i32
  }
  func.func @transform_3(%arg0: i32, %arg1: memref<1xi32, #tpu.memory_space<smem>>) -> (i32, i32, i32) {
    %c0_i32 = arith.constant 0 : i32
    %c0_i32_0 = arith.constant 0 : i32
    %c0_i32_1 = arith.constant 0 : i32
    return %c0_i32, %arg0, %c0_i32_0 : i32, i32, i32
  }
  func.func @transform_4(%arg0: i32, %arg1: memref<1xi32, #tpu.memory_space<smem>>) -> (i32, i32) {
    %c0_i32 = arith.constant 0 : i32
    %c0_i32_0 = arith.constant 0 : i32
    %c0_i32_1 = arith.constant 0 : i32
    return %c0_i32, %c0_i32_0 : i32, i32
  }
  func.func @transform_5(%arg0: i32, %arg1: memref<1xi32, #tpu.memory_space<smem>>) -> (i32, i32) {
    %c0_i32 = arith.constant 0 : i32
    %c0_i32_0 = arith.constant 0 : i32
    %c0_i32_1 = arith.constant 0 : i32
    return %c0_i32, %c0_i32_0 : i32, i32
  }
  func.func @transform_6(%arg0: i32, %arg1: memref<1xi32, #tpu.memory_space<smem>>) -> (i32, i32) {
    %c0_i32 = arith.constant 0 : i32
    %c0_i32_0 = arith.constant 0 : i32
    %c0_i32_1 = arith.constant 0 : i32
    return %c0_i32, %c0_i32_0 : i32, i32
  }
  func.func @transform_7(%arg0: i32, %arg1: memref<1xi32, #tpu.memory_space<smem>>) -> (i32, i32) {
    %c0_i32 = arith.constant 0 : i32
    %c0_i32_0 = arith.constant 0 : i32
    %c0_i32_1 = arith.constant 0 : i32
    return %c0_i32, %c0_i32_0 : i32, i32
  }
  func.func @transform_8(%arg0: i32, %arg1: memref<1xi32, #tpu.memory_space<smem>>) -> (i32, i32) {
    %c0_i32 = arith.constant 0 : i32
    %c0_i32_0 = arith.constant 0 : i32
    %c0_i32_1 = arith.constant 0 : i32
    return %c0_i32, %c0_i32_0 : i32, i32
  }
  func.func @transform_9(%arg0: i32, %arg1: memref<1xi32, #tpu.memory_space<smem>>) -> (i32, i32) {
    %c0_i32 = arith.constant 0 : i32
    %c0_i32_0 = arith.constant 0 : i32
    %c0_i32_1 = arith.constant 0 : i32
    return %c0_i32, %c0_i32_0 : i32, i32
  }
  func.func @transform_10(%arg0: i32, %arg1: memref<1xi32, #tpu.memory_space<smem>>) -> (i32, i32) {
    %c0_i32 = arith.constant 0 : i32
    %c0_i32_0 = arith.constant 0 : i32
    %c0_i32_1 = arith.constant 0 : i32
    return %c0_i32, %c0_i32_0 : i32, i32
  }
  func.func @transform_11(%arg0: i32, %arg1: memref<1xi32, #tpu.memory_space<smem>>) -> (i32, i32) {
    %c0_i32 = arith.constant 0 : i32
    %c0_i32_0 = arith.constant 0 : i32
    %c0_i32_1 = arith.constant 0 : i32
    return %c0_i32, %c0_i32_0 : i32, i32
  }
  func.func @transform_12(%arg0: i32, %arg1: memref<1xi32, #tpu.memory_space<smem>>) -> (i32, i32) {
    %c0_i32 = arith.constant 0 : i32
    %c0_i32_0 = arith.constant 0 : i32
    %c0_i32_1 = arith.constant 0 : i32
    return %c0_i32, %c0_i32_0 : i32, i32
  }
  func.func @transform_13(%arg0: i32, %arg1: memref<1xi32, #tpu.memory_space<smem>>) -> (i32, i32) {
    %c0_i32 = arith.constant 0 : i32
    %c0_i32_0 = arith.constant 0 : i32
    %c0_i32_1 = arith.constant 0 : i32
    return %c0_i32, %c0_i32_0 : i32, i32
  }
  func.func @transform_14(%arg0: i32, %arg1: memref<1xi32, #tpu.memory_space<smem>>) -> (i32, i32) {
    %c0_i32 = arith.constant 0 : i32
    %c0_i32_0 = arith.constant 0 : i32
    %c0_i32_1 = arith.constant 0 : i32
    return %c0_i32, %c0_i32_0 : i32, i32
  }
  func.func @transform_15(%arg0: i32, %arg1: memref<1xi32, #tpu.memory_space<smem>>) -> (i32, i32) {
    %c0_i32 = arith.constant 0 : i32
    %c0_i32_0 = arith.constant 0 : i32
    return %arg0, %c0_i32 : i32, i32
  }
}

</mosaic_0001>

<llo_original>
// kernel: tpu_custom_call.1
$region0: #{tpu_custom_call.1}
  #allocation0 [shape = 'u32[]', space=smem, size = 0x4, offset = 0x4, fixed_abs, tag = 'smem constant byte address 0x4 - core index']
  #allocation1 [shape = 'u32[72,128]{1,0:T(1,128)}', space=vmem, size = 0x9000, scoped, tag = 'internal scratch']
  #allocation2 [shape = 'f32[8,32]{1,0:T(8,128)}', space=vmem, size = 0x1000, scoped, tag = 'scratch operand']
  #allocation3 [shape = 'f32[8,32]{1,0:T(8,128)}', space=vmem, size = 0x1000, scoped, tag = 'scratch operand']
  #allocation4 [shape = 's32[1]{0}', space=sflag, size = 0x4, scoped, tag = 'scoped memory for tpu_custom_call.1']
  #allocation5 [shape = 's32[1]{0:T(128)S(6)}', space=smem, size = 0x200, scoped, tag = 'prefetched SMEM operand 0']
  #allocation6 [shape = 'f32[1,1]{1,0:T(1,128)S(1)}', space=vmem, size = 0x200, scoped, tag = 'scoped memory for tpu_custom_call.1']
  #allocation7 [shape = 'f32[1,1]{1,0:T(1,128)S(1)}', space=vmem, size = 0x200, scoped, tag = 'scoped memory for tpu_custom_call.1']
  #allocation8 [shape = 'f32[1,1]{1,0:T(1,128)S(1)}', space=vmem, size = 0x200, scoped, tag = 'scoped memory for tpu_custom_call.1']
  %s0 = inlined_call_operand.<no memory space> [shape: s32[1], index: 0, kind: input, shape index: {}]
  %s1 = inlined_call_operand.hbm [shape: f32[8,8], index: 1, kind: input, shape index: {}]
  %s2 = inlined_call_operand.hbm [shape: f32[8,32], index: 2, kind: input, shape index: {}]
  %s3 = inlined_call_operand.hbm [shape: f32[8,8,32], index: 3, kind: input, shape index: {}]
  %s4 = inlined_call_operand.hbm [shape: f32[8,8,32], index: 4, kind: input, shape index: {}]
  %s5 = inlined_call_operand.hbm [shape: bf16[64,64], index: 5, kind: input, shape index: {}]
  %s6 = inlined_call_operand.hbm [shape: f32[1,64], index: 6, kind: input, shape index: {}]
  %s7 = inlined_call_operand.hbm [shape: f32[1,32], index: 7, kind: input, shape index: {}]
  %s8 = inlined_call_operand.<no memory space> [shape: f32[1,1], index: 8, kind: input, shape index: {}]
  %s9 = inlined_call_operand.hbm [shape: f32[1,32], index: 9, kind: input, shape index: {}]
  %s10 = inlined_call_operand.<no memory space> [shape: f32[1,1], index: 10, kind: input, shape index: {}]
  %s11 = inlined_call_operand.hbm [shape: bf16[32,128], index: 11, kind: input, shape index: {}]
  %s12 = inlined_call_operand.vmem [shape: bf16[32,128], index: 12, kind: input, shape index: {}]
  %s13 = inlined_call_operand.vmem [shape: f32[1,128], index: 13, kind: input, shape index: {}]
  %s14 = inlined_call_operand.vmem [shape: f32[1,32], index: 14, kind: input, shape index: {}]
  %s15 = inlined_call_operand.<no memory space> [shape: f32[1,1], index: 15, kind: input, shape index: {}]
  %s16 = inlined_call_operand.vmem [shape: f32[8,1], index: 16, kind: output, shape index: {}]
  %s17 = sld [smem:[#allocation0]]
  $region138: #{tpu_custom_call.1} parent=0
    _
  %s19 = ssub.s32 1, %s17
  %s20 = scalar_select 0, %s19, %s17
  %21 = sst [smem:[#allocation5]] %s0
  %v22 = vstv %s8
  %23 = vst [vmem:[#allocation6] sm:$0x1] %v22
  %v24 = vstv %s10
  %25 = vst [vmem:[#allocation7] sm:$0x1] %v24
  %v26 = vstv %s15
  %27 = vst [vmem:[#allocation8] sm:$0x1] %v26
  $region1: #{tpu_custom_call.1} parent=0
    #allocation9 [shape = 'u8[4096]{0}', space=vmem, size = 0x1000, scoped, tag = 'input window, operand 1, single buffered']
    #allocation10 [shape = 's32[1]{0}', space=sflag, size = 0x4, scoped, tag = 'scoped memory for tpu_custom_call.1']
    #allocation11 [shape = 'u8[4096]{0}', space=vmem, size = 0x1000, scoped, tag = 'input window, operand 2, single buffered']
    #allocation12 [shape = 's32[1]{0}', space=sflag, size = 0x4, scoped, tag = 'scoped memory for tpu_custom_call.1']
    #allocation13 [shape = 'u8[32768]{0}', space=vmem, size = 0x8000, scoped, tag = 'input window, operand 3, single buffered']
    #allocation14 [shape = 'u8[32768]{0}', space=vmem, size = 0x8000, scoped, tag = 'input window, operand 4, single buffered']
    #allocation15 [shape = 's32[1]{0}', space=sflag, size = 0x4, scoped, tag = 'scoped memory for tpu_custom_call.1']
    #allocation16 [shape = 'u8[16384]{0}', space=vmem, size = 0x4000, scoped, tag = 'input window, operand 5, single buffered']
    #allocation17 [shape = 'u8[512]{0}', space=vmem, size = 0x400, scoped, tag = 'input window, operand 6, single buffered']
    #allocation18 [shape = 's32[1]{0}', space=sflag, size = 0x4, scoped, tag = 'scoped memory for tpu_custom_call.1']
    #allocation19 [shape = 'u8[512]{0}', space=vmem, size = 0x400, scoped, tag = 'input window, operand 7, single buffered']
    #allocation20 [shape = 'u8[512]{0}', space=vmem, size = 0x400, scoped, tag = 'input window, operand 9, single buffered']
    #allocation21 [shape = 's32[1]{0}', space=sflag, size = 0x4, scoped, tag = 'scoped memory for tpu_custom_call.1']
    #allocation22 [shape = 'u8[8192]{0}', space=vmem, size = 0x2000, scoped, tag = 'input window, operand 11, single buffered']
    %28 = vsyncpa [#allocation10], 0
    %29 = vsyncpa [#allocation12], 0
    %30 = vsyncpa [#allocation15], 0
    %31 = vsyncpa [#allocation18], 0
    %32 = vsyncpa [#allocation21], 0
    // Predicated region
    $region2: #{tpu_custom_call.1} parent=1 // pred_check
      _
    $region3: #{tpu_custom_call.1} parent=1 // pred_check_branch
      %34 = sbr.rel (0) target = $region5
    $region4: #{tpu_custom_call.1} parent=1 // pred_region
      %36 = vsyncadd [#allocation10], 0
      %s38 = sshll.u32 %s1, 4
      %s39 = int_to_ptr.hbm [resolvable:$true] %s38
      %s40 = sshll.u32 [#allocation9], 4
      %s41 = int_to_ptr.vmem [resolvable:$true] %s40
      %43 = dma.hbm_to_vmem [thread:$0]  %s39, 128, %s41, [#allocation10]
    $region5: #{tpu_custom_call.1} parent=1 // pred_fallthru
      _
    // Predicated region
    $region6: #{tpu_custom_call.1} parent=1 // pred_check
      _
    $region7: #{tpu_custom_call.1} parent=1 // pred_check_branch
      %45 = sbr.rel (0) target = $region9
    $region8: #{tpu_custom_call.1} parent=1 // pred_region
      %47 = vsyncadd [#allocation12], 0
      %s49 = sshll.u32 %s2, 4
      %s50 = int_to_ptr.hbm [resolvable:$true] %s49
      %s51 = sshll.u32 [#allocation11], 4
      %s52 = int_to_ptr.vmem [resolvable:$true] %s51
      %54 = dma.hbm_to_vmem [thread:$0]  %s50, 128, %s52, [#allocation12]
    $region9: #{tpu_custom_call.1} parent=1 // pred_fallthru
      _
    // Predicated region
    $region10: #{tpu_custom_call.1} parent=1 // pred_check
      _
    $region11: #{tpu_custom_call.1} parent=1 // pred_check_branch
      %56 = sbr.rel (0) target = $region13
    $region12: #{tpu_custom_call.1} parent=1 // pred_region
      %58 = vsyncadd [#allocation12], 0
      %s59 = sshll.u32 %s3, 4
      %s60 = int_to_ptr.hbm [resolvable:$true] %s59
      %s61 = sshll.u32 [#allocation13], 4
      %s62 = int_to_ptr.vmem [resolvable:$true] %s61
      %67 = dma.hbm_to_vmem [thread:$0]  %s60, 1024, %s62, [#allocation12], 128, 128, 8
    $region13: #{tpu_custom_call.1} parent=1 // pred_fallthru
      _
    // Predicated region
    $region14: #{tpu_custom_call.1} parent=1 // pred_check
      _
    $region15: #{tpu_custom_call.1} parent=1 // pred_check_branch
      %69 = sbr.rel (0) target = $region17
    $region16: #{tpu_custom_call.1} parent=1 // pred_region
      %71 = vsyncadd [#allocation15], 0
      %s72 = sshll.u32 %s4, 4
      %s73 = int_to_ptr.hbm [resolvable:$true] %s72
      %s74 = sshll.u32 [#allocation14], 4
      %s75 = int_to_ptr.vmem [resolvable:$true] %s74
      %80 = dma.hbm_to_vmem [thread:$0]  %s73, 1024, %s75, [#allocation15], 128, 128, 8
    $region17: #{tpu_custom_call.1} parent=1 // pred_fallthru
      _
    // Predicated region
    $region18: #{tpu_custom_call.1} parent=1 // pred_check
      _
    $region19: #{tpu_custom_call.1} parent=1 // pred_check_branch
      %82 = sbr.rel (0) target = $region21
    $region20: #{tpu_custom_call.1} parent=1 // pred_region
      %84 = vsyncadd [#allocation15], 0
      %s85 = sshll.u32 %s5, 4
      %s86 = int_to_ptr.hbm [resolvable:$true] %s85
      %s87 = sshll.u32 [#allocation16], 4
      %s88 = int_to_ptr.vmem [resolvable:$true] %s87
      %93 = dma.hbm_to_vmem [thread:$0]  %s86, 512, %s88, [#allocation15], 64, 64, 4
    $region21: #{tpu_custom_call.1} parent=1 // pred_fallthru
      _
    // Predicated region
    $region22: #{tpu_custom_call.1} parent=1 // pred_check
      _
    $region23: #{tpu_custom_call.1} parent=1 // pred_check_branch
      %95 = sbr.rel (0) target = $region25
    $region24: #{tpu_custom_call.1} parent=1 // pred_region
      %97 = vsyncadd [#allocation18], 0
      %s99 = sshll.u32 %s6, 4
      %s100 = int_to_ptr.hbm [resolvable:$true] %s99
      %s101 = sshll.u32 [#allocation17], 4
      %s102 = int_to_ptr.vmem [resolvable:$true] %s101
      %104 = dma.hbm_to_vmem [thread:$0]  %s100, 16, %s102, [#allocation18]
    $region25: #{tpu_custom_call.1} parent=1 // pred_fallthru
      _
    // Predicated region
    $region26: #{tpu_custom_call.1} parent=1 // pred_check
      _
    $region27: #{tpu_custom_call.1} parent=1 // pred_check_branch
      %106 = sbr.rel (0) target = $region29
    $region28: #{tpu_custom_call.1} parent=1 // pred_region
      %108 = vsyncadd [#allocation18], 0
      %s110 = sshll.u32 %s7, 4
      %s111 = int_to_ptr.hbm [resolvable:$true] %s110
      %s112 = sshll.u32 [#allocation19], 4
      %s113 = int_to_ptr.vmem [resolvable:$true] %s112
      %115 = dma.hbm_to_vmem [thread:$0]  %s111, 16, %s113, [#allocation18]
    $region29: #{tpu_custom_call.1} parent=1 // pred_fallthru
      _
    // Predicated region
    $region30: #{tpu_custom_call.1} parent=1 // pred_check
      _
    $region31: #{tpu_custom_call.1} parent=1 // pred_check_branch
      %117 = sbr.rel (0) target = $region33
    $region32: #{tpu_custom_call.1} parent=1 // pred_region
      _
    $region33: #{tpu_custom_call.1} parent=1 // pred_fallthru
      _
    // Predicated region
    $region34: #{tpu_custom_call.1} parent=1 // pred_check
      _
    $region35: #{tpu_custom_call.1} parent=1 // pred_check_branch
      %119 = sbr.rel (0) target = $region37
    $region36: #{tpu_custom_call.1} parent=1 // pred_region
      %121 = vsyncadd [#allocation21], 0
      %s123 = sshll.u32 %s9, 4
      %s124 = int_to_ptr.hbm [resolvable:$true] %s123
      %s125 = sshll.u32 [#allocation20], 4
      %s126 = int_to_ptr.vmem [resolvable:$true] %s125
      %128 = dma.hbm_to_vmem [thread:$0]  %s124, 16, %s126, [#allocation21]
    $region37: #{tpu_custom_call.1} parent=1 // pred_fallthru
      _
    // Predicated region
    $region38: #{tpu_custom_call.1} parent=1 // pred_check
      _
    $region39: #{tpu_custom_call.1} parent=1 // pred_check_branch
      %130 = sbr.rel (0) target = $region41
    $region40: #{tpu_custom_call.1} parent=1 // pred_region
      _
    $region41: #{tpu_custom_call.1} parent=1 // pred_fallthru
      _
    // Predicated region
    $region42: #{tpu_custom_call.1} parent=1 // pred_check
      _
    $region43: #{tpu_custom_call.1} parent=1 // pred_check_branch
      %132 = sbr.rel (0) target = $region45
    $region44: #{tpu_custom_call.1} parent=1 // pred_region
      %134 = vsyncadd [#allocation21], 0
      %s135 = sshll.u32 %s11, 4
      %s136 = int_to_ptr.hbm [resolvable:$true] %s135
      %s137 = sshll.u32 [#allocation22], 4
      %s138 = int_to_ptr.vmem [resolvable:$true] %s137
      %143 = dma.hbm_to_vmem [thread:$0]  %s136, 256, %s138, [#allocation21], 64, 64, 4
    $region45: #{tpu_custom_call.1} parent=1 // pred_fallthru
      _
    // Predicated region
    $region46: #{tpu_custom_call.1} parent=1 // pred_check
      _
    $region47: #{tpu_custom_call.1} parent=1 // pred_check_branch
      %145 = sbr.rel (0) target = $region49
    $region48: #{tpu_custom_call.1} parent=1 // pred_region
      _
    $region49: #{tpu_custom_call.1} parent=1 // pred_fallthru
      _
    // Predicated region
    $region50: #{tpu_custom_call.1} parent=1 // pred_check
      _
    $region51: #{tpu_custom_call.1} parent=1 // pred_check_branch
      %147 = sbr.rel (0) target = $region53
    $region52: #{tpu_custom_call.1} parent=1 // pred_region
      _
    $region53: #{tpu_custom_call.1} parent=1 // pred_fallthru
      _
    // Predicated region
    $region54: #{tpu_custom_call.1} parent=1 // pred_check
      _
    $region55: #{tpu_custom_call.1} parent=1 // pred_check_branch
      %149 = sbr.rel (0) target = $region57
    $region56: #{tpu_custom_call.1} parent=1 // pred_region
      _
    $region57: #{tpu_custom_call.1} parent=1 // pred_fallthru
      _
    // Predicated region
    $region58: #{tpu_custom_call.1} parent=1 // pred_check
      _
    $region59: #{tpu_custom_call.1} parent=1 // pred_check_branch
      %151 = sbr.rel (0) target = $region61
    $region60: #{tpu_custom_call.1} parent=1 // pred_region
      _
    $region61: #{tpu_custom_call.1} parent=1 // pred_fallthru
      _
    // Predicated region
    $region62: #{tpu_custom_call.1} parent=1 // pred_check
      _
    $region63: #{tpu_custom_call.1} parent=1 // pred_check_branch
      %153 = sbr.rel (0) target = $region65
    $region64: #{tpu_custom_call.1} parent=1 // pred_region
      %155 = dma.done [#allocation10], 128
    $region65: #{tpu_custom_call.1} parent=1 // pred_fallthru
      _
    // Predicated region
    $region66: #{tpu_custom_call.1} parent=1 // pred_check
      _
    $region67: #{tpu_custom_call.1} parent=1 // pred_check_branch
      %157 = sbr.rel (0) target = $region69
    $region68: #{tpu_custom_call.1} parent=1 // pred_region
      %159 = dma.done [#allocation12], 128
    $region69: #{tpu_custom_call.1} parent=1 // pred_fallthru
      _
    // Predicated region
    $region70: #{tpu_custom_call.1} parent=1 // pred_check
      _
    $region71: #{tpu_custom_call.1} parent=1 // pred_check_branch
      %161 = sbr.rel (0) target = $region73
    $region72: #{tpu_custom_call.1} parent=1 // pred_region
      %163 = dma.done [#allocation12], 1024
    $region73: #{tpu_custom_call.1} parent=1 // pred_fallthru
      _
    // Predicated region
    $region74: #{tpu_custom_call.1} parent=1 // pred_check
      _
    $region75: #{tpu_custom_call.1} parent=1 // pred_check_branch
      %165 = sbr.rel (0) target = $region77
    $region76: #{tpu_custom_call.1} parent=1 // pred_region
      %167 = dma.done [#allocation15], 1024
    $region77: #{tpu_custom_call.1} parent=1 // pred_fallthru
      _
    // Predicated region
    $region78: #{tpu_custom_call.1} parent=1 // pred_check
      _
    $region79: #{tpu_custom_call.1} parent=1 // pred_check_branch
      %169 = sbr.rel (0) target = $region81
    $region80: #{tpu_custom_call.1} parent=1 // pred_region
      %171 = dma.done [#allocation15], 512
    $region81: #{tpu_custom_call.1} parent=1 // pred_fallthru
      _
    // Predicated region
    $region82: #{tpu_custom_call.1} parent=1 // pred_check
      _
    $region83: #{tpu_custom_call.1} parent=1 // pred_check_branch
      %173 = sbr.rel (0) target = $region85
    $region84: #{tpu_custom_call.1} parent=1 // pred_region
      %175 = dma.done [#allocation18], 16
    $region85: #{tpu_custom_call.1} parent=1 // pred_fallthru
      _
    // Predicated region
    $region86: #{tpu_custom_call.1} parent=1 // pred_check
      _
    $region87: #{tpu_custom_call.1} parent=1 // pred_check_branch
      %177 = sbr.rel (0) target = $region89
    $region88: #{tpu_custom_call.1} parent=1 // pred_region
      %179 = dma.done [#allocation18], 16
    $region89: #{tpu_custom_call.1} parent=1 // pred_fallthru
      _
    // Predicated region
    $region90: #{tpu_custom_call.1} parent=1 // pred_check
      _
    $region91: #{tpu_custom_call.1} parent=1 // pred_check_branch
      %181 = sbr.rel (0) target = $region93
    $region92: #{tpu_custom_call.1} parent=1 // pred_region
      %183 = dma.done [#allocation21], 16
    $region93: #{tpu_custom_call.1} parent=1 // pred_fallthru
      _
    // Predicated region
    $region94: #{tpu_custom_call.1} parent=1 // pred_check
      _
    $region95: #{tpu_custom_call.1} parent=1 // pred_check_branch
      %185 = sbr.rel (0) target = $region97
    $region96: #{tpu_custom_call.1} parent=1 // pred_region
      %187 = dma.done [#allocation21], 256
    $region97: #{tpu_custom_call.1} parent=1 // pred_fallthru
      _
    %v189 = vld [vmem:[#allocation11] sm:$0xff]
    %v190 = vld [vmem:[#allocation13] sm:$0xff]
    %v191 = vld [vmem:[#allocation13 + $0x8] sm:$0xff]
    %v192 = vld [vmem:[#allocation13 + $0x10] sm:$0xff]
    %v193 = vld [vmem:[#allocation13 + $0x18] sm:$0xff]
    %v194 = vld [vmem:[#allocation13 + $0x20] sm:$0xff]
    %v195 = vld [vmem:[#allocation13 + $0x28] sm:$0xff]
    %v196 = vld [vmem:[#allocation13 + $0x30] sm:$0xff]
    %v197 = vld [vmem:[#allocation13 + $0x38] sm:$0xff]
    %v198 = vld [vmem:[#allocation14] sm:$0xff]
    %v199 = vld [vmem:[#allocation14 + $0x8] sm:$0xff]
    %v200 = vld [vmem:[#allocation14 + $0x10] sm:$0xff]
    %v201 = vld [vmem:[#allocation14 + $0x18] sm:$0xff]
    %v202 = vld [vmem:[#allocation14 + $0x20] sm:$0xff]
    %v203 = vld [vmem:[#allocation14 + $0x28] sm:$0xff]
    %v204 = vld [vmem:[#allocation14 + $0x30] sm:$0xff]
    %v205 = vld [vmem:[#allocation14 + $0x38] sm:$0xff]
    %v206 = vmul.f32 %v190, %v189
    %vm207 = vcmask 261120
    %v208 = vsel %vm207, %v206, 0.0
    %209 = vadd.xlane.f32.xlu0 %v208
    %v210 = vpop.xlane.xlu0 %209
    %v211 = vmul.f32 %v210, 0.2
    %v212 = vxor.u32 %v211, 2147483648
    %v213 = vmul.f32 %v212, 1.442695
    %v214 = vpow.pop %v213
    %v215 = vadd.f32 %v214, 1.0
    %v216 = vrcp.pop %v215
    %v217 = vmul.f32 %v215, %v216
    %v218 = vsub.f32 1.0, %v217
    %v219 = vmul.f32 %v216, %v218
    %v220 = vadd.f32 %v216, %v219
    %vm221 = vweird.f32 %v215
    %vm222 = vweird.f32 %v216
    %vm223 = vmor %vm221, %vm222
    %v224 = vsel %vm223, %v216, %v220
    %v225 = vand.u32 2147483647, %v215
    %vm226 = vcmp.eq.f32.partialorder %v225, 8.507059e+37
    %v227 = vand.u32 %v215, 2147483648
    %v228 = vor.u32 1.1754944e-38, %v227
    %v229 = vsel %vm226, %v228, %v224
    %v230 = vmul.f32 1.0, %v229
    %v231 = vmul.f32 %v230, %v190
    %v232 = vadd.f32 %v231, 0.0
    %v233 = vadd.f32 %v190, 0.0
    %v234 = vmul.f32 %v191, %v189
    %v235 = vsel %vm207, %v234, 0.0
    %236 = vadd.xlane.f32.xlu0 %v235
    %v237 = vpop.xlane.xlu0 %236
    %v238 = vmul.f32 %v237, 0.2
    %v239 = vxor.u32 %v238, 2147483648
    %v240 = vmul.f32 %v239, 1.442695
    %v241 = vpow.pop %v240
    %v242 = vadd.f32 %v241, 1.0
    %v243 = vrcp.pop %v242
    %v244 = vmul.f32 %v242, %v243
    %v245 = vsub.f32 1.0, %v244
    %v246 = vmul.f32 %v243, %v245
    %v247 = vadd.f32 %v243, %v246
    %vm248 = vweird.f32 %v242
    %vm249 = vweird.f32 %v243
    %vm250 = vmor %vm248, %vm249
    %v251 = vsel %vm250, %v243, %v247
    %v252 = vand.u32 2147483647, %v242
    %vm253 = vcmp.eq.f32.partialorder %v252, 8.507059e+37
    %v254 = vand.u32 %v242, 2147483648
    %v255 = vor.u32 1.1754944e-38, %v254
    %v256 = vsel %vm253, %v255, %v251
    %v257 = vmul.f32 1.0, %v256
    %v258 = vmul.f32 %v257, %v191
    %v259 = vadd.f32 %v232, %v258
    %v260 = vadd.f32 %v233, %v191
    %v261 = vmul.f32 %v192, %v189
    %v262 = vsel %vm207, %v261, 0.0
    %263 = vadd.xlane.f32.xlu0 %v262
    %v264 = vpop.xlane.xlu0 %263
    %v265 = vmul.f32 %v264, 0.2
    %v266 = vxor.u32 %v265, 2147483648
    %v267 = vmul.f32 %v266, 1.442695
    %v268 = vpow.pop %v267
    %v269 = vadd.f32 %v268, 1.0
    %v270 = vrcp.pop %v269
    %v271 = vmul.f32 %v269, %v270
    %v272 = vsub.f32 1.0, %v271
    %v273 = vmul.f32 %v270, %v272
    %v274 = vadd.f32 %v270, %v273
    %vm275 = vweird.f32 %v269
    %vm276 = vweird.f32 %v270
    %vm277 = vmor %vm275, %vm276
    %v278 = vsel %vm277, %v270, %v274
    %v279 = vand.u32 2147483647, %v269
    %vm280 = vcmp.eq.f32.partialorder %v279, 8.507059e+37
    %v281 = vand.u32 %v269, 2147483648
    %v282 = vor.u32 1.1754944e-38, %v281
    %v283 = vsel %vm280, %v282, %v278
    %v284 = vmul.f32 1.0, %v283
    %v285 = vmul.f32 %v284, %v192
    %v286 = vadd.f32 %v259, %v285
    %v287 = vadd.f32 %v260, %v192
    %v288 = vmul.f32 %v193, %v189
    %v289 = vsel %vm207, %v288, 0.0
    %290 = vadd.xlane.f32.xlu0 %v289
    %v291 = vpop.xlane.xlu0 %290
    %v292 = vmul.f32 %v291, 0.2
    %v293 = vxor.u32 %v292, 2147483648
    %v294 = vmul.f32 %v293, 1.442695
    %v295 = vpow.pop %v294
    %v296 = vadd.f32 %v295, 1.0
    %v297 = vrcp.pop %v296
    %v298 = vmul.f32 %v296, %v297
    %v299 = vsub.f32 1.0, %v298
    %v300 = vmul.f32 %v297, %v299
    %v301 = vadd.f32 %v297, %v300
    %vm302 = vweird.f32 %v296
    %vm303 = vweird.f32 %v297
    %vm304 = vmor %vm302, %vm303
    %v305 = vsel %vm304, %v297, %v301
    %v306 = vand.u32 2147483647, %v296
    %vm307 = vcmp.eq.f32.partialorder %v306, 8.507059e+37
    %v308 = vand.u32 %v296, 2147483648
    %v309 = vor.u32 1.1754944e-38, %v308
    %v310 = vsel %vm307, %v309, %v305
    %v311 = vmul.f32 1.0, %v310
    %v312 = vmul.f32 %v311, %v193
    %v313 = vadd.f32 %v286, %v312
    %v314 = vadd.f32 %v287, %v193
    %v315 = vmul.f32 %v194, %v189
    %v316 = vsel %vm207, %v315, 0.0
    %317 = vadd.xlane.f32.xlu0 %v316
    %v318 = vpop.xlane.xlu0 %317
    %v319 = vmul.f32 %v318, 0.2
    %v320 = vxor.u32 %v319, 2147483648
    %v321 = vmul.f32 %v320, 1.442695
    %v322 = vpow.pop %v321
    %v323 = vadd.f32 %v322, 1.0
    %v324 = vrcp.pop %v323
    %v325 = vmul.f32 %v323, %v324
    %v326 = vsub.f32 1.0, %v325
    %v327 = vmul.f32 %v324, %v326
    %v328 = vadd.f32 %v324, %v327
    %vm329 = vweird.f32 %v323
    %vm330 = vweird.f32 %v324
    %vm331 = vmor %vm329, %vm330
    %v332 = vsel %vm331, %v324, %v328
    %v333 = vand.u32 2147483647, %v323
    %vm334 = vcmp.eq.f32.partialorder %v333, 8.507059e+37
    %v335 = vand.u32 %v323, 2147483648
    %v336 = vor.u32 1.1754944e-38, %v335
    %v337 = vsel %vm334, %v336, %v332
    %v338 = vmul.f32 1.0, %v337
    %v339 = vmul.f32 %v338, %v194
    %v340 = vadd.f32 %v313, %v339
    %v341 = vadd.f32 %v314, %v194
    %v342 = vmul.f32 %v195, %v189
    %v343 = vsel %vm207, %v342, 0.0
    %344 = vadd.xlane.f32.xlu0 %v343
    %v345 = vpop.xlane.xlu0 %344
    %v346 = vmul.f32 %v345, 0.2
    %v347 = vxor.u32 %v346, 2147483648
    %v348 = vmul.f32 %v347, 1.442695
    %v349 = vpow.pop %v348
    %v350 = vadd.f32 %v349, 1.0
    %v351 = vrcp.pop %v350
    %v352 = vmul.f32 %v350, %v351
    %v353 = vsub.f32 1.0, %v352
    %v354 = vmul.f32 %v351, %v353
    %v355 = vadd.f32 %v351, %v354
    %vm356 = vweird.f32 %v350
    %vm357 = vweird.f32 %v351
    %vm358 = vmor %vm356, %vm357
    %v359 = vsel %vm358, %v351, %v355
    %v360 = vand.u32 2147483647, %v350
    %vm361 = vcmp.eq.f32.partialorder %v360, 8.507059e+37
    %v362 = vand.u32 %v350, 2147483648
    %v363 = vor.u32 1.1754944e-38, %v362
    %v364 = vsel %vm361, %v363, %v359
    %v365 = vmul.f32 1.0, %v364
    %v366 = vmul.f32 %v365, %v195
    %v367 = vadd.f32 %v340, %v366
    %v368 = vadd.f32 %v341, %v195
    %v369 = vmul.f32 %v196, %v189
    %v370 = vsel %vm207, %v369, 0.0
    %371 = vadd.xlane.f32.xlu0 %v370
    %v372 = vpop.xlane.xlu0 %371
    %v373 = vmul.f32 %v372, 0.2
    %v374 = vxor.u32 %v373, 2147483648
    %v375 = vmul.f32 %v374, 1.442695
    %v376 = vpow.pop %v375
    %v377 = vadd.f32 %v376, 1.0
    %v378 = vrcp.pop %v377
    %v379 = vmul.f32 %v377, %v378
    %v380 = vsub.f32 1.0, %v379
    %v381 = vmul.f32 %v378, %v380
    %v382 = vadd.f32 %v378, %v381
    %vm383 = vweird.f32 %v377
    %vm384 = vweird.f32 %v378
    %vm385 = vmor %vm383, %vm384
    %v386 = vsel %vm385, %v378, %v382
    %v387 = vand.u32 2147483647, %v377
    %vm388 = vcmp.eq.f32.partialorder %v387, 8.507059e+37
    %v389 = vand.u32 %v377, 2147483648
    %v390 = vor.u32 1.1754944e-38, %v389
    %v391 = vsel %vm388, %v390, %v386
    %v392 = vmul.f32 1.0, %v391
    %v393 = vmul.f32 %v392, %v196
    %v394 = vadd.f32 %v367, %v393
    %v395 = vadd.f32 %v368, %v196
    %v396 = vmul.f32 %v197, %v189
    %v397 = vsel %vm207, %v396, 0.0
    %398 = vadd.xlane.f32.xlu0 %v397
    %v399 = vpop.xlane.xlu0 %398
    %v400 = vmul.f32 %v399, 0.2
    %v401 = vxor.u32 %v400, 2147483648
    %v402 = vmul.f32 %v401, 1.442695
    %v403 = vpow.pop %v402
    %v404 = vadd.f32 %v403, 1.0
    %v405 = vrcp.pop %v404
    %v406 = vmul.f32 %v404, %v405
    %v407 = vsub.f32 1.0, %v406
    %v408 = vmul.f32 %v405, %v407
    %v409 = vadd.f32 %v405, %v408
    %vm410 = vweird.f32 %v404
    %vm411 = vweird.f32 %v405
    %vm412 = vmor %vm410, %vm411
    %v413 = vsel %vm412, %v405, %v409
    %v414 = vand.u32 2147483647, %v404
    %vm415 = vcmp.eq.f32.partialorder %v414, 8.507059e+37
    %v416 = vand.u32 %v404, 2147483648
    %v417 = vor.u32 1.1754944e-38, %v416
    %v418 = vsel %vm415, %v417, %v413
    %v419 = vmul.f32 1.0, %v418
    %v420 = vmul.f32 %v419, %v197
    %v421 = vadd.f32 %v394, %v420
    %v422 = vadd.f32 %v395, %v197
    %v423 = vmul.f32 %v198, %v190
    %v424 = vmul.f32 %v199, %v190
    %v425 = vmul.f32 %v200, %v190
    %v426 = vmul.f32 %v201, %v190
    %v427 = vmul.f32 %v202, %v190
    %v428 = vmul.f32 %v203, %v190
    %v429 = vmul.f32 %v204, %v190
    %v430 = vmul.f32 %v205, %v190
    %v431 = vsel %vm207, %v423, 0.0
    %432 = vadd.xlane.f32.xlu0 %v431
    %v433 = vpop.xlane.xlu0 %432
    %v434 = vsel %vm207, %v424, 0.0
    %435 = vadd.xlane.f32.xlu0 %v434
    %v436 = vpop.xlane.xlu0 %435
    %v437 = vsel %vm207, %v425, 0.0
    %438 = vadd.xlane.f32.xlu0 %v437
    %v439 = vpop.xlane.xlu0 %438
    %v440 = vsel %vm207, %v426, 0.0
    %441 = vadd.xlane.f32.xlu0 %v440
    %v442 = vpop.xlane.xlu0 %441
    %v443 = vsel %vm207, %v427, 0.0
    %444 = vadd.xlane.f32.xlu0 %v443
    %v445 = vpop.xlane.xlu0 %444
    %v446 = vsel %vm207, %v428, 0.0
    %447 = vadd.xlane.f32.xlu0 %v446
    %v448 = vpop.xlane.xlu0 %447
    %v449 = vsel %vm207, %v429, 0.0
    %450 = vadd.xlane.f32.xlu0 %v449
    %v451 = vpop.xlane.xlu0 %450
    %v452 = vsel %vm207, %v430, 0.0
    %453 = vadd.xlane.f32.xlu0 %v452
    %v454 = vpop.xlane.xlu0 %453
    %v455 = vmul.f32 %v433, 0.15
    %v456 = vmul.f32 %v436, 0.15
    %v457 = vmul.f32 %v439, 0.15
    %v458 = vmul.f32 %v442, 0.15
    %v459 = vmul.f32 %v445, 0.15
    %v460 = vmul.f32 %v448, 0.15
    %v461 = vmul.f32 %v451, 0.15
    %v462 = vmul.f32 %v454, 0.15
    %v463 = vmul.f32 %v198, %v191
    %v464 = vmul.f32 %v199, %v191
    %v465 = vmul.f32 %v200, %v191
    %v466 = vmul.f32 %v201, %v191
    %v467 = vmul.f32 %v202, %v191
    %v468 = vmul.f32 %v203, %v191
    %v469 = vmul.f32 %v204, %v191
    %v470 = vmul.f32 %v205, %v191
    %v471 = vsel %vm207, %v463, 0.0
    %472 = vadd.xlane.f32.xlu0 %v471
    %v473 = vpop.xlane.xlu0 %472
    %v474 = vsel %vm207, %v464, 0.0
    %475 = vadd.xlane.f32.xlu0 %v474
    %v476 = vpop.xlane.xlu0 %475
    %v477 = vsel %vm207, %v465, 0.0
    %478 = vadd.xlane.f32.xlu0 %v477
    %v479 = vpop.xlane.xlu0 %478
    %v480 = vsel %vm207, %v466, 0.0
    %481 = vadd.xlane.f32.xlu0 %v480
    %v482 = vpop.xlane.xlu0 %481
    %v483 = vsel %vm207, %v467, 0.0
    %484 = vadd.xlane.f32.xlu0 %v483
    %v485 = vpop.xlane.xlu0 %484
    %v486 = vsel %vm207, %v468, 0.0
    %487 = vadd.xlane.f32.xlu0 %v486
    %v488 = vpop.xlane.xlu0 %487
    %v489 = vsel %vm207, %v469, 0.0
    %490 = vadd.xlane.f32.xlu0 %v489
    %v491 = vpop.xlane.xlu0 %490
    %v492 = vsel %vm207, %v470, 0.0
    %493 = vadd.xlane.f32.xlu0 %v492
    %v494 = vpop.xlane.xlu0 %493
    %v495 = vmul.f32 %v473, 0.15
    %v496 = vmul.f32 %v476, 0.15
    %v497 = vmul.f32 %v479, 0.15
    %v498 = vmul.f32 %v482, 0.15
    %v499 = vmul.f32 %v485, 0.15
    %v500 = vmul.f32 %v488, 0.15
    %v501 = vmul.f32 %v491, 0.15
    %v502 = vmul.f32 %v494, 0.15
    %v503 = vmul.f32 %v198, %v192
    %v504 = vmul.f32 %v199, %v192
    %v505 = vmul.f32 %v200, %v192
    %v506 = vmul.f32 %v201, %v192
    %v507 = vmul.f32 %v202, %v192
    %v508 = vmul.f32 %v203, %v192
    %v509 = vmul.f32 %v204, %v192
    %v510 = vmul.f32 %v205, %v192
    %v511 = vsel %vm207, %v503, 0.0
    %512 = vadd.xlane.f32.xlu0 %v511
    %v513 = vpop.xlane.xlu0 %512
    %v514 = vsel %vm207, %v504, 0.0
    %515 = vadd.xlane.f32.xlu0 %v514
    %v516 = vpop.xlane.xlu0 %515
    %v517 = vsel %vm207, %v505, 0.0
    %518 = vadd.xlane.f32.xlu0 %v517
    %v519 = vpop.xlane.xlu0 %518
    %v520 = vsel %vm207, %v506, 0.0
    %521 = vadd.xlane.f32.xlu0 %v520
    %v522 = vpop.xlane.xlu0 %521
    %v523 = vsel %vm207, %v507, 0.0
    %524 = vadd.xlane.f32.xlu0 %v523
    %v525 = vpop.xlane.xlu0 %524
    %v526 = vsel %vm207, %v508, 0.0
    %527 = vadd.xlane.f32.xlu0 %v526
    %v528 = vpop.xlane.xlu0 %527
    %v529 = vsel %vm207, %v509, 0.0
    %530 = vadd.xlane.f32.xlu0 %v529
    %v531 = vpop.xlane.xlu0 %530
    %v532 = vsel %vm207, %v510, 0.0
    %533 = vadd.xlane.f32.xlu0 %v532
    %v534 = vpop.xlane.xlu0 %533
    %v535 = vmul.f32 %v513, 0.15
    %v536 = vmul.f32 %v516, 0.15
    %v537 = vmul.f32 %v519, 0.15
    %v538 = vmul.f32 %v522, 0.15
    %v539 = vmul.f32 %v525, 0.15
    %v540 = vmul.f32 %v528, 0.15
    %v541 = vmul.f32 %v531, 0.15
    %v542 = vmul.f32 %v534, 0.15
    %v543 = vmul.f32 %v198, %v193
    %v544 = vmul.f32 %v199, %v193
    %v545 = vmul.f32 %v200, %v193
    %v546 = vmul.f32 %v201, %v193
    %v547 = vmul.f32 %v202, %v193
    %v548 = vmul.f32 %v203, %v193
    %v549 = vmul.f32 %v204, %v193
    %v550 = vmul.f32 %v205, %v193
    %v551 = vsel %vm207, %v543, 0.0
    %552 = vadd.xlane.f32.xlu0 %v551
    %v553 = vpop.xlane.xlu0 %552
    %v554 = vsel %vm207, %v544, 0.0
    %555 = vadd.xlane.f32.xlu0 %v554
    %v556 = vpop.xlane.xlu0 %555
    %v557 = vsel %vm207, %v545, 0.0
    %558 = vadd.xlane.f32.xlu0 %v557
    %v559 = vpop.xlane.xlu0 %558
    %v560 = vsel %vm207, %v546, 0.0
    %561 = vadd.xlane.f32.xlu0 %v560
    %v562 = vpop.xlane.xlu0 %561
    %v563 = vsel %vm207, %v547, 0.0
    %564 = vadd.xlane.f32.xlu0 %v563
    %v565 = vpop.xlane.xlu0 %564
    %v566 = vsel %vm207, %v548, 0.0
    %567 = vadd.xlane.f32.xlu0 %v566
    %v568 = vpop.xlane.xlu0 %567
    %v569 = vsel %vm207, %v549, 0.0
    %570 = vadd.xlane.f32.xlu0 %v569
    %v571 = vpop.xlane.xlu0 %570
    %v572 = vsel %vm207, %v550, 0.0
    %573 = vadd.xlane.f32.xlu0 %v572
    %v574 = vpop.xlane.xlu0 %573
    %v575 = vmul.f32 %v553, 0.15
    %v576 = vmul.f32 %v556, 0.15
    %v577 = vmul.f32 %v559, 0.15
    %v578 = vmul.f32 %v562, 0.15
    %v579 = vmul.f32 %v565, 0.15
    %v580 = vmul.f32 %v568, 0.15
    %v581 = vmul.f32 %v571, 0.15
    %v582 = vmul.f32 %v574, 0.15
    %v583 = vmul.f32 %v198, %v194
    %v584 = vmul.f32 %v199, %v194
    %v585 = vmul.f32 %v200, %v194
    %v586 = vmul.f32 %v201, %v194
    %v587 = vmul.f32 %v202, %v194
    %v588 = vmul.f32 %v203, %v194
    %v589 = vmul.f32 %v204, %v194
    %v590 = vmul.f32 %v205, %v194
    %v591 = vsel %vm207, %v583, 0.0
    %592 = vadd.xlane.f32.xlu0 %v591
    %v593 = vpop.xlane.xlu0 %592
    %v594 = vsel %vm207, %v584, 0.0
    %595 = vadd.xlane.f32.xlu0 %v594
    %v596 = vpop.xlane.xlu0 %595
    %v597 = vsel %vm207, %v585, 0.0
    %598 = vadd.xlane.f32.xlu0 %v597
    %v599 = vpop.xlane.xlu0 %598
    %v600 = vsel %vm207, %v586, 0.0
    %601 = vadd.xlane.f32.xlu0 %v600
    %v602 = vpop.xlane.xlu0 %601
    %v603 = vsel %vm207, %v587, 0.0
    %604 = vadd.xlane.f32.xlu0 %v603
    %v605 = vpop.xlane.xlu0 %604
    %v606 = vsel %vm207, %v588, 0.0
    %607 = vadd.xlane.f32.xlu0 %v606
    %v608 = vpop.xlane.xlu0 %607
    %v609 = vsel %vm207, %v589, 0.0
    %610 = vadd.xlane.f32.xlu0 %v609
    %v611 = vpop.xlane.xlu0 %610
    %v612 = vsel %vm207, %v590, 0.0
    %613 = vadd.xlane.f32.xlu0 %v612
    %v614 = vpop.xlane.xlu0 %613
    %v615 = vmul.f32 %v593, 0.15
    %v616 = vmul.f32 %v596, 0.15
    %v617 = vmul.f32 %v599, 0.15
    %v618 = vmul.f32 %v602, 0.15
    %v619 = vmul.f32 %v605, 0.15
    %v620 = vmul.f32 %v608, 0.15
    %v621 = vmul.f32 %v611, 0.15
    %v622 = vmul.f32 %v614, 0.15
    %v623 = vmul.f32 %v198, %v195
    %v624 = vmul.f32 %v199, %v195
    %v625 = vmul.f32 %v200, %v195
    %v626 = vmul.f32 %v201, %v195
    %v627 = vmul.f32 %v202, %v195
    %v628 = vmul.f32 %v203, %v195
    %v629 = vmul.f32 %v204, %v195
    %v630 = vmul.f32 %v205, %v195
    %v631 = vsel %vm207, %v623, 0.0
    %632 = vadd.xlane.f32.xlu0 %v631
    %v633 = vpop.xlane.xlu0 %632
    %v634 = vsel %vm207, %v624, 0.0
    %635 = vadd.xlane.f32.xlu0 %v634
    %v636 = vpop.xlane.xlu0 %635
    %v637 = vsel %vm207, %v625, 0.0
    %638 = vadd.xlane.f32.xlu0 %v637
    %v639 = vpop.xlane.xlu0 %638
    %v640 = vsel %vm207, %v626, 0.0
    %641 = vadd.xlane.f32.xlu0 %v640
    %v642 = vpop.xlane.xlu0 %641
    %v643 = vsel %vm207, %v627, 0.0
    %644 = vadd.xlane.f32.xlu0 %v643
    %v645 = vpop.xlane.xlu0 %644
    %v646 = vsel %vm207, %v628, 0.0
    %647 = vadd.xlane.f32.xlu0 %v646
    %v648 = vpop.xlane.xlu0 %647
    %v649 = vsel %vm207, %v629, 0.0
    %650 = vadd.xlane.f32.xlu0 %v649
    %v651 = vpop.xlane.xlu0 %650
    %v652 = vsel %vm207, %v630, 0.0
    %653 = vadd.xlane.f32.xlu0 %v652
    %v654 = vpop.xlane.xlu0 %653
    %v655 = vmul.f32 %v633, 0.15
    %v656 = vmul.f32 %v636, 0.15
    %v657 = vmul.f32 %v639, 0.15
    %v658 = vmul.f32 %v642, 0.15
    %v659 = vmul.f32 %v645, 0.15
    %v660 = vmul.f32 %v648, 0.15
    %v661 = vmul.f32 %v651, 0.15
    %v662 = vmul.f32 %v654, 0.15
    %v663 = vmul.f32 %v198, %v196
    %v664 = vmul.f32 %v199, %v196
    %v665 = vmul.f32 %v200, %v196
    %v666 = vmul.f32 %v201, %v196
    %v667 = vmul.f32 %v202, %v196
    %v668 = vmul.f32 %v203, %v196
    %v669 = vmul.f32 %v204, %v196
    %v670 = vmul.f32 %v205, %v196
    %v671 = vsel %vm207, %v663, 0.0
    %672 = vadd.xlane.f32.xlu0 %v671
    %v673 = vpop.xlane.xlu0 %672
    %v674 = vsel %vm207, %v664, 0.0
    %675 = vadd.xlane.f32.xlu0 %v674
    %v676 = vpop.xlane.xlu0 %675
    %v677 = vsel %vm207, %v665, 0.0
    %678 = vadd.xlane.f32.xlu0 %v677
    %v679 = vpop.xlane.xlu0 %678
    %v680 = vsel %vm207, %v666, 0.0
    %681 = vadd.xlane.f32.xlu0 %v680
    %v682 = vpop.xlane.xlu0 %681
    %v683 = vsel %vm207, %v667, 0.0
    %684 = vadd.xlane.f32.xlu0 %v683
    %v685 = vpop.xlane.xlu0 %684
    %v686 = vsel %vm207, %v668, 0.0
    %687 = vadd.xlane.f32.xlu0 %v686
    %v688 = vpop.xlane.xlu0 %687
    %v689 = vsel %vm207, %v669, 0.0
    %690 = vadd.xlane.f32.xlu0 %v689
    %v691 = vpop.xlane.xlu0 %690
    %v692 = vsel %vm207, %v670, 0.0
    %693 = vadd.xlane.f32.xlu0 %v692
    %v694 = vpop.xlane.xlu0 %693
    %v695 = vmul.f32 %v673, 0.15
    %v696 = vmul.f32 %v676, 0.15
    %v697 = vmul.f32 %v679, 0.15
    %v698 = vmul.f32 %v682, 0.15
    %v699 = vmul.f32 %v685, 0.15
    %v700 = vmul.f32 %v688, 0.15
    %v701 = vmul.f32 %v691, 0.15
    %v702 = vmul.f32 %v694, 0.15
    %v703 = vmul.f32 %v198, %v197
    %v704 = vmul.f32 %v199, %v197
    %v705 = vmul.f32 %v200, %v197
    %v706 = vmul.f32 %v201, %v197
    %v707 = vmul.f32 %v202, %v197
    %v708 = vmul.f32 %v203, %v197
    %v709 = vmul.f32 %v204, %v197
    %v710 = vmul.f32 %v205, %v197
    %v711 = vsel %vm207, %v703, 0.0
    %712 = vadd.xlane.f32.xlu0 %v711
    %v713 = vpop.xlane.xlu0 %712
    %v714 = vsel %vm207, %v704, 0.0
    %715 = vadd.xlane.f32.xlu0 %v714
    %v716 = vpop.xlane.xlu0 %715
    %v717 = vsel %vm207, %v705, 0.0
    %718 = vadd.xlane.f32.xlu0 %v717
    %v719 = vpop.xlane.xlu0 %718
    %v720 = vsel %vm207, %v706, 0.0
    %721 = vadd.xlane.f32.xlu0 %v720
    %v722 = vpop.xlane.xlu0 %721
    %v723 = vsel %vm207, %v707, 0.0
    %724 = vadd.xlane.f32.xlu0 %v723
    %v725 = vpop.xlane.xlu0 %724
    %v726 = vsel %vm207, %v708, 0.0
    %727 = vadd.xlane.f32.xlu0 %v726
    %v728 = vpop.xlane.xlu0 %727
    %v729 = vsel %vm207, %v709, 0.0
    %730 = vadd.xlane.f32.xlu0 %v729
    %v731 = vpop.xlane.xlu0 %730
    %v732 = vsel %vm207, %v710, 0.0
    %733 = vadd.xlane.f32.xlu0 %v732
    %v734 = vpop.xlane.xlu0 %733
    %v735 = vmul.f32 %v713, 0.15
    %v736 = vmul.f32 %v716, 0.15
    %v737 = vmul.f32 %v719, 0.15
    %v738 = vmul.f32 %v722, 0.15
    %v739 = vmul.f32 %v725, 0.15
    %v740 = vmul.f32 %v728, 0.15
    %v741 = vmul.f32 %v731, 0.15
    %v742 = vmul.f32 %v734, 0.15
    %v743 = vmax.f32 %v455, %v495
    %v744 = vmax.f32 %v456, %v496
    %v745 = vmax.f32 %v457, %v497
    %v746 = vmax.f32 %v458, %v498
    %v747 = vmax.f32 %v459, %v499
    %v748 = vmax.f32 %v460, %v500
    %v749 = vmax.f32 %v461, %v501
    %v750 = vmax.f32 %v462, %v502
    %v751 = vmax.f32 %v743, %v535
    %v752 = vmax.f32 %v744, %v536
    %v753 = vmax.f32 %v745, %v537
    %v754 = vmax.f32 %v746, %v538
    %v755 = vmax.f32 %v747, %v539
    %v756 = vmax.f32 %v748, %v540
    %v757 = vmax.f32 %v749, %v541
    %v758 = vmax.f32 %v750, %v542
    %v759 = vmax.f32 %v751, %v575
    %v760 = vmax.f32 %v752, %v576
    %v761 = vmax.f32 %v753, %v577
    %v762 = vmax.f32 %v754, %v578
    %v763 = vmax.f32 %v755, %v579
    %v764 = vmax.f32 %v756, %v580
    %v765 = vmax.f32 %v757, %v581
    %v766 = vmax.f32 %v758, %v582
    %v767 = vmax.f32 %v759, %v615
    %v768 = vmax.f32 %v760, %v616
    %v769 = vmax.f32 %v761, %v617
    %v770 = vmax.f32 %v762, %v618
    %v771 = vmax.f32 %v763, %v619
    %v772 = vmax.f32 %v764, %v620
    %v773 = vmax.f32 %v765, %v621
    %v774 = vmax.f32 %v766, %v622
    %v775 = vmax.f32 %v767, %v655
    %v776 = vmax.f32 %v768, %v656
    %v777 = vmax.f32 %v769, %v657
    %v778 = vmax.f32 %v770, %v658
    %v779 = vmax.f32 %v771, %v659
    %v780 = vmax.f32 %v772, %v660
    %v781 = vmax.f32 %v773, %v661
    %v782 = vmax.f32 %v774, %v662
    %v783 = vmax.f32 %v775, %v695
    %v784 = vmax.f32 %v776, %v696
    %v785 = vmax.f32 %v777, %v697
    %v786 = vmax.f32 %v778, %v698
    %v787 = vmax.f32 %v779, %v699
    %v788 = vmax.f32 %v780, %v700
    %v789 = vmax.f32 %v781, %v701
    %v790 = vmax.f32 %v782, %v702
    %v791 = vmax.f32 %v783, %v735
    %v792 = vmax.f32 %v784, %v736
    %v793 = vmax.f32 %v785, %v737
    %v794 = vmax.f32 %v786, %v738
    %v795 = vmax.f32 %v787, %v739
    %v796 = vmax.f32 %v788, %v740
    %v797 = vmax.f32 %v789, %v741
    %v798 = vmax.f32 %v790, %v742
    %v799 = vsub.f32 %v455, %v791
    %v800 = vsub.f32 %v456, %v792
    %v801 = vsub.f32 %v457, %v793
    %v802 = vsub.f32 %v458, %v794
    %v803 = vsub.f32 %v459, %v795
    %v804 = vsub.f32 %v460, %v796
    %v805 = vsub.f32 %v461, %v797
    %v806 = vsub.f32 %v462, %v798
    %v807 = vmul.f32 %v799, 1.442695
    %v808 = vpow.pop %v807
    %v809 = vmul.f32 %v800, 1.442695
    %v810 = vpow.pop %v809
    %v811 = vmul.f32 %v801, 1.442695
    %v812 = vpow.pop %v811
    %v813 = vmul.f32 %v802, 1.442695
    %v814 = vpow.pop %v813
    %v815 = vmul.f32 %v803, 1.442695
    %v816 = vpow.pop %v815
    %v817 = vmul.f32 %v804, 1.442695
    %v818 = vpow.pop %v817
    %v819 = vmul.f32 %v805, 1.442695
    %v820 = vpow.pop %v819
    %v821 = vmul.f32 %v806, 1.442695
    %v822 = vpow.pop %v821
    %v823 = vsub.f32 %v495, %v791
    %v824 = vsub.f32 %v496, %v792
    %v825 = vsub.f32 %v497, %v793
    %v826 = vsub.f32 %v498, %v794
    %v827 = vsub.f32 %v499, %v795
    %v828 = vsub.f32 %v500, %v796
    %v829 = vsub.f32 %v501, %v797
    %v830 = vsub.f32 %v502, %v798
    %v831 = vmul.f32 %v823, 1.442695
    %v832 = vpow.pop %v831
    %v833 = vmul.f32 %v824, 1.442695
    %v834 = vpow.pop %v833
    %v835 = vmul.f32 %v825, 1.442695
    %v836 = vpow.pop %v835
    %v837 = vmul.f32 %v826, 1.442695
    %v838 = vpow.pop %v837
    %v839 = vmul.f32 %v827, 1.442695
    %v840 = vpow.pop %v839
    %v841 = vmul.f32 %v828, 1.442695
    %v842 = vpow.pop %v841
    %v843 = vmul.f32 %v829, 1.442695
    %v844 = vpow.pop %v843
    %v845 = vmul.f32 %v830, 1.442695
    %v846 = vpow.pop %v845
    %v847 = vsub.f32 %v535, %v791
    %v848 = vsub.f32 %v536, %v792
    %v849 = vsub.f32 %v537, %v793
    %v850 = vsub.f32 %v538, %v794
    %v851 = vsub.f32 %v539, %v795
    %v852 = vsub.f32 %v540, %v796
    %v853 = vsub.f32 %v541, %v797
    %v854 = vsub.f32 %v542, %v798
    %v855 = vmul.f32 %v847, 1.442695
    %v856 = vpow.pop %v855
    %v857 = vmul.f32 %v848, 1.442695
    %v858 = vpow.pop %v857
    %v859 = vmul.f32 %v849, 1.442695
    %v860 = vpow.pop %v859
    %v861 = vmul.f32 %v850, 1.442695
    %v862 = vpow.pop %v861
    %v863 = vmul.f32 %v851, 1.442695
    %v864 = vpow.pop %v863
    %v865 = vmul.f32 %v852, 1.442695
    %v866 = vpow.pop %v865
    %v867 = vmul.f32 %v853, 1.442695
    %v868 = vpow.pop %v867
    %v869 = vmul.f32 %v854, 1.442695
    %v870 = vpow.pop %v869
    %v871 = vsub.f32 %v575, %v791
    %v872 = vsub.f32 %v576, %v792
    %v873 = vsub.f32 %v577, %v793
    %v874 = vsub.f32 %v578, %v794
    %v875 = vsub.f32 %v579, %v795
    %v876 = vsub.f32 %v580, %v796
    %v877 = vsub.f32 %v581, %v797
    %v878 = vsub.f32 %v582, %v798
    %v879 = vmul.f32 %v871, 1.442695
    %v880 = vpow.pop %v879
    %v881 = vmul.f32 %v872, 1.442695
    %v882 = vpow.pop %v881
    %v883 = vmul.f32 %v873, 1.442695
    %v884 = vpow.pop %v883
    %v885 = vmul.f32 %v874, 1.442695
    %v886 = vpow.pop %v885
    %v887 = vmul.f32 %v875, 1.442695
    %v888 = vpow.pop %v887
    %v889 = vmul.f32 %v876, 1.442695
    %v890 = vpow.pop %v889
    %v891 = vmul.f32 %v877, 1.442695
    %v892 = vpow.pop %v891
    %v893 = vmul.f32 %v878, 1.442695
    %v894 = vpow.pop %v893
    %v895 = vsub.f32 %v615, %v791
    %v896 = vsub.f32 %v616, %v792
    %v897 = vsub.f32 %v617, %v793
    %v898 = vsub.f32 %v618, %v794
    %v899 = vsub.f32 %v619, %v795
    %v900 = vsub.f32 %v620, %v796
    %v901 = vsub.f32 %v621, %v797
    %v902 = vsub.f32 %v622, %v798
    %v903 = vmul.f32 %v895, 1.442695
    %v904 = vpow.pop %v903
    %v905 = vmul.f32 %v896, 1.442695
    %v906 = vpow.pop %v905
    %v907 = vmul.f32 %v897, 1.442695
    %v908 = vpow.pop %v907
    %v909 = vmul.f32 %v898, 1.442695
    %v910 = vpow.pop %v909
    %v911 = vmul.f32 %v899, 1.442695
    %v912 = vpow.pop %v911
    %v913 = vmul.f32 %v900, 1.442695
    %v914 = vpow.pop %v913
    %v915 = vmul.f32 %v901, 1.442695
    %v916 = vpow.pop %v915
    %v917 = vmul.f32 %v902, 1.442695
    %v918 = vpow.pop %v917
    %v919 = vsub.f32 %v655, %v791
    %v920 = vsub.f32 %v656, %v792
    %v921 = vsub.f32 %v657, %v793
    %v922 = vsub.f32 %v658, %v794
    %v923 = vsub.f32 %v659, %v795
    %v924 = vsub.f32 %v660, %v796
    %v925 = vsub.f32 %v661, %v797
    %v926 = vsub.f32 %v662, %v798
    %v927 = vmul.f32 %v919, 1.442695
    %v928 = vpow.pop %v927
    %v929 = vmul.f32 %v920, 1.442695
    %v930 = vpow.pop %v929
    %v931 = vmul.f32 %v921, 1.442695
    %v932 = vpow.pop %v931
    %v933 = vmul.f32 %v922, 1.442695
    %v934 = vpow.pop %v933
    %v935 = vmul.f32 %v923, 1.442695
    %v936 = vpow.pop %v935
    %v937 = vmul.f32 %v924, 1.442695
    %v938 = vpow.pop %v937
    %v939 = vmul.f32 %v925, 1.442695
    %v940 = vpow.pop %v939
    %v941 = vmul.f32 %v926, 1.442695
    %v942 = vpow.pop %v941
    %v943 = vsub.f32 %v695, %v791
    %v944 = vsub.f32 %v696, %v792
    %v945 = vsub.f32 %v697, %v793
    %v946 = vsub.f32 %v698, %v794
    %v947 = vsub.f32 %v699, %v795
    %v948 = vsub.f32 %v700, %v796
    %v949 = vsub.f32 %v701, %v797
    %v950 = vsub.f32 %v702, %v798
    %v951 = vmul.f32 %v943, 1.442695
    %v952 = vpow.pop %v951
    %v953 = vmul.f32 %v944, 1.442695
    %v954 = vpow.pop %v953
    %v955 = vmul.f32 %v945, 1.442695
    %v956 = vpow.pop %v955
    %v957 = vmul.f32 %v946, 1.442695
    %v958 = vpow.pop %v957
    %v959 = vmul.f32 %v947, 1.442695
    %v960 = vpow.pop %v959
    %v961 = vmul.f32 %v948, 1.442695
    %v962 = vpow.pop %v961
    %v963 = vmul.f32 %v949, 1.442695
    %v964 = vpow.pop %v963
    %v965 = vmul.f32 %v950, 1.442695
    %v966 = vpow.pop %v965
    %v967 = vsub.f32 %v735, %v791
    %v968 = vsub.f32 %v736, %v792
    %v969 = vsub.f32 %v737, %v793
    %v970 = vsub.f32 %v738, %v794
    %v971 = vsub.f32 %v739, %v795
    %v972 = vsub.f32 %v740, %v796
    %v973 = vsub.f32 %v741, %v797
    %v974 = vsub.f32 %v742, %v798
    %v975 = vmul.f32 %v967, 1.442695
    %v976 = vpow.pop %v975
    %v977 = vmul.f32 %v968, 1.442695
    %v978 = vpow.pop %v977
    %v979 = vmul.f32 %v969, 1.442695
    %v980 = vpow.pop %v979
    %v981 = vmul.f32 %v970, 1.442695
    %v982 = vpow.pop %v981
    %v983 = vmul.f32 %v971, 1.442695
    %v984 = vpow.pop %v983
    %v985 = vmul.f32 %v972, 1.442695
    %v986 = vpow.pop %v985
    %v987 = vmul.f32 %v973, 1.442695
    %v988 = vpow.pop %v987
    %v989 = vmul.f32 %v974, 1.442695
    %v990 = vpow.pop %v989
    %v991 = vadd.f32 %v808, %v832
    %v992 = vadd.f32 %v810, %v834
    %v993 = vadd.f32 %v812, %v836
    %v994 = vadd.f32 %v814, %v838
    %v995 = vadd.f32 %v816, %v840
    %v996 = vadd.f32 %v818, %v842
    %v997 = vadd.f32 %v820, %v844
    %v998 = vadd.f32 %v822, %v846
    %v999 = vadd.f32 %v991, %v856
    %v1000 = vadd.f32 %v992, %v858
    %v1001 = vadd.f32 %v993, %v860
    %v1002 = vadd.f32 %v994, %v862
    %v1003 = vadd.f32 %v995, %v864
    %v1004 = vadd.f32 %v996, %v866
    %v1005 = vadd.f32 %v997, %v868
    %v1006 = vadd.f32 %v998, %v870
    %v1007 = vadd.f32 %v999, %v880
    %v1008 = vadd.f32 %v1000, %v882
    %v1009 = vadd.f32 %v1001, %v884
    %v1010 = vadd.f32 %v1002, %v886
    %v1011 = vadd.f32 %v1003, %v888
    %v1012 = vadd.f32 %v1004, %v890
    %v1013 = vadd.f32 %v1005, %v892
    %v1014 = vadd.f32 %v1006, %v894
    %v1015 = vadd.f32 %v1007, %v904
    %v1016 = vadd.f32 %v1008, %v906
    %v1017 = vadd.f32 %v1009, %v908
    %v1018 = vadd.f32 %v1010, %v910
    %v1019 = vadd.f32 %v1011, %v912
    %v1020 = vadd.f32 %v1012, %v914
    %v1021 = vadd.f32 %v1013, %v916
    %v1022 = vadd.f32 %v1014, %v918
    %v1023 = vadd.f32 %v1015, %v928
    %v1024 = vadd.f32 %v1016, %v930
    %v1025 = vadd.f32 %v1017, %v932
    %v1026 = vadd.f32 %v1018, %v934
    %v1027 = vadd.f32 %v1019, %v936
    %v1028 = vadd.f32 %v1020, %v938
    %v1029 = vadd.f32 %v1021, %v940
    %v1030 = vadd.f32 %v1022, %v942
    %v1031 = vadd.f32 %v1023, %v952
    %v1032 = vadd.f32 %v1024, %v954
    %v1033 = vadd.f32 %v1025, %v956
    %v1034 = vadd.f32 %v1026, %v958
    %v1035 = vadd.f32 %v1027, %v960
    %v1036 = vadd.f32 %v1028, %v962
    %v1037 = vadd.f32 %v1029, %v964
    %v1038 = vadd.f32 %v1030, %v966
    %v1039 = vadd.f32 %v1031, %v976
    %v1040 = vadd.f32 %v1032, %v978
    %v1041 = vadd.f32 %v1033, %v980
    %v1042 = vadd.f32 %v1034, %v982
    %v1043 = vadd.f32 %v1035, %v984
    %v1044 = vadd.f32 %v1036, %v986
    %v1045 = vadd.f32 %v1037, %v988
    %v1046 = vadd.f32 %v1038, %v990
    %v1047 = vrcp.pop %v1039
    %v1048 = vrcp.pop %v1040
    %v1049 = vrcp.pop %v1041
    %v1050 = vrcp.pop %v1042
    %v1051 = vrcp.pop %v1043
    %v1052 = vrcp.pop %v1044
    %v1053 = vrcp.pop %v1045
    %v1054 = vrcp.pop %v1046
    %v1055 = vmul.f32 %v808, %v1047
    %v1056 = vmul.f32 %v810, %v1048
    %v1057 = vmul.f32 %v812, %v1049
    %v1058 = vmul.f32 %v814, %v1050
    %v1059 = vmul.f32 %v816, %v1051
    %v1060 = vmul.f32 %v818, %v1052
    %v1061 = vmul.f32 %v820, %v1053
    %v1062 = vmul.f32 %v822, %v1054
    %v1063 = vmul.f32 %v1055, %v190
    %v1064 = vmul.f32 %v1056, %v190
    %v1065 = vmul.f32 %v1057, %v190
    %v1066 = vmul.f32 %v1058, %v190
    %v1067 = vmul.f32 %v1059, %v190
    %v1068 = vmul.f32 %v1060, %v190
    %v1069 = vmul.f32 %v1061, %v190
    %v1070 = vmul.f32 %v1062, %v190
    %v1071 = vmul.f32 %v832, %v1047
    %v1072 = vmul.f32 %v834, %v1048
    %v1073 = vmul.f32 %v836, %v1049
    %v1074 = vmul.f32 %v838, %v1050
    %v1075 = vmul.f32 %v840, %v1051
    %v1076 = vmul.f32 %v842, %v1052
    %v1077 = vmul.f32 %v844, %v1053
    %v1078 = vmul.f32 %v846, %v1054
    %v1079 = vmul.f32 %v1071, %v191
    %v1080 = vmul.f32 %v1072, %v191
    %v1081 = vmul.f32 %v1073, %v191
    %v1082 = vmul.f32 %v1074, %v191
    %v1083 = vmul.f32 %v1075, %v191
    %v1084 = vmul.f32 %v1076, %v191
    %v1085 = vmul.f32 %v1077, %v191
    %v1086 = vmul.f32 %v1078, %v191
    %v1087 = vadd.f32 %v1063, %v1079
    %v1088 = vadd.f32 %v1064, %v1080
    %v1089 = vadd.f32 %v1065, %v1081
    %v1090 = vadd.f32 %v1066, %v1082
    %v1091 = vadd.f32 %v1067, %v1083
    %v1092 = vadd.f32 %v1068, %v1084
    %v1093 = vadd.f32 %v1069, %v1085
    %v1094 = vadd.f32 %v1070, %v1086
    %v1095 = vmul.f32 %v856, %v1047
    %v1096 = vmul.f32 %v858, %v1048
    %v1097 = vmul.f32 %v860, %v1049
    %v1098 = vmul.f32 %v862, %v1050
    %v1099 = vmul.f32 %v864, %v1051
    %v1100 = vmul.f32 %v866, %v1052
    %v1101 = vmul.f32 %v868, %v1053
    %v1102 = vmul.f32 %v870, %v1054
    %v1103 = vmul.f32 %v1095, %v192
    %v1104 = vmul.f32 %v1096, %v192
    %v1105 = vmul.f32 %v1097, %v192
    %v1106 = vmul.f32 %v1098, %v192
    %v1107 = vmul.f32 %v1099, %v192
    %v1108 = vmul.f32 %v1100, %v192
    %v1109 = vmul.f32 %v1101, %v192
    %v1110 = vmul.f32 %v1102, %v192
    %v1111 = vadd.f32 %v1087, %v1103
    %v1112 = vadd.f32 %v1088, %v1104
    %v1113 = vadd.f32 %v1089, %v1105
    %v1114 = vadd.f32 %v1090, %v1106
    %v1115 = vadd.f32 %v1091, %v1107
    %v1116 = vadd.f32 %v1092, %v1108
    %v1117 = vadd.f32 %v1093, %v1109
    %v1118 = vadd.f32 %v1094, %v1110
    %v1119 = vmul.f32 %v880, %v1047
    %v1120 = vmul.f32 %v882, %v1048
    %v1121 = vmul.f32 %v884, %v1049
    %v1122 = vmul.f32 %v886, %v1050
    %v1123 = vmul.f32 %v888, %v1051
    %v1124 = vmul.f32 %v890, %v1052
    %v1125 = vmul.f32 %v892, %v1053
    %v1126 = vmul.f32 %v894, %v1054
    %v1127 = vmul.f32 %v1119, %v193
    %v1128 = vmul.f32 %v1120, %v193
    %v1129 = vmul.f32 %v1121, %v193
    %v1130 = vmul.f32 %v1122, %v193
    %v1131 = vmul.f32 %v1123, %v193
    %v1132 = vmul.f32 %v1124, %v193
    %v1133 = vmul.f32 %v1125, %v193
    %v1134 = vmul.f32 %v1126, %v193
    %v1135 = vadd.f32 %v1111, %v1127
    %v1136 = vadd.f32 %v1112, %v1128
    %v1137 = vadd.f32 %v1113, %v1129
    %v1138 = vadd.f32 %v1114, %v1130
    %v1139 = vadd.f32 %v1115, %v1131
    %v1140 = vadd.f32 %v1116, %v1132
    %v1141 = vadd.f32 %v1117, %v1133
    %v1142 = vadd.f32 %v1118, %v1134
    %v1143 = vmul.f32 %v904, %v1047
    %v1144 = vmul.f32 %v906, %v1048
    %v1145 = vmul.f32 %v908, %v1049
    %v1146 = vmul.f32 %v910, %v1050
    %v1147 = vmul.f32 %v912, %v1051
    %v1148 = vmul.f32 %v914, %v1052
    %v1149 = vmul.f32 %v916, %v1053
    %v1150 = vmul.f32 %v918, %v1054
    %v1151 = vmul.f32 %v1143, %v194
    %v1152 = vmul.f32 %v1144, %v194
    %v1153 = vmul.f32 %v1145, %v194
    %v1154 = vmul.f32 %v1146, %v194
    %v1155 = vmul.f32 %v1147, %v194
    %v1156 = vmul.f32 %v1148, %v194
    %v1157 = vmul.f32 %v1149, %v194
    %v1158 = vmul.f32 %v1150, %v194
    %v1159 = vadd.f32 %v1135, %v1151
    %v1160 = vadd.f32 %v1136, %v1152
    %v1161 = vadd.f32 %v1137, %v1153
    %v1162 = vadd.f32 %v1138, %v1154
    %v1163 = vadd.f32 %v1139, %v1155
    %v1164 = vadd.f32 %v1140, %v1156
    %v1165 = vadd.f32 %v1141, %v1157
    %v1166 = vadd.f32 %v1142, %v1158
    %v1167 = vmul.f32 %v928, %v1047
    %v1168 = vmul.f32 %v930, %v1048
    %v1169 = vmul.f32 %v932, %v1049
    %v1170 = vmul.f32 %v934, %v1050
    %v1171 = vmul.f32 %v936, %v1051
    %v1172 = vmul.f32 %v938, %v1052
    %v1173 = vmul.f32 %v940, %v1053
    %v1174 = vmul.f32 %v942, %v1054
    %v1175 = vmul.f32 %v1167, %v195
    %v1176 = vmul.f32 %v1168, %v195
    %v1177 = vmul.f32 %v1169, %v195
    %v1178 = vmul.f32 %v1170, %v195
    %v1179 = vmul.f32 %v1171, %v195
    %v1180 = vmul.f32 %v1172, %v195
    %v1181 = vmul.f32 %v1173, %v195
    %v1182 = vmul.f32 %v1174, %v195
    %v1183 = vadd.f32 %v1159, %v1175
    %v1184 = vadd.f32 %v1160, %v1176
    %v1185 = vadd.f32 %v1161, %v1177
    %v1186 = vadd.f32 %v1162, %v1178
    %v1187 = vadd.f32 %v1163, %v1179
    %v1188 = vadd.f32 %v1164, %v1180
    %v1189 = vadd.f32 %v1165, %v1181
    %v1190 = vadd.f32 %v1166, %v1182
    %v1191 = vmul.f32 %v952, %v1047
    %v1192 = vmul.f32 %v954, %v1048
    %v1193 = vmul.f32 %v956, %v1049
    %v1194 = vmul.f32 %v958, %v1050
    %v1195 = vmul.f32 %v960, %v1051
    %v1196 = vmul.f32 %v962, %v1052
    %v1197 = vmul.f32 %v964, %v1053
    %v1198 = vmul.f32 %v966, %v1054
    %v1199 = vmul.f32 %v1191, %v196
    %v1200 = vmul.f32 %v1192, %v196
    %v1201 = vmul.f32 %v1193, %v196
    %v1202 = vmul.f32 %v1194, %v196
    %v1203 = vmul.f32 %v1195, %v196
    %v1204 = vmul.f32 %v1196, %v196
    %v1205 = vmul.f32 %v1197, %v196
    %v1206 = vmul.f32 %v1198, %v196
    %v1207 = vadd.f32 %v1183, %v1199
    %v1208 = vadd.f32 %v1184, %v1200
    %v1209 = vadd.f32 %v1185, %v1201
    %v1210 = vadd.f32 %v1186, %v1202
    %v1211 = vadd.f32 %v1187, %v1203
    %v1212 = vadd.f32 %v1188, %v1204
    %v1213 = vadd.f32 %v1189, %v1205
    %v1214 = vadd.f32 %v1190, %v1206
    %v1215 = vmul.f32 %v976, %v1047
    %v1216 = vmul.f32 %v978, %v1048
    %v1217 = vmul.f32 %v980, %v1049
    %v1218 = vmul.f32 %v982, %v1050
    %v1219 = vmul.f32 %v984, %v1051
    %v1220 = vmul.f32 %v986, %v1052
    %v1221 = vmul.f32 %v988, %v1053
    %v1222 = vmul.f32 %v990, %v1054
    %v1223 = vmul.f32 %v1215, %v197
    %v1224 = vmul.f32 %v1216, %v197
    %v1225 = vmul.f32 %v1217, %v197
    %v1226 = vmul.f32 %v1218, %v197
    %v1227 = vmul.f32 %v1219, %v197
    %v1228 = vmul.f32 %v1220, %v197
    %v1229 = vmul.f32 %v1221, %v197
    %v1230 = vmul.f32 %v1222, %v197
    %v1231 = vadd.f32 %v1207, %v1223
    %v1232 = vadd.f32 %v1208, %v1224
    %v1233 = vadd.f32 %v1209, %v1225
    %v1234 = vadd.f32 %v1210, %v1226
    %v1235 = vadd.f32 %v1211, %v1227
    %v1236 = vadd.f32 %v1212, %v1228
    %v1237 = vadd.f32 %v1213, %v1229
    %v1238 = vadd.f32 %v1214, %v1230
    %1240 = vrot.lane.b32.xlu0 %v422, 32
    %v1241 = vpop.permute.xlu0 %1240
    %v1243 = vsel %vm207, %v421, %v1241
    %v1244 = vpack.c.bf16 %v1243, %v1243
    %v1245 = vld [vmem:[#allocation16] sm:$0xf]
    %v1246 = vld [vmem:[#allocation16 + $0x4] sm:$0xf]
    %v1247 = vld [vmem:[#allocation16 + $0x8] sm:$0xf]
    %v1248 = vld [vmem:[#allocation16 + $0xc] sm:$0xf]
    %v1249 = vld [vmem:[#allocation16 + $0x10] sm:$0xf]
    %v1250 = vld [vmem:[#allocation16 + $0x14] sm:$0xf]
    %v1251 = vld [vmem:[#allocation16 + $0x18] sm:$0xf]
    %v1252 = vld [vmem:[#allocation16 + $0x1c] sm:$0xf]
    %v1253 = vld [vmem:[#allocation17] sm:$0x1]
    %v1255 = vperm.slane %v1253, 0
    %v1265 = vunpack.c.l.b16 %v1245
    %v1266 = vunpack.c.l.b16 %v1246
    %v1267 = vunpack.c.l.b16 %v1247
    %v1268 = vunpack.c.l.b16 %v1248
    %v1269 = vunpack.c.l.b16 %v1249
    %v1270 = vunpack.c.l.b16 %v1250
    %v1271 = vunpack.c.l.b16 %v1251
    %v1272 = vunpack.c.l.b16 %v1252
    %v1273 = vpack.c.b16 %v1266, %v1265
    %v1274 = vpack.c.b16 %v1268, %v1267
    %v1275 = vpack.c.b16 %v1270, %v1269
    %v1276 = vpack.c.b16 %v1272, %v1271
    %vm1281 = vcmask 523264
    %v1283 = vsel %vm1281, %v1244, 0
    %1285 = vmatpush.bf16.msra.mxu0 0
    %1286 = vmatpush.bf16.msra.mxu0 0
    %1287 = vmatpush.bf16.msra.mxu0 0
    %1288 = vmatpush.bf16.msra.mxu0 0
    %1289 = vmatpush.bf16.msra.mxu0 %v1276
    %1290 = vmatpush.bf16.msra.mxu0 %v1275
    %1291 = vmatpush.bf16.msra.mxu0 %v1274
    %1292 = vmatpush.bf16.msra.mxu0 %v1273
    %1293 = vmatmul.bf16.gmra.mxu0 %v1283
    %v1294 = vpop.f32.mrf.mxu0
    %v1295 = vadd.f32 %v1255, %v1294
    %v1296 = vpop.f32.mrf.mxu0
    %1297 = vdwg.mxu0
    %v1298 = vmax.f32 %v1295, 0.0
    %v1299 = vld [vmem:[#allocation19] sm:$0x1]
    %v1301 = vperm.slane %v1299, 0
    %v1303 = vmul.f32 %v1298, %v1301
    %v1304 = vsel %vm207, %v1303, 0.0
    %1305 = vadd.xlane.f32.xlu0 %v1304
    %v1306 = vpop.xlane.xlu0 %1305
    %v1307 = vld [vmem:[#allocation6] sm:$0x1]
    %v1309 = vperm.slane %v1307, 0
    %v1311 = vadd.f32 %v1306, %v1309
    %v1312 = vld [vmem:[#allocation20] sm:$0x1]
    %v1314 = vperm.slane %v1312, 0
    %1315 = vrot.lane.b32.xlu0 %v1314, 32
    %v1316 = vpop.permute.xlu0 %1315
    %v1318 = vmul.f32 %v1298, %v1316
    %1320 = vrot.lane.b32.xlu0 %v1318, 96
    %v1321 = vpop.permute.xlu0 %1320
    %v1323 = vsel %vm207, %v1321, 0.0
    %1324 = vadd.xlane.f32.xlu0 %v1323
    %v1325 = vpop.xlane.xlu0 %1324
    %v1326 = vld [vmem:[#allocation7] sm:$0x1]
    %v1328 = vperm.slane %v1326, 0
    %v1330 = vadd.f32 %v1325, %v1328
    %v1331 = vand.u32 2147483647, %v1330
    %v1332 = vxor.u32 %v1331, 2147483648
    %v1333 = vmul.f32 %v1332, 1.442695
    %v1334 = vpow.pop %v1333
    %v1335 = vadd.f32 %v1334, 1.0
    %v1336 = vrcp.pop %v1335
    %v1337 = vmul.f32 %v1335, %v1336
    %v1338 = vsub.f32 1.0, %v1337
    %v1339 = vmul.f32 %v1336, %v1338
    %v1340 = vadd.f32 %v1336, %v1339
    %vm1341 = vweird.f32 %v1335
    %vm1342 = vweird.f32 %v1336
    %vm1343 = vmor %vm1341, %vm1342
    %v1344 = vsel %vm1343, %v1336, %v1340
    %v1345 = vand.u32 2147483647, %v1335
    %vm1346 = vcmp.eq.f32.partialorder %v1345, 8.507059e+37
    %v1347 = vand.u32 %v1335, 2147483648
    %v1348 = vor.u32 1.1754944e-38, %v1347
    %v1349 = vsel %vm1346, %v1348, %v1344
    %v1350 = vmul.f32 1.0, %v1349
    %v1351 = vsub.f32 %v1350, 0.5
    %v1352 = vmul.f32 %v1351, 8.0
    %v1353 = vpack.c.bf16 %v1232, %v1231
    %v1354 = vpack.c.bf16 %v1234, %v1233
    %v1355 = vpack.c.bf16 %v1236, %v1235
    %v1356 = vpack.c.bf16 %v1238, %v1237
    %v1357 = vld [vmem:[#allocation22] sm:$0xf]
    %v1358 = vld [vmem:[#allocation22 + $0x4] sm:$0xf]
    %v1359 = vld [vmem:[#allocation22 + $0x8] sm:$0xf]
    %v1360 = vld [vmem:[#allocation22 + $0xc] sm:$0xf]
    %v1361 = vld [vmem:[%s13] sm:$0x1]
    %v1363 = vperm.slane %v1361, 0
    %v1369 = vunpack.c.l.b16 %v1357
    %v1370 = vunpack.c.l.b16 %v1358
    %v1371 = vunpack.c.l.b16 %v1359
    %v1372 = vunpack.c.l.b16 %v1360
    %v1373 = vpack.c.b16 %v1370, %v1369
    %v1374 = vpack.c.b16 %v1372, %v1371
    %v1378 = vsel %vm207, %v1353, 0
    %v1381 = vsel %vm207, %v1354, 0
    %v1384 = vsel %vm207, %v1355, 0
    %v1387 = vsel %vm207, %v1356, 0
    %1389 = vmatpush.bf16.msra.mxu0 0
    %1390 = vmatpush.bf16.msra.mxu0 0
    %1391 = vmatpush.bf16.msra.mxu0 0
    %1392 = vmatpush.bf16.msra.mxu0 0
    %1393 = vmatpush.bf16.msra.mxu0 0
    %1394 = vmatpush.bf16.msra.mxu0 0
    %1395 = vmatpush.bf16.msra.mxu0 %v1374
    %1396 = vmatpush.bf16.msra.mxu0 %v1373
    %1397 = vmatmul.bf16.gmra.mxu0 %v1378
    %v1398 = vpop.f32.mrf.mxu0
    %v1399 = vadd.f32 %v1363, %v1398
    %v1400 = vpop.f32.mrf.mxu0
    %v1401 = vadd.f32 %v1363, %v1400
    %1402 = vmatmul.bf16.gmra.mxu0 %v1381
    %v1403 = vpop.f32.mrf.mxu0
    %v1404 = vadd.f32 %v1363, %v1403
    %v1405 = vpop.f32.mrf.mxu0
    %v1406 = vadd.f32 %v1363, %v1405
    %1407 = vmatmul.bf16.gmra.mxu0 %v1384
    %v1408 = vpop.f32.mrf.mxu0
    %v1409 = vadd.f32 %v1363, %v1408
    %v1410 = vpop.f32.mrf.mxu0
    %v1411 = vadd.f32 %v1363, %v1410
    %1412 = vmatmul.bf16.gmra.mxu0 %v1387
    %v1413 = vpop.f32.mrf.mxu0
    %v1414 = vadd.f32 %v1363, %v1413
    %v1415 = vpop.f32.mrf.mxu0
    %v1416 = vadd.f32 %v1363, %v1415
    %1417 = vdwg.mxu0
    %v1418 = vld [vmem:[%s12] sm:$0xf]
    %v1419 = vld [vmem:[%s12 + $0x4] sm:$0xf]
    %v1420 = vld [vmem:[%s12 + $0x8] sm:$0xf]
    %v1421 = vld [vmem:[%s12 + $0xc] sm:$0xf]
    %v1422 = vld [vmem:[#allocation9] sm:$0xff]
    %1423 = vst.msk [vmem:[#allocation2] sm:$0xff] %vm207, 0.0
    %1424 = vst.msk [vmem:[#allocation3] sm:$0xff] %vm207, 0.0
    %s1425 = sld [smem:[#allocation5]]
    %p1426 = scmp.gt.s32.totalorder %s1425, 0
    // Predicated region
    $region98: #{tpu_custom_call.1} parent=1 // pred_check
      %p1427 = pneg %p1426
    $region99: #{tpu_custom_call.1} parent=1 // pred_check_branch
      %1429 = sbr.rel (%p1427) target = $region101
    $region100: #{tpu_custom_call.1} parent=1 // pred_region
      %v1430 = vld [vmem:[#allocation2] sm:$0xff]
      %v1431 = vld [vmem:[#allocation3] sm:$0xff]
      %v1432 = vpack.c.bf16 %v1430, %v1430
      %v1437 = vunpack.c.l.b16 %v1418
      %v1438 = vunpack.c.l.b16 %v1419
      %v1439 = vunpack.c.l.b16 %v1420
      %v1440 = vunpack.c.l.b16 %v1421
      %v1441 = vpack.c.b16 %v1438, %v1437
      %v1442 = vpack.c.b16 %v1440, %v1439
      %v1446 = vsel %vm207, %v1432, 0
      %1448 = vmatpush.bf16.msra.mxu0 0
      %1449 = vmatpush.bf16.msra.mxu0 0
      %1450 = vmatpush.bf16.msra.mxu0 0
      %1451 = vmatpush.bf16.msra.mxu0 0
      %1452 = vmatpush.bf16.msra.mxu0 0
      %1453 = vmatpush.bf16.msra.mxu0 0
      %1454 = vmatpush.bf16.msra.mxu0 %v1442
      %1455 = vmatpush.bf16.msra.mxu0 %v1441
      %1456 = vmatmul.bf16.gmra.mxu0 %v1446
      %v1457 = vpop.f32.mrf.mxu0
      %v1458 = vadd.f32 0.0, %v1457
      %v1459 = vpop.f32.mrf.mxu0
      %1460 = vdwg.mxu0
      %v1461 = vadd.f32 %v1399, %v1458
      %v1462 = vxor.u32 %v1461, 2147483648
      %v1463 = vmul.f32 %v1462, 1.442695
      %v1464 = vpow.pop %v1463
      %v1465 = vadd.f32 %v1464, 1.0
      %v1466 = vrcp.pop %v1465
      %v1467 = vmul.f32 %v1465, %v1466
      %v1468 = vsub.f32 1.0, %v1467
      %v1469 = vmul.f32 %v1466, %v1468
      %v1470 = vadd.f32 %v1466, %v1469
      %vm1471 = vweird.f32 %v1465
      %vm1472 = vweird.f32 %v1466
      %vm1473 = vmor %vm1471, %vm1472
      %v1474 = vsel %vm1473, %v1466, %v1470
      %v1475 = vand.u32 2147483647, %v1465
      %vm1476 = vcmp.eq.f32.partialorder %v1475, 8.507059e+37
      %v1477 = vand.u32 %v1465, 2147483648
      %v1478 = vor.u32 1.1754944e-38, %v1477
      %v1479 = vsel %vm1476, %v1478, %v1474
      %v1480 = vmul.f32 1.0, %v1479
      %v1481 = vtanh.pop %v1461
      %1483 = vrot.lane.b32.xlu0 %v1431, 32
      %v1484 = vpop.permute.xlu0 %1483
      %v1486 = vmul.f32 %v1480, %v1484
      %1488 = vrot.lane.b32.xlu0 %v1481, 64
      %v1489 = vpop.permute.xlu0 %1488
      %v1491 = vmul.f32 %v1480, %v1489
      %1493 = vrot.lane.b32.xlu0 %v1491, 32
      %v1494 = vpop.permute.xlu0 %1493
      %v1496 = vadd.f32 %v1486, %v1494
      %v1497 = vtanh.pop %v1496
      %1499 = vrot.lane.b32.xlu0 %v1497, 64
      %v1500 = vpop.permute.xlu0 %1499
      %v1502 = vmul.f32 %v1480, %v1500
      %v1503 = vsub.f32 1.0, %v1422
      %1505 = vset.pattern.permute.xlu0 0
      %1506 = vperm.xlu0 %1505, %v1422
      %v1507 = vpop.permute.xlu0 %1506
      %v1509 = vmul.f32 %v1507, %v1502
      %1511 = vset.pattern.permute.xlu0 0
      %1512 = vperm.xlu0 %1511, %v1503
      %v1513 = vpop.permute.xlu0 %1512
      %v1515 = vmul.f32 %v1513, %v1430
      %1517 = vrot.lane.b32.xlu0 %v1515, 96
      %v1518 = vpop.permute.xlu0 %1517
      %v1520 = vadd.f32 %v1509, %v1518
      %1522 = vrot.lane.b32.xlu0 %v1520, 32
      %v1523 = vpop.permute.xlu0 %1522
      %1525 = vst.msk [vmem:[#allocation2] sm:$0xff] %vm207, %v1523
      %v1526 = vmul.f32 %v1507, %v1496
      %v1527 = vmul.f32 %v1513, %v1431
      %1529 = vrot.lane.b32.xlu0 %v1527, 32
      %v1530 = vpop.permute.xlu0 %1529
      %v1532 = vadd.f32 %v1526, %v1530
      %1534 = vrot.lane.b32.xlu0 %v1532, 96
      %v1535 = vpop.permute.xlu0 %1534
      %1537 = vst.msk [vmem:[#allocation3] sm:$0xff] %vm207, %v1535
    $region101: #{tpu_custom_call.1} parent=1 // pred_fallthru
      _
    %p1538 = scmp.gt.s32.totalorder %s1425, 1
    // Predicated region
    $region102: #{tpu_custom_call.1} parent=1 // pred_check
      %p1539 = pneg %p1538
    $region103: #{tpu_custom_call.1} parent=1 // pred_check_branch
      %1541 = sbr.rel (%p1539) target = $region105
    $region104: #{tpu_custom_call.1} parent=1 // pred_region
      %v1542 = vld [vmem:[#allocation2] sm:$0xff]
      %v1543 = vld [vmem:[#allocation3] sm:$0xff]
      %v1544 = vpack.c.bf16 %v1542, %v1542
      %v1549 = vunpack.c.l.b16 %v1418
      %v1550 = vunpack.c.l.b16 %v1419
      %v1551 = vunpack.c.l.b16 %v1420
      %v1552 = vunpack.c.l.b16 %v1421
      %v1553 = vpack.c.b16 %v1550, %v1549
      %v1554 = vpack.c.b16 %v1552, %v1551
      %v1558 = vsel %vm207, %v1544, 0
      %1560 = vmatpush.bf16.msra.mxu0 0
      %1561 = vmatpush.bf16.msra.mxu0 0
      %1562 = vmatpush.bf16.msra.mxu0 0
      %1563 = vmatpush.bf16.msra.mxu0 0
      %1564 = vmatpush.bf16.msra.mxu0 0
      %1565 = vmatpush.bf16.msra.mxu0 0
      %1566 = vmatpush.bf16.msra.mxu0 %v1554
      %1567 = vmatpush.bf16.msra.mxu0 %v1553
      %1568 = vmatmul.bf16.gmra.mxu0 %v1558
      %v1569 = vpop.f32.mrf.mxu0
      %v1570 = vadd.f32 0.0, %v1569
      %v1571 = vpop.f32.mrf.mxu0
      %1572 = vdwg.mxu0
      %v1573 = vadd.f32 %v1401, %v1570
      %v1574 = vxor.u32 %v1573, 2147483648
      %v1575 = vmul.f32 %v1574, 1.442695
      %v1576 = vpow.pop %v1575
      %v1577 = vadd.f32 %v1576, 1.0
      %v1578 = vrcp.pop %v1577
      %v1579 = vmul.f32 %v1577, %v1578
      %v1580 = vsub.f32 1.0, %v1579
      %v1581 = vmul.f32 %v1578, %v1580
      %v1582 = vadd.f32 %v1578, %v1581
      %vm1583 = vweird.f32 %v1577
      %vm1584 = vweird.f32 %v1578
      %vm1585 = vmor %vm1583, %vm1584
      %v1586 = vsel %vm1585, %v1578, %v1582
      %v1587 = vand.u32 2147483647, %v1577
      %vm1588 = vcmp.eq.f32.partialorder %v1587, 8.507059e+37
      %v1589 = vand.u32 %v1577, 2147483648
      %v1590 = vor.u32 1.1754944e-38, %v1589
      %v1591 = vsel %vm1588, %v1590, %v1586
      %v1592 = vmul.f32 1.0, %v1591
      %v1593 = vtanh.pop %v1573
      %1595 = vrot.lane.b32.xlu0 %v1543, 32
      %v1596 = vpop.permute.xlu0 %1595
      %v1598 = vmul.f32 %v1592, %v1596
      %1600 = vrot.lane.b32.xlu0 %v1593, 64
      %v1601 = vpop.permute.xlu0 %1600
      %v1603 = vmul.f32 %v1592, %v1601
      %1605 = vrot.lane.b32.xlu0 %v1603, 32
      %v1606 = vpop.permute.xlu0 %1605
      %v1608 = vadd.f32 %v1598, %v1606
      %v1609 = vtanh.pop %v1608
      %1611 = vrot.lane.b32.xlu0 %v1609, 64
      %v1612 = vpop.permute.xlu0 %1611
      %v1614 = vmul.f32 %v1592, %v1612
      %v1615 = vsub.f32 1.0, %v1422
      %1617 = vset.pattern.permute.xlu0 1
      %1618 = vperm.xlu0 %1617, %v1422
      %v1619 = vpop.permute.xlu0 %1618
      %v1621 = vmul.f32 %v1619, %v1614
      %1623 = vset.pattern.permute.xlu0 1
      %1624 = vperm.xlu0 %1623, %v1615
      %v1625 = vpop.permute.xlu0 %1624
      %v1627 = vmul.f32 %v1625, %v1542
      %1629 = vrot.lane.b32.xlu0 %v1627, 96
      %v1630 = vpop.permute.xlu0 %1629
      %v1632 = vadd.f32 %v1621, %v1630
      %1634 = vrot.lane.b32.xlu0 %v1632, 32
      %v1635 = vpop.permute.xlu0 %1634
      %1637 = vst.msk [vmem:[#allocation2] sm:$0xff] %vm207, %v1635
      %v1638 = vmul.f32 %v1619, %v1608
      %v1639 = vmul.f32 %v1625, %v1543
      %1641 = vrot.lane.b32.xlu0 %v1639, 32
      %v1642 = vpop.permute.xlu0 %1641
      %v1644 = vadd.f32 %v1638, %v1642
      %1646 = vrot.lane.b32.xlu0 %v1644, 96
      %v1647 = vpop.permute.xlu0 %1646
      %1649 = vst.msk [vmem:[#allocation3] sm:$0xff] %vm207, %v1647
    $region105: #{tpu_custom_call.1} parent=1 // pred_fallthru
      _
    %p1650 = scmp.gt.s32.totalorder %s1425, 2
    // Predicated region
    $region106: #{tpu_custom_call.1} parent=1 // pred_check
      %p1651 = pneg %p1650
    $region107: #{tpu_custom_call.1} parent=1 // pred_check_branch
      %1653 = sbr.rel (%p1651) target = $region109
    $region108: #{tpu_custom_call.1} parent=1 // pred_region
      %v1654 = vld [vmem:[#allocation2] sm:$0xff]
      %v1655 = vld [vmem:[#allocation3] sm:$0xff]
      %v1656 = vpack.c.bf16 %v1654, %v1654
      %v1661 = vunpack.c.l.b16 %v1418
      %v1662 = vunpack.c.l.b16 %v1419
      %v1663 = vunpack.c.l.b16 %v1420
      %v1664 = vunpack.c.l.b16 %v1421
      %v1665 = vpack.c.b16 %v1662, %v1661
      %v1666 = vpack.c.b16 %v1664, %v1663
      %v1670 = vsel %vm207, %v1656, 0
      %1672 = vmatpush.bf16.msra.mxu0 0
      %1673 = vmatpush.bf16.msra.mxu0 0
      %1674 = vmatpush.bf16.msra.mxu0 0
      %1675 = vmatpush.bf16.msra.mxu0 0
      %1676 = vmatpush.bf16.msra.mxu0 0
      %1677 = vmatpush.bf16.msra.mxu0 0
      %1678 = vmatpush.bf16.msra.mxu0 %v1666
      %1679 = vmatpush.bf16.msra.mxu0 %v1665
      %1680 = vmatmul.bf16.gmra.mxu0 %v1670
      %v1681 = vpop.f32.mrf.mxu0
      %v1682 = vadd.f32 0.0, %v1681
      %v1683 = vpop.f32.mrf.mxu0
      %1684 = vdwg.mxu0
      %v1685 = vadd.f32 %v1404, %v1682
      %v1686 = vxor.u32 %v1685, 2147483648
      %v1687 = vmul.f32 %v1686, 1.442695
      %v1688 = vpow.pop %v1687
      %v1689 = vadd.f32 %v1688, 1.0
      %v1690 = vrcp.pop %v1689
      %v1691 = vmul.f32 %v1689, %v1690
      %v1692 = vsub.f32 1.0, %v1691
      %v1693 = vmul.f32 %v1690, %v1692
      %v1694 = vadd.f32 %v1690, %v1693
      %vm1695 = vweird.f32 %v1689
      %vm1696 = vweird.f32 %v1690
      %vm1697 = vmor %vm1695, %vm1696
      %v1698 = vsel %vm1697, %v1690, %v1694
      %v1699 = vand.u32 2147483647, %v1689
      %vm1700 = vcmp.eq.f32.partialorder %v1699, 8.507059e+37
      %v1701 = vand.u32 %v1689, 2147483648
      %v1702 = vor.u32 1.1754944e-38, %v1701
      %v1703 = vsel %vm1700, %v1702, %v1698
      %v1704 = vmul.f32 1.0, %v1703
      %v1705 = vtanh.pop %v1685
      %1707 = vrot.lane.b32.xlu0 %v1655, 32
      %v1708 = vpop.permute.xlu0 %1707
      %v1710 = vmul.f32 %v1704, %v1708
      %1712 = vrot.lane.b32.xlu0 %v1705, 64
      %v1713 = vpop.permute.xlu0 %1712
      %v1715 = vmul.f32 %v1704, %v1713
      %1717 = vrot.lane.b32.xlu0 %v1715, 32
      %v1718 = vpop.permute.xlu0 %1717
      %v1720 = vadd.f32 %v1710, %v1718
      %v1721 = vtanh.pop %v1720
      %1723 = vrot.lane.b32.xlu0 %v1721, 64
      %v1724 = vpop.permute.xlu0 %1723
      %v1726 = vmul.f32 %v1704, %v1724
      %v1727 = vsub.f32 1.0, %v1422
      %1729 = vset.pattern.permute.xlu0 2
      %1730 = vperm.xlu0 %1729, %v1422
      %v1731 = vpop.permute.xlu0 %1730
      %v1733 = vmul.f32 %v1731, %v1726
      %1735 = vset.pattern.permute.xlu0 2
      %1736 = vperm.xlu0 %1735, %v1727
      %v1737 = vpop.permute.xlu0 %1736
      %v1739 = vmul.f32 %v1737, %v1654
      %1741 = vrot.lane.b32.xlu0 %v1739, 96
      %v1742 = vpop.permute.xlu0 %1741
      %v1744 = vadd.f32 %v1733, %v1742
      %1746 = vrot.lane.b32.xlu0 %v1744, 32
      %v1747 = vpop.permute.xlu0 %1746
      %1749 = vst.msk [vmem:[#allocation2] sm:$0xff] %vm207, %v1747
      %v1750 = vmul.f32 %v1731, %v1720
      %v1751 = vmul.f32 %v1737, %v1655
      %1753 = vrot.lane.b32.xlu0 %v1751, 32
      %v1754 = vpop.permute.xlu0 %1753
      %v1756 = vadd.f32 %v1750, %v1754
      %1758 = vrot.lane.b32.xlu0 %v1756, 96
      %v1759 = vpop.permute.xlu0 %1758
      %1761 = vst.msk [vmem:[#allocation3] sm:$0xff] %vm207, %v1759
    $region109: #{tpu_custom_call.1} parent=1 // pred_fallthru
      _
    %p1762 = scmp.gt.s32.totalorder %s1425, 3
    // Predicated region
    $region110: #{tpu_custom_call.1} parent=1 // pred_check
      %p1763 = pneg %p1762
    $region111: #{tpu_custom_call.1} parent=1 // pred_check_branch
      %1765 = sbr.rel (%p1763) target = $region113
    $region112: #{tpu_custom_call.1} parent=1 // pred_region
      %v1766 = vld [vmem:[#allocation2] sm:$0xff]
      %v1767 = vld [vmem:[#allocation3] sm:$0xff]
      %v1768 = vpack.c.bf16 %v1766, %v1766
      %v1773 = vunpack.c.l.b16 %v1418
      %v1774 = vunpack.c.l.b16 %v1419
      %v1775 = vunpack.c.l.b16 %v1420
      %v1776 = vunpack.c.l.b16 %v1421
      %v1777 = vpack.c.b16 %v1774, %v1773
      %v1778 = vpack.c.b16 %v1776, %v1775
      %v1782 = vsel %vm207, %v1768, 0
      %1784 = vmatpush.bf16.msra.mxu0 0
      %1785 = vmatpush.bf16.msra.mxu0 0
      %1786 = vmatpush.bf16.msra.mxu0 0
      %1787 = vmatpush.bf16.msra.mxu0 0
      %1788 = vmatpush.bf16.msra.mxu0 0
      %1789 = vmatpush.bf16.msra.mxu0 0
      %1790 = vmatpush.bf16.msra.mxu0 %v1778
      %1791 = vmatpush.bf16.msra.mxu0 %v1777
      %1792 = vmatmul.bf16.gmra.mxu0 %v1782
      %v1793 = vpop.f32.mrf.mxu0
      %v1794 = vadd.f32 0.0, %v1793
      %v1795 = vpop.f32.mrf.mxu0
      %1796 = vdwg.mxu0
      %v1797 = vadd.f32 %v1406, %v1794
      %v1798 = vxor.u32 %v1797, 2147483648
      %v1799 = vmul.f32 %v1798, 1.442695
      %v1800 = vpow.pop %v1799
      %v1801 = vadd.f32 %v1800, 1.0
      %v1802 = vrcp.pop %v1801
      %v1803 = vmul.f32 %v1801, %v1802
      %v1804 = vsub.f32 1.0, %v1803
      %v1805 = vmul.f32 %v1802, %v1804
      %v1806 = vadd.f32 %v1802, %v1805
      %vm1807 = vweird.f32 %v1801
      %vm1808 = vweird.f32 %v1802
      %vm1809 = vmor %vm1807, %vm1808
      %v1810 = vsel %vm1809, %v1802, %v1806
      %v1811 = vand.u32 2147483647, %v1801
      %vm1812 = vcmp.eq.f32.partialorder %v1811, 8.507059e+37
      %v1813 = vand.u32 %v1801, 2147483648
      %v1814 = vor.u32 1.1754944e-38, %v1813
      %v1815 = vsel %vm1812, %v1814, %v1810
      %v1816 = vmul.f32 1.0, %v1815
      %v1817 = vtanh.pop %v1797
      %1819 = vrot.lane.b32.xlu0 %v1767, 32
      %v1820 = vpop.permute.xlu0 %1819
      %v1822 = vmul.f32 %v1816, %v1820
      %1824 = vrot.lane.b32.xlu0 %v1817, 64
      %v1825 = vpop.permute.xlu0 %1824
      %v1827 = vmul.f32 %v1816, %v1825
      %1829 = vrot.lane.b32.xlu0 %v1827, 32
      %v1830 = vpop.permute.xlu0 %1829
      %v1832 = vadd.f32 %v1822, %v1830
      %v1833 = vtanh.pop %v1832
      %1835 = vrot.lane.b32.xlu0 %v1833, 64
      %v1836 = vpop.permute.xlu0 %1835
      %v1838 = vmul.f32 %v1816, %v1836
      %v1839 = vsub.f32 1.0, %v1422
      %1841 = vset.pattern.permute.xlu0 3
      %1842 = vperm.xlu0 %1841, %v1422
      %v1843 = vpop.permute.xlu0 %1842
      %v1845 = vmul.f32 %v1843, %v1838
      %1847 = vset.pattern.permute.xlu0 3
      %1848 = vperm.xlu0 %1847, %v1839
      %v1849 = vpop.permute.xlu0 %1848
      %v1851 = vmul.f32 %v1849, %v1766
      %1853 = vrot.lane.b32.xlu0 %v1851, 96
      %v1854 = vpop.permute.xlu0 %1853
      %v1856 = vadd.f32 %v1845, %v1854
      %1858 = vrot.lane.b32.xlu0 %v1856, 32
      %v1859 = vpop.permute.xlu0 %1858
      %1861 = vst.msk [vmem:[#allocation2] sm:$0xff] %vm207, %v1859
      %v1862 = vmul.f32 %v1843, %v1832
      %v1863 = vmul.f32 %v1849, %v1767
      %1865 = vrot.lane.b32.xlu0 %v1863, 32
      %v1866 = vpop.permute.xlu0 %1865
      %v1868 = vadd.f32 %v1862, %v1866
      %1870 = vrot.lane.b32.xlu0 %v1868, 96
      %v1871 = vpop.permute.xlu0 %1870
      %1873 = vst.msk [vmem:[#allocation3] sm:$0xff] %vm207, %v1871
    $region113: #{tpu_custom_call.1} parent=1 // pred_fallthru
      _
    %p1874 = scmp.gt.s32.totalorder %s1425, 4
    // Predicated region
    $region114: #{tpu_custom_call.1} parent=1 // pred_check
      %p1875 = pneg %p1874
    $region115: #{tpu_custom_call.1} parent=1 // pred_check_branch
      %1877 = sbr.rel (%p1875) target = $region117
    $region116: #{tpu_custom_call.1} parent=1 // pred_region
      %v1878 = vld [vmem:[#allocation2] sm:$0xff]
      %v1879 = vld [vmem:[#allocation3] sm:$0xff]
      %v1880 = vpack.c.bf16 %v1878, %v1878
      %v1885 = vunpack.c.l.b16 %v1418
      %v1886 = vunpack.c.l.b16 %v1419
      %v1887 = vunpack.c.l.b16 %v1420
      %v1888 = vunpack.c.l.b16 %v1421
      %v1889 = vpack.c.b16 %v1886, %v1885
      %v1890 = vpack.c.b16 %v1888, %v1887
      %v1894 = vsel %vm207, %v1880, 0
      %1896 = vmatpush.bf16.msra.mxu0 0
      %1897 = vmatpush.bf16.msra.mxu0 0
      %1898 = vmatpush.bf16.msra.mxu0 0
      %1899 = vmatpush.bf16.msra.mxu0 0
      %1900 = vmatpush.bf16.msra.mxu0 0
      %1901 = vmatpush.bf16.msra.mxu0 0
      %1902 = vmatpush.bf16.msra.mxu0 %v1890
      %1903 = vmatpush.bf16.msra.mxu0 %v1889
      %1904 = vmatmul.bf16.gmra.mxu0 %v1894
      %v1905 = vpop.f32.mrf.mxu0
      %v1906 = vadd.f32 0.0, %v1905
      %v1907 = vpop.f32.mrf.mxu0
      %1908 = vdwg.mxu0
      %v1909 = vadd.f32 %v1409, %v1906
      %v1910 = vxor.u32 %v1909, 2147483648
      %v1911 = vmul.f32 %v1910, 1.442695
      %v1912 = vpow.pop %v1911
      %v1913 = vadd.f32 %v1912, 1.0
      %v1914 = vrcp.pop %v1913
      %v1915 = vmul.f32 %v1913, %v1914
      %v1916 = vsub.f32 1.0, %v1915
      %v1917 = vmul.f32 %v1914, %v1916
      %v1918 = vadd.f32 %v1914, %v1917
      %vm1919 = vweird.f32 %v1913
      %vm1920 = vweird.f32 %v1914
      %vm1921 = vmor %vm1919, %vm1920
      %v1922 = vsel %vm1921, %v1914, %v1918
      %v1923 = vand.u32 2147483647, %v1913
      %vm1924 = vcmp.eq.f32.partialorder %v1923, 8.507059e+37
      %v1925 = vand.u32 %v1913, 2147483648
      %v1926 = vor.u32 1.1754944e-38, %v1925
      %v1927 = vsel %vm1924, %v1926, %v1922
      %v1928 = vmul.f32 1.0, %v1927
      %v1929 = vtanh.pop %v1909
      %1931 = vrot.lane.b32.xlu0 %v1879, 32
      %v1932 = vpop.permute.xlu0 %1931
      %v1934 = vmul.f32 %v1928, %v1932
      %1936 = vrot.lane.b32.xlu0 %v1929, 64
      %v1937 = vpop.permute.xlu0 %1936
      %v1939 = vmul.f32 %v1928, %v1937
      %1941 = vrot.lane.b32.xlu0 %v1939, 32
      %v1942 = vpop.permute.xlu0 %1941
      %v1944 = vadd.f32 %v1934, %v1942
      %v1945 = vtanh.pop %v1944
      %1947 = vrot.lane.b32.xlu0 %v1945, 64
      %v1948 = vpop.permute.xlu0 %1947
      %v1950 = vmul.f32 %v1928, %v1948
      %v1951 = vsub.f32 1.0, %v1422
      %1953 = vset.pattern.permute.xlu0 4
      %1954 = vperm.xlu0 %1953, %v1422
      %v1955 = vpop.permute.xlu0 %1954
      %v1957 = vmul.f32 %v1955, %v1950
      %1959 = vset.pattern.permute.xlu0 4
      %1960 = vperm.xlu0 %1959, %v1951
      %v1961 = vpop.permute.xlu0 %1960
      %v1963 = vmul.f32 %v1961, %v1878
      %1965 = vrot.lane.b32.xlu0 %v1963, 96
      %v1966 = vpop.permute.xlu0 %1965
      %v1968 = vadd.f32 %v1957, %v1966
      %1970 = vrot.lane.b32.xlu0 %v1968, 32
      %v1971 = vpop.permute.xlu0 %1970
      %1973 = vst.msk [vmem:[#allocation2] sm:$0xff] %vm207, %v1971
      %v1974 = vmul.f32 %v1955, %v1944
      %v1975 = vmul.f32 %v1961, %v1879
      %1977 = vrot.lane.b32.xlu0 %v1975, 32
      %v1978 = vpop.permute.xlu0 %1977
      %v1980 = vadd.f32 %v1974, %v1978
      %1982 = vrot.lane.b32.xlu0 %v1980, 96
      %v1983 = vpop.permute.xlu0 %1982
      %1985 = vst.msk [vmem:[#allocation3] sm:$0xff] %vm207, %v1983
    $region117: #{tpu_custom_call.1} parent=1 // pred_fallthru
      _
    %p1986 = scmp.gt.s32.totalorder %s1425, 5
    // Predicated region
    $region118: #{tpu_custom_call.1} parent=1 // pred_check
      %p1987 = pneg %p1986
    $region119: #{tpu_custom_call.1} parent=1 // pred_check_branch
      %1989 = sbr.rel (%p1987) target = $region121
    $region120: #{tpu_custom_call.1} parent=1 // pred_region
      %v1990 = vld [vmem:[#allocation2] sm:$0xff]
      %v1991 = vld [vmem:[#allocation3] sm:$0xff]
      %v1992 = vpack.c.bf16 %v1990, %v1990
      %v1997 = vunpack.c.l.b16 %v1418
      %v1998 = vunpack.c.l.b16 %v1419
      %v1999 = vunpack.c.l.b16 %v1420
      %v2000 = vunpack.c.l.b16 %v1421
      %v2001 = vpack.c.b16 %v1998, %v1997
      %v2002 = vpack.c.b16 %v2000, %v1999
      %v2006 = vsel %vm207, %v1992, 0
      %2008 = vmatpush.bf16.msra.mxu0 0
      %2009 = vmatpush.bf16.msra.mxu0 0
      %2010 = vmatpush.bf16.msra.mxu0 0
      %2011 = vmatpush.bf16.msra.mxu0 0
      %2012 = vmatpush.bf16.msra.mxu0 0
      %2013 = vmatpush.bf16.msra.mxu0 0
      %2014 = vmatpush.bf16.msra.mxu0 %v2002
      %2015 = vmatpush.bf16.msra.mxu0 %v2001
      %2016 = vmatmul.bf16.gmra.mxu0 %v2006
      %v2017 = vpop.f32.mrf.mxu0
      %v2018 = vadd.f32 0.0, %v2017
      %v2019 = vpop.f32.mrf.mxu0
      %2020 = vdwg.mxu0
      %v2021 = vadd.f32 %v1411, %v2018
      %v2022 = vxor.u32 %v2021, 2147483648
      %v2023 = vmul.f32 %v2022, 1.442695
      %v2024 = vpow.pop %v2023
      %v2025 = vadd.f32 %v2024, 1.0
      %v2026 = vrcp.pop %v2025
      %v2027 = vmul.f32 %v2025, %v2026
      %v2028 = vsub.f32 1.0, %v2027
      %v2029 = vmul.f32 %v2026, %v2028
      %v2030 = vadd.f32 %v2026, %v2029
      %vm2031 = vweird.f32 %v2025
      %vm2032 = vweird.f32 %v2026
      %vm2033 = vmor %vm2031, %vm2032
      %v2034 = vsel %vm2033, %v2026, %v2030
      %v2035 = vand.u32 2147483647, %v2025
      %vm2036 = vcmp.eq.f32.partialorder %v2035, 8.507059e+37
      %v2037 = vand.u32 %v2025, 2147483648
      %v2038 = vor.u32 1.1754944e-38, %v2037
      %v2039 = vsel %vm2036, %v2038, %v2034
      %v2040 = vmul.f32 1.0, %v2039
      %v2041 = vtanh.pop %v2021
      %2043 = vrot.lane.b32.xlu0 %v1991, 32
      %v2044 = vpop.permute.xlu0 %2043
      %v2046 = vmul.f32 %v2040, %v2044
      %2048 = vrot.lane.b32.xlu0 %v2041, 64
      %v2049 = vpop.permute.xlu0 %2048
      %v2051 = vmul.f32 %v2040, %v2049
      %2053 = vrot.lane.b32.xlu0 %v2051, 32
      %v2054 = vpop.permute.xlu0 %2053
      %v2056 = vadd.f32 %v2046, %v2054
      %v2057 = vtanh.pop %v2056
      %2059 = vrot.lane.b32.xlu0 %v2057, 64
      %v2060 = vpop.permute.xlu0 %2059
      %v2062 = vmul.f32 %v2040, %v2060
      %v2063 = vsub.f32 1.0, %v1422
      %2065 = vset.pattern.permute.xlu0 5
      %2066 = vperm.xlu0 %2065, %v1422
      %v2067 = vpop.permute.xlu0 %2066
      %v2069 = vmul.f32 %v2067, %v2062
      %2071 = vset.pattern.permute.xlu0 5
      %2072 = vperm.xlu0 %2071, %v2063
      %v2073 = vpop.permute.xlu0 %2072
      %v2075 = vmul.f32 %v2073, %v1990
      %2077 = vrot.lane.b32.xlu0 %v2075, 96
      %v2078 = vpop.permute.xlu0 %2077
      %v2080 = vadd.f32 %v2069, %v2078
      %2082 = vrot.lane.b32.xlu0 %v2080, 32
      %v2083 = vpop.permute.xlu0 %2082
      %2085 = vst.msk [vmem:[#allocation2] sm:$0xff] %vm207, %v2083
      %v2086 = vmul.f32 %v2067, %v2056
      %v2087 = vmul.f32 %v2073, %v1991
      %2089 = vrot.lane.b32.xlu0 %v2087, 32
      %v2090 = vpop.permute.xlu0 %2089
      %v2092 = vadd.f32 %v2086, %v2090
      %2094 = vrot.lane.b32.xlu0 %v2092, 96
      %v2095 = vpop.permute.xlu0 %2094
      %2097 = vst.msk [vmem:[#allocation3] sm:$0xff] %vm207, %v2095
    $region121: #{tpu_custom_call.1} parent=1 // pred_fallthru
      _
    %p2098 = scmp.gt.s32.totalorder %s1425, 6
    // Predicated region
    $region122: #{tpu_custom_call.1} parent=1 // pred_check
      %p2099 = pneg %p2098
    $region123: #{tpu_custom_call.1} parent=1 // pred_check_branch
      %2101 = sbr.rel (%p2099) target = $region125
    $region124: #{tpu_custom_call.1} parent=1 // pred_region
      %v2102 = vld [vmem:[#allocation2] sm:$0xff]
      %v2103 = vld [vmem:[#allocation3] sm:$0xff]
      %v2104 = vpack.c.bf16 %v2102, %v2102
      %v2109 = vunpack.c.l.b16 %v1418
      %v2110 = vunpack.c.l.b16 %v1419
      %v2111 = vunpack.c.l.b16 %v1420
      %v2112 = vunpack.c.l.b16 %v1421
      %v2113 = vpack.c.b16 %v2110, %v2109
      %v2114 = vpack.c.b16 %v2112, %v2111
      %v2118 = vsel %vm207, %v2104, 0
      %2120 = vmatpush.bf16.msra.mxu0 0
      %2121 = vmatpush.bf16.msra.mxu0 0
      %2122 = vmatpush.bf16.msra.mxu0 0
      %2123 = vmatpush.bf16.msra.mxu0 0
      %2124 = vmatpush.bf16.msra.mxu0 0
      %2125 = vmatpush.bf16.msra.mxu0 0
      %2126 = vmatpush.bf16.msra.mxu0 %v2114
      %2127 = vmatpush.bf16.msra.mxu0 %v2113
      %2128 = vmatmul.bf16.gmra.mxu0 %v2118
      %v2129 = vpop.f32.mrf.mxu0
      %v2130 = vadd.f32 0.0, %v2129
      %v2131 = vpop.f32.mrf.mxu0
      %2132 = vdwg.mxu0
      %v2133 = vadd.f32 %v1414, %v2130
      %v2134 = vxor.u32 %v2133, 2147483648
      %v2135 = vmul.f32 %v2134, 1.442695
      %v2136 = vpow.pop %v2135
      %v2137 = vadd.f32 %v2136, 1.0
      %v2138 = vrcp.pop %v2137
      %v2139 = vmul.f32 %v2137, %v2138
      %v2140 = vsub.f32 1.0, %v2139
      %v2141 = vmul.f32 %v2138, %v2140
      %v2142 = vadd.f32 %v2138, %v2141
      %vm2143 = vweird.f32 %v2137
      %vm2144 = vweird.f32 %v2138
      %vm2145 = vmor %vm2143, %vm2144
      %v2146 = vsel %vm2145, %v2138, %v2142
      %v2147 = vand.u32 2147483647, %v2137
      %vm2148 = vcmp.eq.f32.partialorder %v2147, 8.507059e+37
      %v2149 = vand.u32 %v2137, 2147483648
      %v2150 = vor.u32 1.1754944e-38, %v2149
      %v2151 = vsel %vm2148, %v2150, %v2146
      %v2152 = vmul.f32 1.0, %v2151
      %v2153 = vtanh.pop %v2133
      %2155 = vrot.lane.b32.xlu0 %v2103, 32
      %v2156 = vpop.permute.xlu0 %2155
      %v2158 = vmul.f32 %v2152, %v2156
      %2160 = vrot.lane.b32.xlu0 %v2153, 64
      %v2161 = vpop.permute.xlu0 %2160
      %v2163 = vmul.f32 %v2152, %v2161
      %2165 = vrot.lane.b32.xlu0 %v2163, 32
      %v2166 = vpop.permute.xlu0 %2165
      %v2168 = vadd.f32 %v2158, %v2166
      %v2169 = vtanh.pop %v2168
      %2171 = vrot.lane.b32.xlu0 %v2169, 64
      %v2172 = vpop.permute.xlu0 %2171
      %v2174 = vmul.f32 %v2152, %v2172
      %v2175 = vsub.f32 1.0, %v1422
      %2177 = vset.pattern.permute.xlu0 6
      %2178 = vperm.xlu0 %2177, %v1422
      %v2179 = vpop.permute.xlu0 %2178
      %v2181 = vmul.f32 %v2179, %v2174
      %2183 = vset.pattern.permute.xlu0 6
      %2184 = vperm.xlu0 %2183, %v2175
      %v2185 = vpop.permute.xlu0 %2184
      %v2187 = vmul.f32 %v2185, %v2102
      %2189 = vrot.lane.b32.xlu0 %v2187, 96
      %v2190 = vpop.permute.xlu0 %2189
      %v2192 = vadd.f32 %v2181, %v2190
      %2194 = vrot.lane.b32.xlu0 %v2192, 32
      %v2195 = vpop.permute.xlu0 %2194
      %2197 = vst.msk [vmem:[#allocation2] sm:$0xff] %vm207, %v2195
      %v2198 = vmul.f32 %v2179, %v2168
      %v2199 = vmul.f32 %v2185, %v2103
      %2201 = vrot.lane.b32.xlu0 %v2199, 32
      %v2202 = vpop.permute.xlu0 %2201
      %v2204 = vadd.f32 %v2198, %v2202
      %2206 = vrot.lane.b32.xlu0 %v2204, 96
      %v2207 = vpop.permute.xlu0 %2206
      %2209 = vst.msk [vmem:[#allocation3] sm:$0xff] %vm207, %v2207
    $region125: #{tpu_custom_call.1} parent=1 // pred_fallthru
      _
    %p2210 = scmp.gt.s32.totalorder %s1425, 7
    // Predicated region
    $region126: #{tpu_custom_call.1} parent=1 // pred_check
      %p2211 = pneg %p2210
    $region127: #{tpu_custom_call.1} parent=1 // pred_check_branch
      %2213 = sbr.rel (%p2211) target = $region129
    $region128: #{tpu_custom_call.1} parent=1 // pred_region
      %v2214 = vld [vmem:[#allocation2] sm:$0xff]
      %v2215 = vld [vmem:[#allocation3] sm:$0xff]
      %v2216 = vpack.c.bf16 %v2214, %v2214
      %v2221 = vunpack.c.l.b16 %v1418
      %v2222 = vunpack.c.l.b16 %v1419
      %v2223 = vunpack.c.l.b16 %v1420
      %v2224 = vunpack.c.l.b16 %v1421
      %v2225 = vpack.c.b16 %v2222, %v2221
      %v2226 = vpack.c.b16 %v2224, %v2223
      %v2230 = vsel %vm207, %v2216, 0
      %2232 = vmatpush.bf16.msra.mxu0 0
      %2233 = vmatpush.bf16.msra.mxu0 0
      %2234 = vmatpush.bf16.msra.mxu0 0
      %2235 = vmatpush.bf16.msra.mxu0 0
      %2236 = vmatpush.bf16.msra.mxu0 0
      %2237 = vmatpush.bf16.msra.mxu0 0
      %2238 = vmatpush.bf16.msra.mxu0 %v2226
      %2239 = vmatpush.bf16.msra.mxu0 %v2225
      %2240 = vmatmul.bf16.gmra.mxu0 %v2230
      %v2241 = vpop.f32.mrf.mxu0
      %v2242 = vadd.f32 0.0, %v2241
      %v2243 = vpop.f32.mrf.mxu0
      %2244 = vdwg.mxu0
      %v2245 = vadd.f32 %v1416, %v2242
      %v2246 = vxor.u32 %v2245, 2147483648
      %v2247 = vmul.f32 %v2246, 1.442695
      %v2248 = vpow.pop %v2247
      %v2249 = vadd.f32 %v2248, 1.0
      %v2250 = vrcp.pop %v2249
      %v2251 = vmul.f32 %v2249, %v2250
      %v2252 = vsub.f32 1.0, %v2251
      %v2253 = vmul.f32 %v2250, %v2252
      %v2254 = vadd.f32 %v2250, %v2253
      %vm2255 = vweird.f32 %v2249
      %vm2256 = vweird.f32 %v2250
      %vm2257 = vmor %vm2255, %vm2256
      %v2258 = vsel %vm2257, %v2250, %v2254
      %v2259 = vand.u32 2147483647, %v2249
      %vm2260 = vcmp.eq.f32.partialorder %v2259, 8.507059e+37
      %v2261 = vand.u32 %v2249, 2147483648
      %v2262 = vor.u32 1.1754944e-38, %v2261
      %v2263 = vsel %vm2260, %v2262, %v2258
      %v2264 = vmul.f32 1.0, %v2263
      %v2265 = vtanh.pop %v2245
      %2267 = vrot.lane.b32.xlu0 %v2215, 32
      %v2268 = vpop.permute.xlu0 %2267
      %v2270 = vmul.f32 %v2264, %v2268
      %2272 = vrot.lane.b32.xlu0 %v2265, 64
      %v2273 = vpop.permute.xlu0 %2272
      %v2275 = vmul.f32 %v2264, %v2273
      %2277 = vrot.lane.b32.xlu0 %v2275, 32
      %v2278 = vpop.permute.xlu0 %2277
      %v2280 = vadd.f32 %v2270, %v2278
      %v2281 = vtanh.pop %v2280
      %2283 = vrot.lane.b32.xlu0 %v2281, 64
      %v2284 = vpop.permute.xlu0 %2283
      %v2286 = vmul.f32 %v2264, %v2284
      %v2287 = vsub.f32 1.0, %v1422
      %2289 = vset.pattern.permute.xlu0 7
      %2290 = vperm.xlu0 %2289, %v1422
      %v2291 = vpop.permute.xlu0 %2290
      %v2293 = vmul.f32 %v2291, %v2286
      %2295 = vset.pattern.permute.xlu0 7
      %2296 = vperm.xlu0 %2295, %v2287
      %v2297 = vpop.permute.xlu0 %2296
      %v2299 = vmul.f32 %v2297, %v2214
      %2301 = vrot.lane.b32.xlu0 %v2299, 96
      %v2302 = vpop.permute.xlu0 %2301
      %v2304 = vadd.f32 %v2293, %v2302
      %2306 = vrot.lane.b32.xlu0 %v2304, 32
      %v2307 = vpop.permute.xlu0 %2306
      %2309 = vst.msk [vmem:[#allocation2] sm:$0xff] %vm207, %v2307
      %v2310 = vmul.f32 %v2291, %v2280
      %v2311 = vmul.f32 %v2297, %v2215
      %2313 = vrot.lane.b32.xlu0 %v2311, 32
      %v2314 = vpop.permute.xlu0 %2313
      %v2316 = vadd.f32 %v2310, %v2314
      %2318 = vrot.lane.b32.xlu0 %v2316, 96
      %v2319 = vpop.permute.xlu0 %2318
      %2321 = vst.msk [vmem:[#allocation3] sm:$0xff] %vm207, %v2319
    $region129: #{tpu_custom_call.1} parent=1 // pred_fallthru
      _
    %v2322 = vld [vmem:[#allocation2] sm:$0xff]
    %v2323 = vld [vmem:[%s14] sm:$0x1]
    %v2325 = vperm.slane %v2323, 0
    %v2327 = vmul.f32 %v2322, %v2325
    %v2328 = vsel %vm207, %v2327, 0.0
    %2329 = vadd.xlane.f32.xlu0 %v2328
    %v2330 = vpop.xlane.xlu0 %2329
    %v2331 = vld [vmem:[#allocation8] sm:$0x1]
    %v2333 = vperm.slane %v2331, 0
    %v2335 = vadd.f32 %v2330, %v2333
    %v2336 = vxor.u32 %v2335, 2147483648
    %v2337 = vmul.f32 %v2336, 1.442695
    %v2338 = vpow.pop %v2337
    %v2339 = vadd.f32 %v2338, 1.0
    %v2340 = vrcp.pop %v2339
    %v2341 = vmul.f32 %v2339, %v2340
    %v2342 = vsub.f32 1.0, %v2341
    %v2343 = vmul.f32 %v2340, %v2342
    %v2344 = vadd.f32 %v2340, %v2343
    %vm2345 = vweird.f32 %v2339
    %vm2346 = vweird.f32 %v2340
    %vm2347 = vmor %vm2345, %vm2346
    %v2348 = vsel %vm2347, %v2340, %v2344
    %v2349 = vand.u32 2147483647, %v2339
    %vm2350 = vcmp.eq.f32.partialorder %v2349, 8.507059e+37
    %v2351 = vand.u32 %v2339, 2147483648
    %v2352 = vor.u32 1.1754944e-38, %v2351
    %v2353 = vsel %vm2350, %v2352, %v2348
    %v2354 = vmul.f32 1.0, %v2353
    %v2355 = vsub.f32 %v2354, 0.5
    %v2356 = vmul.f32 %v2355, 8.0
    %v2357 = vsub.f32 %v1311, %v2356
    %v2358 = vmul.f32 %v1352, %v2357
    %v2359 = vxor.u32 %v2358, 2147483648
    %v2360 = vmul.f32 %v2359, 1.442695
    %v2361 = vpow.pop %v2360
    %v2362 = vadd.f32 %v2361, 1.0
    %v2363 = vrcp.pop %v2362
    %v2364 = vmul.f32 %v2362, %v2363
    %v2365 = vsub.f32 1.0, %v2364
    %v2366 = vmul.f32 %v2363, %v2365
    %v2367 = vadd.f32 %v2363, %v2366
    %vm2368 = vweird.f32 %v2362
    %vm2369 = vweird.f32 %v2363
    %vm2370 = vmor %vm2368, %vm2369
    %v2371 = vsel %vm2370, %v2363, %v2367
    %v2372 = vand.u32 2147483647, %v2362
    %vm2373 = vcmp.eq.f32.partialorder %v2372, 8.507059e+37
    %v2374 = vand.u32 %v2362, 2147483648
    %v2375 = vor.u32 1.1754944e-38, %v2374
    %v2376 = vsel %vm2373, %v2375, %v2371
    %v2377 = vmul.f32 1.0, %v2376
    %vm2378 = vcmask 7168
    %2379 = vst.msk [vmem:[%s16] sm:$0xff] %vm2378, %v2377
    // Predicated region
    $region130: #{tpu_custom_call.1} parent=1 // pred_check
      _
    $region131: #{tpu_custom_call.1} parent=1 // pred_check_branch
      %2381 = sbr.rel (0) target = $region133
    $region132: #{tpu_custom_call.1} parent=1 // pred_region
      _
    $region133: #{tpu_custom_call.1} parent=1 // pred_fallthru
      _
    // Predicated region
    $region134: #{tpu_custom_call.1} parent=1 // pred_check
      _
    $region135: #{tpu_custom_call.1} parent=1 // pred_check_branch
      %2383 = sbr.rel (0) target = $region137
    $region136: #{tpu_custom_call.1} parent=1 // pred_region
      _
    $region137: #{tpu_custom_call.1} parent=1 // pred_fallthru
      _
    %2384 = vsyncpa [#allocation10], 1
    %2385 = vsyncpa [#allocation12], 1
    %2386 = vsyncpa [#allocation15], 1
    %2387 = vsyncpa [#allocation18], 1
    %2388 = vsyncpa [#allocation21], 1

</llo_original>
